<compile_context>
chip_gen: v7x
topology: tpu7x:2x2x1
jax: 0.10.0
libtpu: 0.0.40
codegen_flags: <defaults>
</compile_context>

<pallas_src>
import functools
import math

import jax
import jax.numpy as jnp
from jax.experimental import pallas as pl
from jax.experimental.pallas import tpu as pltpu


# ---------------------------------------------------------------------------
# In-kernel helpers (operate on jnp values / refs inside the fused kernel).
# ---------------------------------------------------------------------------
def _layernorm(h, g, b, eps):
    mean = jnp.mean(h, axis=-1, keepdims=True)
    c = h - mean
    var = jnp.mean(c * c, axis=-1, keepdims=True)
    return c * jax.lax.rsqrt(var + eps) * g + b


def _linear(x_f32, w_ref, b_ref, relu=False):
    """x_f32: (N, Din) f32; w_ref: bf16 (Din, Dout); b_ref: f32 (1, Dout)."""
    y = jnp.dot(x_f32.astype(jnp.bfloat16), w_ref[...],
                preferred_element_type=jnp.float32) + b_ref[...]
    if relu:
        y = jnp.maximum(y, 0.0)
    return y


def _mh_attention(q, k, v, bias, num_heads, inv_scale):
    """q: (Sq, D) f32, k/v: (Sk, D) f32, bias: (Sq or 1, Sk) f32 additive."""
    d_model = q.shape[-1]
    depth = d_model // num_heads
    outs = []
    for h in range(num_heads):
        sl = slice(h * depth, (h + 1) * depth)
        qh = q[:, sl].astype(jnp.bfloat16)
        kh = k[:, sl].astype(jnp.bfloat16)
        vh = v[:, sl].astype(jnp.bfloat16)
        s = jax.lax.dot_general(qh, kh, (((1,), (1,)), ((), ())),
                                preferred_element_type=jnp.float32)
        s = s * inv_scale + bias                          # -1e6 already folded
        s_max = jnp.max(s, axis=-1, keepdims=True)
        p = jnp.exp(s - s_max)                            # f32 softmax
        denom = jnp.sum(p, axis=-1, keepdims=True)
        inv = pl.reciprocal(denom, approx=True)           # EUP, not VPU divide
        pv = jnp.dot(p.astype(jnp.bfloat16), vh,
                     preferred_element_type=jnp.float32)
        outs.append(pv * inv)                             # scale (Sq,depth)
    return jnp.concatenate(outs, axis=-1)                 # (Sq, D) f32


# ---------------------------------------------------------------------------
# Fused decoder-block kernel: one grid step = one batch element, everything in
# VMEM.
# ---------------------------------------------------------------------------
def _decoder_block_kernel(
        x_ref, enc_ref, la_bias_ref, pad_bias_ref,
        wqkv_s_ref, bqkv_s_ref, wo_s_ref, bo_s_ref,
        wq_c_ref, bq_c_ref, wkv_c_ref, bkv_c_ref, wo_c_ref, bo_c_ref,
        ff_w1_ref, ff_b1_ref, ff_w2_ref, ff_b2_ref,
        ln1_g_ref, ln1_b_ref, ln2_g_ref, ln2_b_ref, ln3_g_ref, ln3_b_ref,
        o_ref, *, num_heads, inv_scale, eps):
    x = x_ref[...]                                        # (S, D) f32
    enc = enc_ref[...]                                    # (S_enc, D) f32
    d_model = x.shape[-1]

    # --- masked self-attention + residual LayerNorm -----------------------
    qkv = _linear(x, wqkv_s_ref, bqkv_s_ref)              # (S, 3D)
    q = qkv[:, :d_model]
    k = qkv[:, d_model:2 * d_model]
    v = qkv[:, 2 * d_model:]
    att = _mh_attention(q, k, v, la_bias_ref[...], num_heads, inv_scale)
    mha1 = _linear(att, wo_s_ref, bo_s_ref)
    h = _layernorm(x + mha1, ln1_g_ref[...], ln1_b_ref[...], eps)

    # --- cross-attention over encoder output + residual LayerNorm ---------
    q2 = _linear(h, wq_c_ref, bq_c_ref)
    kv = _linear(enc, wkv_c_ref, bkv_c_ref)               # (S_enc, 2D)
    k2 = kv[:, :d_model]
    v2 = kv[:, d_model:]
    att2 = _mh_attention(q2, k2, v2, pad_bias_ref[...], num_heads, inv_scale)
    mha2 = _linear(att2, wo_c_ref, bo_c_ref)
    a = _layernorm(h + mha2, ln2_g_ref[...], ln2_b_ref[...], eps)

    # --- feed-forward + residual LayerNorm ---------------------------------
    ff1 = _linear(a, ff_w1_ref, ff_b1_ref, relu=True)     # (S, hidden), VMEM
    ff2 = _linear(ff1, ff_w2_ref, ff_b2_ref)              # (S, D)
    o_ref[...] = _layernorm(a + ff2, ln3_g_ref[...], ln3_b_ref[...],
                            eps).astype(o_ref.dtype)


def decoder_block_forward(params, in_tensor, de_lookahead_mask, en_out_tensor,
                          en_pad_mask, *, num_heads, eps):
    b, s, d = in_tensor.shape
    s_enc = en_out_tensor.shape[1]
    hidden = params["ff_w1"].shape[1]
    inv_scale = 1.0 / math.sqrt(d // num_heads)
    bf = jnp.bfloat16
    p_s, p_c = params["m_mha"], params["mha"]

    # Fused projection weights (bf16 MXU operands; biases / LN params stay f32).
    wqkv_s = jnp.concatenate([p_s["wq"], p_s["wk"], p_s["wv"]], axis=1).astype(bf)
    bqkv_s = jnp.concatenate([p_s["bq"], p_s["bk"], p_s["bv"]]).reshape(1, 3 * d)
    wkv_c = jnp.concatenate([p_c["wk"], p_c["wv"]], axis=1).astype(bf)
    bkv_c = jnp.concatenate([p_c["bk"], p_c["bv"]]).reshape(1, 2 * d)

    # Additive attention biases with *(-1e6) folded in; never broadcast to
    # (B, H, Sq, Sk) in HBM.
    la_bias = (de_lookahead_mask.reshape(s, s) * (-1.0e6)).astype(jnp.float32)
    pad_bias = (en_pad_mask.reshape(b, 1, s_enc) * (-1.0e6)).astype(jnp.float32)

    row = lambda t: t.reshape(1, -1)
    const2 = lambda i: (0, 0)
    batch3 = lambda i: (i, 0, 0)

    in_specs = [
        pl.BlockSpec((None, s, d), batch3),               # x
        pl.BlockSpec((None, s_enc, d), batch3),           # enc_out
        pl.BlockSpec((s, s), const2),                     # lookahead bias
        pl.BlockSpec((None, 1, s_enc), batch3),           # pad bias (per batch)
        pl.BlockSpec((d, 3 * d), const2), pl.BlockSpec((1, 3 * d), const2),
        pl.BlockSpec((d, d), const2), pl.BlockSpec((1, d), const2),
        pl.BlockSpec((d, d), const2), pl.BlockSpec((1, d), const2),
        pl.BlockSpec((d, 2 * d), const2), pl.BlockSpec((1, 2 * d), const2),
        pl.BlockSpec((d, d), const2), pl.BlockSpec((1, d), const2),
        pl.BlockSpec((d, hidden), const2), pl.BlockSpec((1, hidden), const2),
        pl.BlockSpec((hidden, d), const2), pl.BlockSpec((1, d), const2),
    ] + [pl.BlockSpec((1, d), const2)] * 6                # 3x (gamma, beta)

    kernel = functools.partial(_decoder_block_kernel, num_heads=num_heads,
                               inv_scale=inv_scale, eps=eps)
    return pl.pallas_call(
        kernel,
        out_shape=jax.ShapeDtypeStruct((b, s, d), in_tensor.dtype),
        grid=(b,),
        in_specs=in_specs,
        out_specs=pl.BlockSpec((None, s, d), batch3),
        compiler_params=pltpu.CompilerParams(
            dimension_semantics=("parallel",)),
    )(
        in_tensor, en_out_tensor, la_bias, pad_bias,
        wqkv_s, bqkv_s, p_s["wo"].astype(bf), row(p_s["bo"]),
        p_c["wq"].astype(bf), row(p_c["bq"]), wkv_c, bkv_c,
        p_c["wo"].astype(bf), row(p_c["bo"]),
        params["ff_w1"].astype(bf), row(params["ff_b1"]),
        params["ff_w2"].astype(bf), row(params["ff_b2"]),
        row(params["ln1_g"]), row(params["ln1_b"]),
        row(params["ln2_g"]), row(params["ln2_b"]),
        row(params["ln3_g"]), row(params["ln3_b"]),
    )


# ---------------------------------------------------------------------------
# Parameter init (deterministic) + pure-JAX reference for validation.
# ---------------------------------------------------------------------------
def _init_mha_params(key, d_model):
    ks = jax.random.split(key, 8)
    ws = 1.0 / math.sqrt(d_model)

    def w(k):
        return ws * jax.random.normal(k, (d_model, d_model), jnp.float32)

    def bias(k):
        return 0.01 * jax.random.normal(k, (d_model,), jnp.float32)

    return {"wq": w(ks[0]), "bq": bias(ks[1]),
            "wk": w(ks[2]), "bk": bias(ks[3]),
            "wv": w(ks[4]), "bv": bias(ks[5]),
            "wo": w(ks[6]), "bo": bias(ks[7])}


def init_params(key, d_model, hidden_size):
    k1, k2, k3, k4, k5, k6 = jax.random.split(key, 6)
    return {
        "m_mha": _init_mha_params(k1, d_model),
        "mha": _init_mha_params(k2, d_model),
        "ff_w1": jax.random.normal(k3, (d_model, hidden_size), jnp.float32)
                 / math.sqrt(d_model),
        "ff_b1": 0.01 * jax.random.normal(k4, (hidden_size,), jnp.float32),
        "ff_w2": jax.random.normal(k5, (hidden_size, d_model), jnp.float32)
                 / math.sqrt(hidden_size),
        "ff_b2": 0.01 * jax.random.normal(k6, (d_model,), jnp.float32),
        "ln1_g": jnp.ones((d_model,), jnp.float32),
        "ln1_b": jnp.zeros((d_model,), jnp.float32),
        "ln2_g": jnp.ones((d_model,), jnp.float32),
        "ln2_b": jnp.zeros((d_model,), jnp.float32),
        "ln3_g": jnp.ones((d_model,), jnp.float32),
        "ln3_b": jnp.zeros((d_model,), jnp.float32),
    }


def ref_decoder_block(params, x, la_mask, enc_out, pad_mask, num_heads, eps):
    hp = jax.lax.Precision.HIGHEST

    def lin(t, w, b):
        return jnp.matmul(t, w, precision=hp) + b

    def ln(h, g, be):
        mean = jnp.mean(h, axis=-1, keepdims=True)
        var = jnp.mean((h - mean) ** 2, axis=-1, keepdims=True)
        return (h - mean) / jnp.sqrt(var + eps) * g + be

    def mha(p, q_in, k_in, v_in, m):
        b_, sq, d = q_in.shape
        sk = k_in.shape[1]
        depth = d // num_heads
        q = lin(q_in, p["wq"], p["bq"])
        k = lin(k_in, p["wk"], p["bk"])
        v = lin(v_in, p["wv"], p["bv"])
        qh = q.reshape(b_, sq, num_heads, depth).transpose(0, 2, 1, 3)
        kh = k.reshape(b_, sk, num_heads, depth).transpose(0, 2, 1, 3)
        vh = v.reshape(b_, sk, num_heads, depth).transpose(0, 2, 1, 3)
        s = jnp.einsum("bhqd,bhkd->bhqk", qh, kh, precision=hp)
        s = s / math.sqrt(depth) - m * 1.0e6
        p_att = jax.nn.softmax(s, axis=-1)
        att = jnp.einsum("bhqk,bhkd->bhqd", p_att, vh, precision=hp)
        merged = att.transpose(0, 2, 1, 3).reshape(b_, sq, d)
        return lin(merged, p["wo"], p["bo"])

    m1 = mha(params["m_mha"], x, x, x, la_mask)
    h = ln(x + m1, params["ln1_g"], params["ln1_b"])
    m2 = mha(params["mha"], h, enc_out, enc_out, pad_mask)
    a = ln(h + m2, params["ln2_g"], params["ln2_b"])
    ff = lin(jnp.maximum(lin(a, params["ff_w1"], params["ff_b1"]), 0.0),
             params["ff_w2"], params["ff_b2"])
    return ln(a + ff, params["ln3_g"], params["ln3_b"])


# ---------------------------------------------------------------------------
if __name__ == "__main__":
    B, S_DEC, S_ENC = 2, 8, 8
    D_MODEL, NUM_HEADS, HIDDEN = 32, 4, 64
    NORM_EPS = 1e-6

    key = jax.random.PRNGKey(0)
    k_params, k_x, k_enc = jax.random.split(key, 3)
    params = init_params(k_params, D_MODEL, HIDDEN)
    x = jax.random.normal(k_x, (B, S_DEC, D_MODEL), dtype=jnp.float32)
    enc_out = jax.random.normal(k_enc, (B, S_ENC, D_MODEL), dtype=jnp.float32)

    # look-ahead mask (1, 1, S, S): 1.0 strictly above the diagonal
    row_i = jnp.arange(S_DEC)[:, None]
    col_i = jnp.arange(S_DEC)[None, :]
    la_mask = (col_i > row_i).astype(jnp.float32)[None, None, :, :]
    # encoder pad mask (B, 1, 1, S_enc): mark last position of batch 1 padded
    pad_mask = jnp.zeros((B, 1, 1, S_ENC), jnp.float32).at[1, 0, 0, -1].set(1.0)

    out = decoder_block_forward(params, x, la_mask, enc_out, pad_mask,
                                num_heads=NUM_HEADS, eps=NORM_EPS)
    out = jax.block_until_ready(out)

    ref = ref_decoder_block(params, x, la_mask, enc_out, pad_mask,
                            NUM_HEADS, NORM_EPS)
    assert out.shape == ref.shape and out.dtype == ref.dtype
    max_err = float(jnp.max(jnp.abs(out - ref)))
    # Matmul operands are bf16 (f32 accumulation), so tolerance is set for
    # bf16-level rounding; softmax/LayerNorm math is exact f32.
    assert jnp.allclose(out, ref, atol=5e-2, rtol=5e-2), (
        f"mismatch vs reference, max abs err = {max_err}")

    print("KERNEL_OK")
</pallas_src>

<mosaic_0001>
module attributes {stable_mosaic.version = 11 : i64} {
  func.func @_decoder_block_kernel(%arg0: i32, %arg1: memref<1x8x32xf32, #tpu.memory_space<vmem>>, %arg2: memref<1x8x32xf32, #tpu.memory_space<vmem>>, %arg3: memref<8x8xf32, #tpu.memory_space<vmem>>, %arg4: memref<1x1x8xf32, #tpu.memory_space<vmem>>, %arg5: memref<32x96xbf16, #tpu.memory_space<vmem>>, %arg6: memref<1x96xf32, #tpu.memory_space<vmem>>, %arg7: memref<32x32xbf16, #tpu.memory_space<vmem>>, %arg8: memref<1x32xf32, #tpu.memory_space<vmem>>, %arg9: memref<32x32xbf16, #tpu.memory_space<vmem>>, %arg10: memref<1x32xf32, #tpu.memory_space<vmem>>, %arg11: memref<32x64xbf16, #tpu.memory_space<vmem>>, %arg12: memref<1x64xf32, #tpu.memory_space<vmem>>, %arg13: memref<32x32xbf16, #tpu.memory_space<vmem>>, %arg14: memref<1x32xf32, #tpu.memory_space<vmem>>, %arg15: memref<32x64xbf16, #tpu.memory_space<vmem>>, %arg16: memref<1x64xf32, #tpu.memory_space<vmem>>, %arg17: memref<64x32xbf16, #tpu.memory_space<vmem>>, %arg18: memref<1x32xf32, #tpu.memory_space<vmem>>, %arg19: memref<1x32xf32, #tpu.memory_space<vmem>>, %arg20: memref<1x32xf32, #tpu.memory_space<vmem>>, %arg21: memref<1x32xf32, #tpu.memory_space<vmem>>, %arg22: memref<1x32xf32, #tpu.memory_space<vmem>>, %arg23: memref<1x32xf32, #tpu.memory_space<vmem>>, %arg24: memref<1x32xf32, #tpu.memory_space<vmem>>, %arg25: memref<1x8x32xf32, #tpu.memory_space<vmem>>) attributes {dimension_semantics = [#tpu.dimension_semantics<parallel>], iteration_bounds = array<i64: 2>, scalar_prefetch = 0 : i64, scratch_operands = 0 : i64, tpu.core_type = #tpu.core_type<tc>, window_params = [{transform_indices = @transform_0, window_bounds = array<i64: 1, 8, 32>}, {transform_indices = @transform_1, window_bounds = array<i64: 1, 8, 32>}, {pipeline_mode = #tpu.pipeline_mode<synchronous>, transform_indices = @transform_2, window_bounds = array<i64: 8, 8>}, {transform_indices = @transform_3, window_bounds = array<i64: 1, 1, 8>}, {pipeline_mode = #tpu.pipeline_mode<synchronous>, transform_indices = @transform_4, window_bounds = array<i64: 32, 96>}, {pipeline_mode = #tpu.pipeline_mode<synchronous>, transform_indices = @transform_5, window_bounds = array<i64: 1, 96>}, {pipeline_mode = #tpu.pipeline_mode<synchronous>, transform_indices = @transform_6, window_bounds = array<i64: 32, 32>}, {pipeline_mode = #tpu.pipeline_mode<synchronous>, transform_indices = @transform_7, window_bounds = array<i64: 1, 32>}, {pipeline_mode = #tpu.pipeline_mode<synchronous>, transform_indices = @transform_8, window_bounds = array<i64: 32, 32>}, {pipeline_mode = #tpu.pipeline_mode<synchronous>, transform_indices = @transform_9, window_bounds = array<i64: 1, 32>}, {pipeline_mode = #tpu.pipeline_mode<synchronous>, transform_indices = @transform_10, window_bounds = array<i64: 32, 64>}, {pipeline_mode = #tpu.pipeline_mode<synchronous>, transform_indices = @transform_11, window_bounds = array<i64: 1, 64>}, {pipeline_mode = #tpu.pipeline_mode<synchronous>, transform_indices = @transform_12, window_bounds = array<i64: 32, 32>}, {pipeline_mode = #tpu.pipeline_mode<synchronous>, transform_indices = @transform_13, window_bounds = array<i64: 1, 32>}, {pipeline_mode = #tpu.pipeline_mode<synchronous>, transform_indices = @transform_14, window_bounds = array<i64: 32, 64>}, {pipeline_mode = #tpu.pipeline_mode<synchronous>, transform_indices = @transform_15, window_bounds = array<i64: 1, 64>}, {pipeline_mode = #tpu.pipeline_mode<synchronous>, transform_indices = @transform_16, window_bounds = array<i64: 64, 32>}, {pipeline_mode = #tpu.pipeline_mode<synchronous>, transform_indices = @transform_17, window_bounds = array<i64: 1, 32>}, {pipeline_mode = #tpu.pipeline_mode<synchronous>, transform_indices = @transform_18, window_bounds = array<i64: 1, 32>}, {pipeline_mode = #tpu.pipeline_mode<synchronous>, transform_indices = @transform_19, window_bounds = array<i64: 1, 32>}, {pipeline_mode = #tpu.pipeline_mode<synchronous>, transform_indices = @transform_20, window_bounds = array<i64: 1, 32>}, {pipeline_mode = #tpu.pipeline_mode<synchronous>, transform_indices = @transform_21, window_bounds = array<i64: 1, 32>}, {pipeline_mode = #tpu.pipeline_mode<synchronous>, transform_indices = @transform_22, window_bounds = array<i64: 1, 32>}, {pipeline_mode = #tpu.pipeline_mode<synchronous>, transform_indices = @transform_23, window_bounds = array<i64: 1, 32>}, {transform_indices = @transform_24, window_bounds = array<i64: 1, 8, 32>}]} {
    %c0 = arith.constant 0 : index
    %c0_0 = arith.constant 0 : index
    %c0_1 = arith.constant 0 : index
    %0 = vector.load %arg1[%c0, %c0_0, %c0_1] : memref<1x8x32xf32, #tpu.memory_space<vmem>>, vector<1x8x32xf32>
    %1 = vector.shape_cast %0 : vector<1x8x32xf32> to vector<8x32xf32>
    %c0_2 = arith.constant 0 : index
    %c0_3 = arith.constant 0 : index
    %c0_4 = arith.constant 0 : index
    %2 = vector.load %arg2[%c0_2, %c0_3, %c0_4] : memref<1x8x32xf32, #tpu.memory_space<vmem>>, vector<1x8x32xf32>
    %3 = vector.shape_cast %2 : vector<1x8x32xf32> to vector<8x32xf32>
    %4 = arith.truncf %1 : vector<8x32xf32> to vector<8x32xbf16>
    %c0_5 = arith.constant 0 : index
    %c0_6 = arith.constant 0 : index
    %5 = vector.load %arg5[%c0_5, %c0_6] : memref<32x96xbf16, #tpu.memory_space<vmem>>, vector<32x96xbf16>
    %cst = arith.constant dense<0.000000e+00> : vector<8x96xf32>
    %6 = tpu.matmul %4, %5, %cst {dimension_numbers = #tpu.dot_dimension_numbers<[1], [0], [0], [1], [0, 0, 1, 1], [], []>} : vector<8x32xbf16>, vector<32x96xbf16>, vector<8x96xf32> -> vector<8x96xf32>
    %c0_7 = arith.constant 0 : index
    %c0_8 = arith.constant 0 : index
    %7 = vector.load %arg6[%c0_7, %c0_8] : memref<1x96xf32, #tpu.memory_space<vmem>>, vector<1x96xf32>
    %8 = vector.broadcast %7 : vector<1x96xf32> to vector<8x96xf32>
    %9 = arith.addf %6, %8 : vector<8x96xf32>
    %10 = vector.extract_strided_slice %9 {offsets = [0, 0], sizes = [8, 32], strides = [1, 1]} : vector<8x96xf32> to vector<8x32xf32>
    %11 = vector.extract_strided_slice %9 {offsets = [0, 32], sizes = [8, 32], strides = [1, 1]} : vector<8x96xf32> to vector<8x32xf32>
    %12 = vector.extract_strided_slice %9 {offsets = [0, 64], sizes = [8, 32], strides = [1, 1]} : vector<8x96xf32> to vector<8x32xf32>
    %c0_9 = arith.constant 0 : index
    %c0_10 = arith.constant 0 : index
    %13 = vector.load %arg3[%c0_9, %c0_10] : memref<8x8xf32, #tpu.memory_space<vmem>>, vector<8x8xf32>
    %14 = vector.extract_strided_slice %10 {offsets = [0, 0], sizes = [8, 8], strides = [1, 1]} : vector<8x32xf32> to vector<8x8xf32>
    %15 = arith.truncf %14 : vector<8x8xf32> to vector<8x8xbf16>
    %16 = vector.extract_strided_slice %11 {offsets = [0, 0], sizes = [8, 8], strides = [1, 1]} : vector<8x32xf32> to vector<8x8xf32>
    %17 = arith.truncf %16 : vector<8x8xf32> to vector<8x8xbf16>
    %18 = vector.extract_strided_slice %12 {offsets = [0, 0], sizes = [8, 8], strides = [1, 1]} : vector<8x32xf32> to vector<8x8xf32>
    %19 = arith.truncf %18 : vector<8x8xf32> to vector<8x8xbf16>
    %cst_11 = arith.constant dense<0.000000e+00> : vector<8x8xf32>
    %20 = tpu.matmul %15, %17, %cst_11 {dimension_numbers = #tpu.dot_dimension_numbers<[1], [1], [0], [0], [0, 0, 1, 0], [], []>} : vector<8x8xbf16>, vector<8x8xbf16>, vector<8x8xf32> -> vector<8x8xf32>
    %cst_12 = arith.constant 0.353553385 : f32
    %21 = vector.broadcast %cst_12 : f32 to vector<8x8xf32>
    %22 = arith.mulf %20, %21 : vector<8x8xf32>
    %23 = arith.addf %22, %13 : vector<8x8xf32>
    %cst_13 = arith.constant dense<0xFF800000> : vector<8xf32>
    %24 = vector.multi_reduction <maximumf>, %23, %cst_13 [1] : vector<8x8xf32> to vector<8xf32>
    %25 = vector.shape_cast %24 : vector<8xf32> to vector<8x1xf32>
    %26 = vector.broadcast %25 : vector<8x1xf32> to vector<8x8xf32>
    %27 = arith.subf %23, %26 : vector<8x8xf32>
    %28 = math.exp %27 : vector<8x8xf32>
    %cst_14 = arith.constant dense<0.000000e+00> : vector<8xf32>
    %29 = vector.multi_reduction <add>, %28, %cst_14 [1] : vector<8x8xf32> to vector<8xf32>
    %30 = vector.shape_cast %29 : vector<8xf32> to vector<8x1xf32>
    %31 = tpu.reciprocal %30 {approx = true} : vector<8x1xf32> -> vector<8x1xf32>
    %32 = arith.truncf %28 : vector<8x8xf32> to vector<8x8xbf16>
    %cst_15 = arith.constant dense<0.000000e+00> : vector<8x8xf32>
    %33 = tpu.matmul %32, %19, %cst_15 {dimension_numbers = #tpu.dot_dimension_numbers<[1], [0], [0], [1], [0, 0, 1, 1], [], []>} : vector<8x8xbf16>, vector<8x8xbf16>, vector<8x8xf32> -> vector<8x8xf32>
    %34 = vector.broadcast %31 : vector<8x1xf32> to vector<8x8xf32>
    %35 = arith.mulf %33, %34 : vector<8x8xf32>
    %36 = vector.extract_strided_slice %10 {offsets = [0, 8], sizes = [8, 8], strides = [1, 1]} : vector<8x32xf32> to vector<8x8xf32>
    %37 = arith.truncf %36 : vector<8x8xf32> to vector<8x8xbf16>
    %38 = vector.extract_strided_slice %11 {offsets = [0, 8], sizes = [8, 8], strides = [1, 1]} : vector<8x32xf32> to vector<8x8xf32>
    %39 = arith.truncf %38 : vector<8x8xf32> to vector<8x8xbf16>
    %40 = vector.extract_strided_slice %12 {offsets = [0, 8], sizes = [8, 8], strides = [1, 1]} : vector<8x32xf32> to vector<8x8xf32>
    %41 = arith.truncf %40 : vector<8x8xf32> to vector<8x8xbf16>
    %cst_16 = arith.constant dense<0.000000e+00> : vector<8x8xf32>
    %42 = tpu.matmul %37, %39, %cst_16 {dimension_numbers = #tpu.dot_dimension_numbers<[1], [1], [0], [0], [0, 0, 1, 0], [], []>} : vector<8x8xbf16>, vector<8x8xbf16>, vector<8x8xf32> -> vector<8x8xf32>
    %cst_17 = arith.constant 0.353553385 : f32
    %43 = vector.broadcast %cst_17 : f32 to vector<8x8xf32>
    %44 = arith.mulf %42, %43 : vector<8x8xf32>
    %45 = arith.addf %44, %13 : vector<8x8xf32>
    %cst_18 = arith.constant dense<0xFF800000> : vector<8xf32>
    %46 = vector.multi_reduction <maximumf>, %45, %cst_18 [1] : vector<8x8xf32> to vector<8xf32>
    %47 = vector.shape_cast %46 : vector<8xf32> to vector<8x1xf32>
    %48 = vector.broadcast %47 : vector<8x1xf32> to vector<8x8xf32>
    %49 = arith.subf %45, %48 : vector<8x8xf32>
    %50 = math.exp %49 : vector<8x8xf32>
    %cst_19 = arith.constant dense<0.000000e+00> : vector<8xf32>
    %51 = vector.multi_reduction <add>, %50, %cst_19 [1] : vector<8x8xf32> to vector<8xf32>
    %52 = vector.shape_cast %51 : vector<8xf32> to vector<8x1xf32>
    %53 = tpu.reciprocal %52 {approx = true} : vector<8x1xf32> -> vector<8x1xf32>
    %54 = arith.truncf %50 : vector<8x8xf32> to vector<8x8xbf16>
    %cst_20 = arith.constant dense<0.000000e+00> : vector<8x8xf32>
    %55 = tpu.matmul %54, %41, %cst_20 {dimension_numbers = #tpu.dot_dimension_numbers<[1], [0], [0], [1], [0, 0, 1, 1], [], []>} : vector<8x8xbf16>, vector<8x8xbf16>, vector<8x8xf32> -> vector<8x8xf32>
    %56 = vector.broadcast %53 : vector<8x1xf32> to vector<8x8xf32>
    %57 = arith.mulf %55, %56 : vector<8x8xf32>
    %58 = vector.extract_strided_slice %10 {offsets = [0, 16], sizes = [8, 8], strides = [1, 1]} : vector<8x32xf32> to vector<8x8xf32>
    %59 = arith.truncf %58 : vector<8x8xf32> to vector<8x8xbf16>
    %60 = vector.extract_strided_slice %11 {offsets = [0, 16], sizes = [8, 8], strides = [1, 1]} : vector<8x32xf32> to vector<8x8xf32>
    %61 = arith.truncf %60 : vector<8x8xf32> to vector<8x8xbf16>
    %62 = vector.extract_strided_slice %12 {offsets = [0, 16], sizes = [8, 8], strides = [1, 1]} : vector<8x32xf32> to vector<8x8xf32>
    %63 = arith.truncf %62 : vector<8x8xf32> to vector<8x8xbf16>
    %cst_21 = arith.constant dense<0.000000e+00> : vector<8x8xf32>
    %64 = tpu.matmul %59, %61, %cst_21 {dimension_numbers = #tpu.dot_dimension_numbers<[1], [1], [0], [0], [0, 0, 1, 0], [], []>} : vector<8x8xbf16>, vector<8x8xbf16>, vector<8x8xf32> -> vector<8x8xf32>
    %cst_22 = arith.constant 0.353553385 : f32
    %65 = vector.broadcast %cst_22 : f32 to vector<8x8xf32>
    %66 = arith.mulf %64, %65 : vector<8x8xf32>
    %67 = arith.addf %66, %13 : vector<8x8xf32>
    %cst_23 = arith.constant dense<0xFF800000> : vector<8xf32>
    %68 = vector.multi_reduction <maximumf>, %67, %cst_23 [1] : vector<8x8xf32> to vector<8xf32>
    %69 = vector.shape_cast %68 : vector<8xf32> to vector<8x1xf32>
    %70 = vector.broadcast %69 : vector<8x1xf32> to vector<8x8xf32>
    %71 = arith.subf %67, %70 : vector<8x8xf32>
    %72 = math.exp %71 : vector<8x8xf32>
    %cst_24 = arith.constant dense<0.000000e+00> : vector<8xf32>
    %73 = vector.multi_reduction <add>, %72, %cst_24 [1] : vector<8x8xf32> to vector<8xf32>
    %74 = vector.shape_cast %73 : vector<8xf32> to vector<8x1xf32>
    %75 = tpu.reciprocal %74 {approx = true} : vector<8x1xf32> -> vector<8x1xf32>
    %76 = arith.truncf %72 : vector<8x8xf32> to vector<8x8xbf16>
    %cst_25 = arith.constant dense<0.000000e+00> : vector<8x8xf32>
    %77 = tpu.matmul %76, %63, %cst_25 {dimension_numbers = #tpu.dot_dimension_numbers<[1], [0], [0], [1], [0, 0, 1, 1], [], []>} : vector<8x8xbf16>, vector<8x8xbf16>, vector<8x8xf32> -> vector<8x8xf32>
    %78 = vector.broadcast %75 : vector<8x1xf32> to vector<8x8xf32>
    %79 = arith.mulf %77, %78 : vector<8x8xf32>
    %80 = vector.extract_strided_slice %10 {offsets = [0, 24], sizes = [8, 8], strides = [1, 1]} : vector<8x32xf32> to vector<8x8xf32>
    %81 = arith.truncf %80 : vector<8x8xf32> to vector<8x8xbf16>
    %82 = vector.extract_strided_slice %11 {offsets = [0, 24], sizes = [8, 8], strides = [1, 1]} : vector<8x32xf32> to vector<8x8xf32>
    %83 = arith.truncf %82 : vector<8x8xf32> to vector<8x8xbf16>
    %84 = vector.extract_strided_slice %12 {offsets = [0, 24], sizes = [8, 8], strides = [1, 1]} : vector<8x32xf32> to vector<8x8xf32>
    %85 = arith.truncf %84 : vector<8x8xf32> to vector<8x8xbf16>
    %cst_26 = arith.constant dense<0.000000e+00> : vector<8x8xf32>
    %86 = tpu.matmul %81, %83, %cst_26 {dimension_numbers = #tpu.dot_dimension_numbers<[1], [1], [0], [0], [0, 0, 1, 0], [], []>} : vector<8x8xbf16>, vector<8x8xbf16>, vector<8x8xf32> -> vector<8x8xf32>
    %cst_27 = arith.constant 0.353553385 : f32
    %87 = vector.broadcast %cst_27 : f32 to vector<8x8xf32>
    %88 = arith.mulf %86, %87 : vector<8x8xf32>
    %89 = arith.addf %88, %13 : vector<8x8xf32>
    %cst_28 = arith.constant dense<0xFF800000> : vector<8xf32>
    %90 = vector.multi_reduction <maximumf>, %89, %cst_28 [1] : vector<8x8xf32> to vector<8xf32>
    %91 = vector.shape_cast %90 : vector<8xf32> to vector<8x1xf32>
    %92 = vector.broadcast %91 : vector<8x1xf32> to vector<8x8xf32>
    %93 = arith.subf %89, %92 : vector<8x8xf32>
    %94 = math.exp %93 : vector<8x8xf32>
    %cst_29 = arith.constant dense<0.000000e+00> : vector<8xf32>
    %95 = vector.multi_reduction <add>, %94, %cst_29 [1] : vector<8x8xf32> to vector<8xf32>
    %96 = vector.shape_cast %95 : vector<8xf32> to vector<8x1xf32>
    %97 = tpu.reciprocal %96 {approx = true} : vector<8x1xf32> -> vector<8x1xf32>
    %98 = arith.truncf %94 : vector<8x8xf32> to vector<8x8xbf16>
    %cst_30 = arith.constant dense<0.000000e+00> : vector<8x8xf32>
    %99 = tpu.matmul %98, %85, %cst_30 {dimension_numbers = #tpu.dot_dimension_numbers<[1], [0], [0], [1], [0, 0, 1, 1], [], []>} : vector<8x8xbf16>, vector<8x8xbf16>, vector<8x8xf32> -> vector<8x8xf32>
    %100 = vector.broadcast %97 : vector<8x1xf32> to vector<8x8xf32>
    %101 = arith.mulf %99, %100 : vector<8x8xf32>
    %102 = tpu.concatenate %35, %57, %79, %101 in 1 : vector<8x8xf32>, vector<8x8xf32>, vector<8x8xf32>, vector<8x8xf32> -> vector<8x32xf32>
    %103 = arith.truncf %102 : vector<8x32xf32> to vector<8x32xbf16>
    %c0_31 = arith.constant 0 : index
    %c0_32 = arith.constant 0 : index
    %104 = vector.load %arg7[%c0_31, %c0_32] : memref<32x32xbf16, #tpu.memory_space<vmem>>, vector<32x32xbf16>
    %cst_33 = arith.constant dense<0.000000e+00> : vector<8x32xf32>
    %105 = tpu.matmul %103, %104, %cst_33 {dimension_numbers = #tpu.dot_dimension_numbers<[1], [0], [0], [1], [0, 0, 1, 1], [], []>} : vector<8x32xbf16>, vector<32x32xbf16>, vector<8x32xf32> -> vector<8x32xf32>
    %c0_34 = arith.constant 0 : index
    %c0_35 = arith.constant 0 : index
    %106 = vector.load %arg8[%c0_34, %c0_35] : memref<1x32xf32, #tpu.memory_space<vmem>>, vector<1x32xf32>
    %107 = vector.broadcast %106 : vector<1x32xf32> to vector<8x32xf32>
    %108 = arith.addf %105, %107 : vector<8x32xf32>
    %109 = arith.addf %1, %108 : vector<8x32xf32>
    %c0_36 = arith.constant 0 : index
    %c0_37 = arith.constant 0 : index
    %110 = vector.load %arg19[%c0_36, %c0_37] : memref<1x32xf32, #tpu.memory_space<vmem>>, vector<1x32xf32>
    %c0_38 = arith.constant 0 : index
    %c0_39 = arith.constant 0 : index
    %111 = vector.load %arg20[%c0_38, %c0_39] : memref<1x32xf32, #tpu.memory_space<vmem>>, vector<1x32xf32>
    %cst_40 = arith.constant dense<0.000000e+00> : vector<8xf32>
    %112 = vector.multi_reduction <add>, %109, %cst_40 [1] : vector<8x32xf32> to vector<8xf32>
    %113 = vector.shape_cast %112 : vector<8xf32> to vector<8x1xf32>
    %cst_41 = arith.constant 3.200000e+01 : f32
    %114 = vector.broadcast %cst_41 : f32 to vector<8x1xf32>
    %115 = arith.divf %113, %114 : vector<8x1xf32>
    %116 = vector.broadcast %115 : vector<8x1xf32> to vector<8x32xf32>
    %117 = arith.subf %109, %116 : vector<8x32xf32>
    %118 = arith.mulf %117, %117 : vector<8x32xf32>
    %cst_42 = arith.constant dense<0.000000e+00> : vector<8xf32>
    %119 = vector.multi_reduction <add>, %118, %cst_42 [1] : vector<8x32xf32> to vector<8xf32>
    %120 = vector.shape_cast %119 : vector<8xf32> to vector<8x1xf32>
    %cst_43 = arith.constant 3.200000e+01 : f32
    %121 = vector.broadcast %cst_43 : f32 to vector<8x1xf32>
    %122 = arith.divf %120, %121 : vector<8x1xf32>
    %cst_44 = arith.constant 9.99999997E-7 : f32
    %123 = vector.broadcast %cst_44 : f32 to vector<8x1xf32>
    %124 = arith.addf %122, %123 : vector<8x1xf32>
    %125 = math.rsqrt %124 : vector<8x1xf32>
    %126 = vector.broadcast %125 : vector<8x1xf32> to vector<8x32xf32>
    %127 = arith.mulf %117, %126 : vector<8x32xf32>
    %128 = vector.broadcast %110 : vector<1x32xf32> to vector<8x32xf32>
    %129 = arith.mulf %127, %128 : vector<8x32xf32>
    %130 = vector.broadcast %111 : vector<1x32xf32> to vector<8x32xf32>
    %131 = arith.addf %129, %130 : vector<8x32xf32>
    %132 = arith.truncf %131 : vector<8x32xf32> to vector<8x32xbf16>
    %c0_45 = arith.constant 0 : index
    %c0_46 = arith.constant 0 : index
    %133 = vector.load %arg9[%c0_45, %c0_46] : memref<32x32xbf16, #tpu.memory_space<vmem>>, vector<32x32xbf16>
    %cst_47 = arith.constant dense<0.000000e+00> : vector<8x32xf32>
    %134 = tpu.matmul %132, %133, %cst_47 {dimension_numbers = #tpu.dot_dimension_numbers<[1], [0], [0], [1], [0, 0, 1, 1], [], []>} : vector<8x32xbf16>, vector<32x32xbf16>, vector<8x32xf32> -> vector<8x32xf32>
    %c0_48 = arith.constant 0 : index
    %c0_49 = arith.constant 0 : index
    %135 = vector.load %arg10[%c0_48, %c0_49] : memref<1x32xf32, #tpu.memory_space<vmem>>, vector<1x32xf32>
    %136 = vector.broadcast %135 : vector<1x32xf32> to vector<8x32xf32>
    %137 = arith.addf %134, %136 : vector<8x32xf32>
    %138 = arith.truncf %3 : vector<8x32xf32> to vector<8x32xbf16>
    %c0_50 = arith.constant 0 : index
    %c0_51 = arith.constant 0 : index
    %139 = vector.load %arg11[%c0_50, %c0_51] : memref<32x64xbf16, #tpu.memory_space<vmem>>, vector<32x64xbf16>
    %cst_52 = arith.constant dense<0.000000e+00> : vector<8x64xf32>
    %140 = tpu.matmul %138, %139, %cst_52 {dimension_numbers = #tpu.dot_dimension_numbers<[1], [0], [0], [1], [0, 0, 1, 1], [], []>} : vector<8x32xbf16>, vector<32x64xbf16>, vector<8x64xf32> -> vector<8x64xf32>
    %c0_53 = arith.constant 0 : index
    %c0_54 = arith.constant 0 : index
    %141 = vector.load %arg12[%c0_53, %c0_54] : memref<1x64xf32, #tpu.memory_space<vmem>>, vector<1x64xf32>
    %142 = vector.broadcast %141 : vector<1x64xf32> to vector<8x64xf32>
    %143 = arith.addf %140, %142 : vector<8x64xf32>
    %144 = vector.extract_strided_slice %143 {offsets = [0, 0], sizes = [8, 32], strides = [1, 1]} : vector<8x64xf32> to vector<8x32xf32>
    %145 = vector.extract_strided_slice %143 {offsets = [0, 32], sizes = [8, 32], strides = [1, 1]} : vector<8x64xf32> to vector<8x32xf32>
    %c0_55 = arith.constant 0 : index
    %c0_56 = arith.constant 0 : index
    %c0_57 = arith.constant 0 : index
    %146 = vector.load %arg4[%c0_55, %c0_56, %c0_57] : memref<1x1x8xf32, #tpu.memory_space<vmem>>, vector<1x1x8xf32>
    %147 = vector.shape_cast %146 : vector<1x1x8xf32> to vector<1x8xf32>
    %148 = vector.extract_strided_slice %137 {offsets = [0, 0], sizes = [8, 8], strides = [1, 1]} : vector<8x32xf32> to vector<8x8xf32>
    %149 = arith.truncf %148 : vector<8x8xf32> to vector<8x8xbf16>
    %150 = vector.extract_strided_slice %144 {offsets = [0, 0], sizes = [8, 8], strides = [1, 1]} : vector<8x32xf32> to vector<8x8xf32>
    %151 = arith.truncf %150 : vector<8x8xf32> to vector<8x8xbf16>
    %152 = vector.extract_strided_slice %145 {offsets = [0, 0], sizes = [8, 8], strides = [1, 1]} : vector<8x32xf32> to vector<8x8xf32>
    %153 = arith.truncf %152 : vector<8x8xf32> to vector<8x8xbf16>
    %cst_58 = arith.constant dense<0.000000e+00> : vector<8x8xf32>
    %154 = tpu.matmul %149, %151, %cst_58 {dimension_numbers = #tpu.dot_dimension_numbers<[1], [1], [0], [0], [0, 0, 1, 0], [], []>} : vector<8x8xbf16>, vector<8x8xbf16>, vector<8x8xf32> -> vector<8x8xf32>
    %cst_59 = arith.constant 0.353553385 : f32
    %155 = vector.broadcast %cst_59 : f32 to vector<8x8xf32>
    %156 = arith.mulf %154, %155 : vector<8x8xf32>
    %157 = vector.broadcast %147 : vector<1x8xf32> to vector<8x8xf32>
    %158 = arith.addf %156, %157 : vector<8x8xf32>
    %cst_60 = arith.constant dense<0xFF800000> : vector<8xf32>
    %159 = vector.multi_reduction <maximumf>, %158, %cst_60 [1] : vector<8x8xf32> to vector<8xf32>
    %160 = vector.shape_cast %159 : vector<8xf32> to vector<8x1xf32>
    %161 = vector.broadcast %160 : vector<8x1xf32> to vector<8x8xf32>
    %162 = arith.subf %158, %161 : vector<8x8xf32>
    %163 = math.exp %162 : vector<8x8xf32>
    %cst_61 = arith.constant dense<0.000000e+00> : vector<8xf32>
    %164 = vector.multi_reduction <add>, %163, %cst_61 [1] : vector<8x8xf32> to vector<8xf32>
    %165 = vector.shape_cast %164 : vector<8xf32> to vector<8x1xf32>
    %166 = tpu.reciprocal %165 {approx = true} : vector<8x1xf32> -> vector<8x1xf32>
    %167 = arith.truncf %163 : vector<8x8xf32> to vector<8x8xbf16>
    %cst_62 = arith.constant dense<0.000000e+00> : vector<8x8xf32>
    %168 = tpu.matmul %167, %153, %cst_62 {dimension_numbers = #tpu.dot_dimension_numbers<[1], [0], [0], [1], [0, 0, 1, 1], [], []>} : vector<8x8xbf16>, vector<8x8xbf16>, vector<8x8xf32> -> vector<8x8xf32>
    %169 = vector.broadcast %166 : vector<8x1xf32> to vector<8x8xf32>
    %170 = arith.mulf %168, %169 : vector<8x8xf32>
    %171 = vector.extract_strided_slice %137 {offsets = [0, 8], sizes = [8, 8], strides = [1, 1]} : vector<8x32xf32> to vector<8x8xf32>
    %172 = arith.truncf %171 : vector<8x8xf32> to vector<8x8xbf16>
    %173 = vector.extract_strided_slice %144 {offsets = [0, 8], sizes = [8, 8], strides = [1, 1]} : vector<8x32xf32> to vector<8x8xf32>
    %174 = arith.truncf %173 : vector<8x8xf32> to vector<8x8xbf16>
    %175 = vector.extract_strided_slice %145 {offsets = [0, 8], sizes = [8, 8], strides = [1, 1]} : vector<8x32xf32> to vector<8x8xf32>
    %176 = arith.truncf %175 : vector<8x8xf32> to vector<8x8xbf16>
    %cst_63 = arith.constant dense<0.000000e+00> : vector<8x8xf32>
    %177 = tpu.matmul %172, %174, %cst_63 {dimension_numbers = #tpu.dot_dimension_numbers<[1], [1], [0], [0], [0, 0, 1, 0], [], []>} : vector<8x8xbf16>, vector<8x8xbf16>, vector<8x8xf32> -> vector<8x8xf32>
    %cst_64 = arith.constant 0.353553385 : f32
    %178 = vector.broadcast %cst_64 : f32 to vector<8x8xf32>
    %179 = arith.mulf %177, %178 : vector<8x8xf32>
    %180 = vector.broadcast %147 : vector<1x8xf32> to vector<8x8xf32>
    %181 = arith.addf %179, %180 : vector<8x8xf32>
    %cst_65 = arith.constant dense<0xFF800000> : vector<8xf32>
    %182 = vector.multi_reduction <maximumf>, %181, %cst_65 [1] : vector<8x8xf32> to vector<8xf32>
    %183 = vector.shape_cast %182 : vector<8xf32> to vector<8x1xf32>
    %184 = vector.broadcast %183 : vector<8x1xf32> to vector<8x8xf32>
    %185 = arith.subf %181, %184 : vector<8x8xf32>
    %186 = math.exp %185 : vector<8x8xf32>
    %cst_66 = arith.constant dense<0.000000e+00> : vector<8xf32>
    %187 = vector.multi_reduction <add>, %186, %cst_66 [1] : vector<8x8xf32> to vector<8xf32>
    %188 = vector.shape_cast %187 : vector<8xf32> to vector<8x1xf32>
    %189 = tpu.reciprocal %188 {approx = true} : vector<8x1xf32> -> vector<8x1xf32>
    %190 = arith.truncf %186 : vector<8x8xf32> to vector<8x8xbf16>
    %cst_67 = arith.constant dense<0.000000e+00> : vector<8x8xf32>
    %191 = tpu.matmul %190, %176, %cst_67 {dimension_numbers = #tpu.dot_dimension_numbers<[1], [0], [0], [1], [0, 0, 1, 1], [], []>} : vector<8x8xbf16>, vector<8x8xbf16>, vector<8x8xf32> -> vector<8x8xf32>
    %192 = vector.broadcast %189 : vector<8x1xf32> to vector<8x8xf32>
    %193 = arith.mulf %191, %192 : vector<8x8xf32>
    %194 = vector.extract_strided_slice %137 {offsets = [0, 16], sizes = [8, 8], strides = [1, 1]} : vector<8x32xf32> to vector<8x8xf32>
    %195 = arith.truncf %194 : vector<8x8xf32> to vector<8x8xbf16>
    %196 = vector.extract_strided_slice %144 {offsets = [0, 16], sizes = [8, 8], strides = [1, 1]} : vector<8x32xf32> to vector<8x8xf32>
    %197 = arith.truncf %196 : vector<8x8xf32> to vector<8x8xbf16>
    %198 = vector.extract_strided_slice %145 {offsets = [0, 16], sizes = [8, 8], strides = [1, 1]} : vector<8x32xf32> to vector<8x8xf32>
    %199 = arith.truncf %198 : vector<8x8xf32> to vector<8x8xbf16>
    %cst_68 = arith.constant dense<0.000000e+00> : vector<8x8xf32>
    %200 = tpu.matmul %195, %197, %cst_68 {dimension_numbers = #tpu.dot_dimension_numbers<[1], [1], [0], [0], [0, 0, 1, 0], [], []>} : vector<8x8xbf16>, vector<8x8xbf16>, vector<8x8xf32> -> vector<8x8xf32>
    %cst_69 = arith.constant 0.353553385 : f32
    %201 = vector.broadcast %cst_69 : f32 to vector<8x8xf32>
    %202 = arith.mulf %200, %201 : vector<8x8xf32>
    %203 = vector.broadcast %147 : vector<1x8xf32> to vector<8x8xf32>
    %204 = arith.addf %202, %203 : vector<8x8xf32>
    %cst_70 = arith.constant dense<0xFF800000> : vector<8xf32>
    %205 = vector.multi_reduction <maximumf>, %204, %cst_70 [1] : vector<8x8xf32> to vector<8xf32>
    %206 = vector.shape_cast %205 : vector<8xf32> to vector<8x1xf32>
    %207 = vector.broadcast %206 : vector<8x1xf32> to vector<8x8xf32>
    %208 = arith.subf %204, %207 : vector<8x8xf32>
    %209 = math.exp %208 : vector<8x8xf32>
    %cst_71 = arith.constant dense<0.000000e+00> : vector<8xf32>
    %210 = vector.multi_reduction <add>, %209, %cst_71 [1] : vector<8x8xf32> to vector<8xf32>
    %211 = vector.shape_cast %210 : vector<8xf32> to vector<8x1xf32>
    %212 = tpu.reciprocal %211 {approx = true} : vector<8x1xf32> -> vector<8x1xf32>
    %213 = arith.truncf %209 : vector<8x8xf32> to vector<8x8xbf16>
    %cst_72 = arith.constant dense<0.000000e+00> : vector<8x8xf32>
    %214 = tpu.matmul %213, %199, %cst_72 {dimension_numbers = #tpu.dot_dimension_numbers<[1], [0], [0], [1], [0, 0, 1, 1], [], []>} : vector<8x8xbf16>, vector<8x8xbf16>, vector<8x8xf32> -> vector<8x8xf32>
    %215 = vector.broadcast %212 : vector<8x1xf32> to vector<8x8xf32>
    %216 = arith.mulf %214, %215 : vector<8x8xf32>
    %217 = vector.extract_strided_slice %137 {offsets = [0, 24], sizes = [8, 8], strides = [1, 1]} : vector<8x32xf32> to vector<8x8xf32>
    %218 = arith.truncf %217 : vector<8x8xf32> to vector<8x8xbf16>
    %219 = vector.extract_strided_slice %144 {offsets = [0, 24], sizes = [8, 8], strides = [1, 1]} : vector<8x32xf32> to vector<8x8xf32>
    %220 = arith.truncf %219 : vector<8x8xf32> to vector<8x8xbf16>
    %221 = vector.extract_strided_slice %145 {offsets = [0, 24], sizes = [8, 8], strides = [1, 1]} : vector<8x32xf32> to vector<8x8xf32>
    %222 = arith.truncf %221 : vector<8x8xf32> to vector<8x8xbf16>
    %cst_73 = arith.constant dense<0.000000e+00> : vector<8x8xf32>
    %223 = tpu.matmul %218, %220, %cst_73 {dimension_numbers = #tpu.dot_dimension_numbers<[1], [1], [0], [0], [0, 0, 1, 0], [], []>} : vector<8x8xbf16>, vector<8x8xbf16>, vector<8x8xf32> -> vector<8x8xf32>
    %cst_74 = arith.constant 0.353553385 : f32
    %224 = vector.broadcast %cst_74 : f32 to vector<8x8xf32>
    %225 = arith.mulf %223, %224 : vector<8x8xf32>
    %226 = vector.broadcast %147 : vector<1x8xf32> to vector<8x8xf32>
    %227 = arith.addf %225, %226 : vector<8x8xf32>
    %cst_75 = arith.constant dense<0xFF800000> : vector<8xf32>
    %228 = vector.multi_reduction <maximumf>, %227, %cst_75 [1] : vector<8x8xf32> to vector<8xf32>
    %229 = vector.shape_cast %228 : vector<8xf32> to vector<8x1xf32>
    %230 = vector.broadcast %229 : vector<8x1xf32> to vector<8x8xf32>
    %231 = arith.subf %227, %230 : vector<8x8xf32>
    %232 = math.exp %231 : vector<8x8xf32>
    %cst_76 = arith.constant dense<0.000000e+00> : vector<8xf32>
    %233 = vector.multi_reduction <add>, %232, %cst_76 [1] : vector<8x8xf32> to vector<8xf32>
    %234 = vector.shape_cast %233 : vector<8xf32> to vector<8x1xf32>
    %235 = tpu.reciprocal %234 {approx = true} : vector<8x1xf32> -> vector<8x1xf32>
    %236 = arith.truncf %232 : vector<8x8xf32> to vector<8x8xbf16>
    %cst_77 = arith.constant dense<0.000000e+00> : vector<8x8xf32>
    %237 = tpu.matmul %236, %222, %cst_77 {dimension_numbers = #tpu.dot_dimension_numbers<[1], [0], [0], [1], [0, 0, 1, 1], [], []>} : vector<8x8xbf16>, vector<8x8xbf16>, vector<8x8xf32> -> vector<8x8xf32>
    %238 = vector.broadcast %235 : vector<8x1xf32> to vector<8x8xf32>
    %239 = arith.mulf %237, %238 : vector<8x8xf32>
    %240 = tpu.concatenate %170, %193, %216, %239 in 1 : vector<8x8xf32>, vector<8x8xf32>, vector<8x8xf32>, vector<8x8xf32> -> vector<8x32xf32>
    %241 = arith.truncf %240 : vector<8x32xf32> to vector<8x32xbf16>
    %c0_78 = arith.constant 0 : index
    %c0_79 = arith.constant 0 : index
    %242 = vector.load %arg13[%c0_78, %c0_79] : memref<32x32xbf16, #tpu.memory_space<vmem>>, vector<32x32xbf16>
    %cst_80 = arith.constant dense<0.000000e+00> : vector<8x32xf32>
    %243 = tpu.matmul %241, %242, %cst_80 {dimension_numbers = #tpu.dot_dimension_numbers<[1], [0], [0], [1], [0, 0, 1, 1], [], []>} : vector<8x32xbf16>, vector<32x32xbf16>, vector<8x32xf32> -> vector<8x32xf32>
    %c0_81 = arith.constant 0 : index
    %c0_82 = arith.constant 0 : index
    %244 = vector.load %arg14[%c0_81, %c0_82] : memref<1x32xf32, #tpu.memory_space<vmem>>, vector<1x32xf32>
    %245 = vector.broadcast %244 : vector<1x32xf32> to vector<8x32xf32>
    %246 = arith.addf %243, %245 : vector<8x32xf32>
    %247 = arith.addf %131, %246 : vector<8x32xf32>
    %c0_83 = arith.constant 0 : index
    %c0_84 = arith.constant 0 : index
    %248 = vector.load %arg21[%c0_83, %c0_84] : memref<1x32xf32, #tpu.memory_space<vmem>>, vector<1x32xf32>
    %c0_85 = arith.constant 0 : index
    %c0_86 = arith.constant 0 : index
    %249 = vector.load %arg22[%c0_85, %c0_86] : memref<1x32xf32, #tpu.memory_space<vmem>>, vector<1x32xf32>
    %cst_87 = arith.constant dense<0.000000e+00> : vector<8xf32>
    %250 = vector.multi_reduction <add>, %247, %cst_87 [1] : vector<8x32xf32> to vector<8xf32>
    %251 = vector.shape_cast %250 : vector<8xf32> to vector<8x1xf32>
    %cst_88 = arith.constant 3.200000e+01 : f32
    %252 = vector.broadcast %cst_88 : f32 to vector<8x1xf32>
    %253 = arith.divf %251, %252 : vector<8x1xf32>
    %254 = vector.broadcast %253 : vector<8x1xf32> to vector<8x32xf32>
    %255 = arith.subf %247, %254 : vector<8x32xf32>
    %256 = arith.mulf %255, %255 : vector<8x32xf32>
    %cst_89 = arith.constant dense<0.000000e+00> : vector<8xf32>
    %257 = vector.multi_reduction <add>, %256, %cst_89 [1] : vector<8x32xf32> to vector<8xf32>
    %258 = vector.shape_cast %257 : vector<8xf32> to vector<8x1xf32>
    %cst_90 = arith.constant 3.200000e+01 : f32
    %259 = vector.broadcast %cst_90 : f32 to vector<8x1xf32>
    %260 = arith.divf %258, %259 : vector<8x1xf32>
    %cst_91 = arith.constant 9.99999997E-7 : f32
    %261 = vector.broadcast %cst_91 : f32 to vector<8x1xf32>
    %262 = arith.addf %260, %261 : vector<8x1xf32>
    %263 = math.rsqrt %262 : vector<8x1xf32>
    %264 = vector.broadcast %263 : vector<8x1xf32> to vector<8x32xf32>
    %265 = arith.mulf %255, %264 : vector<8x32xf32>
    %266 = vector.broadcast %248 : vector<1x32xf32> to vector<8x32xf32>
    %267 = arith.mulf %265, %266 : vector<8x32xf32>
    %268 = vector.broadcast %249 : vector<1x32xf32> to vector<8x32xf32>
    %269 = arith.addf %267, %268 : vector<8x32xf32>
    %270 = arith.truncf %269 : vector<8x32xf32> to vector<8x32xbf16>
    %c0_92 = arith.constant 0 : index
    %c0_93 = arith.constant 0 : index
    %271 = vector.load %arg15[%c0_92, %c0_93] : memref<32x64xbf16, #tpu.memory_space<vmem>>, vector<32x64xbf16>
    %cst_94 = arith.constant dense<0.000000e+00> : vector<8x64xf32>
    %272 = tpu.matmul %270, %271, %cst_94 {dimension_numbers = #tpu.dot_dimension_numbers<[1], [0], [0], [1], [0, 0, 1, 1], [], []>} : vector<8x32xbf16>, vector<32x64xbf16>, vector<8x64xf32> -> vector<8x64xf32>
    %c0_95 = arith.constant 0 : index
    %c0_96 = arith.constant 0 : index
    %273 = vector.load %arg16[%c0_95, %c0_96] : memref<1x64xf32, #tpu.memory_space<vmem>>, vector<1x64xf32>
    %274 = vector.broadcast %273 : vector<1x64xf32> to vector<8x64xf32>
    %275 = arith.addf %272, %274 : vector<8x64xf32>
    %cst_97 = arith.constant 0.000000e+00 : f32
    %276 = vector.broadcast %cst_97 : f32 to vector<8x64xf32>
    %277 = arith.maximumf %275, %276 : vector<8x64xf32>
    %278 = arith.truncf %277 : vector<8x64xf32> to vector<8x64xbf16>
    %c0_98 = arith.constant 0 : index
    %c0_99 = arith.constant 0 : index
    %279 = vector.load %arg17[%c0_98, %c0_99] : memref<64x32xbf16, #tpu.memory_space<vmem>>, vector<64x32xbf16>
    %cst_100 = arith.constant dense<0.000000e+00> : vector<8x32xf32>
    %280 = tpu.matmul %278, %279, %cst_100 {dimension_numbers = #tpu.dot_dimension_numbers<[1], [0], [0], [1], [0, 0, 1, 1], [], []>} : vector<8x64xbf16>, vector<64x32xbf16>, vector<8x32xf32> -> vector<8x32xf32>
    %c0_101 = arith.constant 0 : index
    %c0_102 = arith.constant 0 : index
    %281 = vector.load %arg18[%c0_101, %c0_102] : memref<1x32xf32, #tpu.memory_space<vmem>>, vector<1x32xf32>
    %282 = vector.broadcast %281 : vector<1x32xf32> to vector<8x32xf32>
    %283 = arith.addf %280, %282 : vector<8x32xf32>
    %284 = arith.addf %269, %283 : vector<8x32xf32>
    %c0_103 = arith.constant 0 : index
    %c0_104 = arith.constant 0 : index
    %285 = vector.load %arg23[%c0_103, %c0_104] : memref<1x32xf32, #tpu.memory_space<vmem>>, vector<1x32xf32>
    %c0_105 = arith.constant 0 : index
    %c0_106 = arith.constant 0 : index
    %286 = vector.load %arg24[%c0_105, %c0_106] : memref<1x32xf32, #tpu.memory_space<vmem>>, vector<1x32xf32>
    %cst_107 = arith.constant dense<0.000000e+00> : vector<8xf32>
    %287 = vector.multi_reduction <add>, %284, %cst_107 [1] : vector<8x32xf32> to vector<8xf32>
    %288 = vector.shape_cast %287 : vector<8xf32> to vector<8x1xf32>
    %cst_108 = arith.constant 3.200000e+01 : f32
    %289 = vector.broadcast %cst_108 : f32 to vector<8x1xf32>
    %290 = arith.divf %288, %289 : vector<8x1xf32>
    %291 = vector.broadcast %290 : vector<8x1xf32> to vector<8x32xf32>
    %292 = arith.subf %284, %291 : vector<8x32xf32>
    %293 = arith.mulf %292, %292 : vector<8x32xf32>
    %cst_109 = arith.constant dense<0.000000e+00> : vector<8xf32>
    %294 = vector.multi_reduction <add>, %293, %cst_109 [1] : vector<8x32xf32> to vector<8xf32>
    %295 = vector.shape_cast %294 : vector<8xf32> to vector<8x1xf32>
    %cst_110 = arith.constant 3.200000e+01 : f32
    %296 = vector.broadcast %cst_110 : f32 to vector<8x1xf32>
    %297 = arith.divf %295, %296 : vector<8x1xf32>
    %cst_111 = arith.constant 9.99999997E-7 : f32
    %298 = vector.broadcast %cst_111 : f32 to vector<8x1xf32>
    %299 = arith.addf %297, %298 : vector<8x1xf32>
    %300 = math.rsqrt %299 : vector<8x1xf32>
    %301 = vector.broadcast %300 : vector<8x1xf32> to vector<8x32xf32>
    %302 = arith.mulf %292, %301 : vector<8x32xf32>
    %303 = vector.broadcast %285 : vector<1x32xf32> to vector<8x32xf32>
    %304 = arith.mulf %302, %303 : vector<8x32xf32>
    %305 = vector.broadcast %286 : vector<1x32xf32> to vector<8x32xf32>
    %306 = arith.addf %304, %305 : vector<8x32xf32>
    %c0_112 = arith.constant 0 : index
    %c0_113 = arith.constant 0 : index
    %c0_114 = arith.constant 0 : index
    %307 = vector.load %arg25[%c0_112, %c0_113, %c0_114] : memref<1x8x32xf32, #tpu.memory_space<vmem>>, vector<1x8x32xf32>
    %308 = vector.shape_cast %307 : vector<1x8x32xf32> to vector<8x32xf32>
    %309 = vector.shape_cast %306 : vector<8x32xf32> to vector<1x8x32xf32>
    tpu.vector_store %arg25[%c0_112, %c0_113, %c0_114], %309 {strides = array<i32>} : memref<1x8x32xf32, #tpu.memory_space<vmem>>, vector<1x8x32xf32>,
    return
  }
  func.func @transform_0(%arg0: i32) -> (i32, i32, i32) {
    %c0_i32 = arith.constant 0 : i32
    %c0_i32_0 = arith.constant 0 : i32
    %c0_i32_1 = arith.constant 0 : i32
    return %arg0, %c0_i32, %c0_i32_0 : i32, i32, i32
  }
  func.func @transform_1(%arg0: i32) -> (i32, i32, i32) {
    %c0_i32 = arith.constant 0 : i32
    %c0_i32_0 = arith.constant 0 : i32
    %c0_i32_1 = arith.constant 0 : i32
    return %arg0, %c0_i32, %c0_i32_0 : i32, i32, i32
  }
  func.func @transform_2(%arg0: i32) -> (i32, i32) {
    %c0_i32 = arith.constant 0 : i32
    %c0_i32_0 = arith.constant 0 : i32
    %c0_i32_1 = arith.constant 0 : i32
    return %c0_i32, %c0_i32_0 : i32, i32
  }
  func.func @transform_3(%arg0: i32) -> (i32, i32, i32) {
    %c0_i32 = arith.constant 0 : i32
    %c0_i32_0 = arith.constant 0 : i32
    %c0_i32_1 = arith.constant 0 : i32
    return %arg0, %c0_i32, %c0_i32_0 : i32, i32, i32
  }
  func.func @transform_4(%arg0: i32) -> (i32, i32) {
    %c0_i32 = arith.constant 0 : i32
    %c0_i32_0 = arith.constant 0 : i32
    %c0_i32_1 = arith.constant 0 : i32
    return %c0_i32, %c0_i32_0 : i32, i32
  }
  func.func @transform_5(%arg0: i32) -> (i32, i32) {
    %c0_i32 = arith.constant 0 : i32
    %c0_i32_0 = arith.constant 0 : i32
    %c0_i32_1 = arith.constant 0 : i32
    return %c0_i32, %c0_i32_0 : i32, i32
  }
  func.func @transform_6(%arg0: i32) -> (i32, i32) {
    %c0_i32 = arith.constant 0 : i32
    %c0_i32_0 = arith.constant 0 : i32
    %c0_i32_1 = arith.constant 0 : i32
    return %c0_i32, %c0_i32_0 : i32, i32
  }
  func.func @transform_7(%arg0: i32) -> (i32, i32) {
    %c0_i32 = arith.constant 0 : i32
    %c0_i32_0 = arith.constant 0 : i32
    %c0_i32_1 = arith.constant 0 : i32
    return %c0_i32, %c0_i32_0 : i32, i32
  }
  func.func @transform_8(%arg0: i32) -> (i32, i32) {
    %c0_i32 = arith.constant 0 : i32
    %c0_i32_0 = arith.constant 0 : i32
    %c0_i32_1 = arith.constant 0 : i32
    return %c0_i32, %c0_i32_0 : i32, i32
  }
  func.func @transform_9(%arg0: i32) -> (i32, i32) {
    %c0_i32 = arith.constant 0 : i32
    %c0_i32_0 = arith.constant 0 : i32
    %c0_i32_1 = arith.constant 0 : i32
    return %c0_i32, %c0_i32_0 : i32, i32
  }
  func.func @transform_10(%arg0: i32) -> (i32, i32) {
    %c0_i32 = arith.constant 0 : i32
    %c0_i32_0 = arith.constant 0 : i32
    %c0_i32_1 = arith.constant 0 : i32
    return %c0_i32, %c0_i32_0 : i32, i32
  }
  func.func @transform_11(%arg0: i32) -> (i32, i32) {
    %c0_i32 = arith.constant 0 : i32
    %c0_i32_0 = arith.constant 0 : i32
    %c0_i32_1 = arith.constant 0 : i32
    return %c0_i32, %c0_i32_0 : i32, i32
  }
  func.func @transform_12(%arg0: i32) -> (i32, i32) {
    %c0_i32 = arith.constant 0 : i32
    %c0_i32_0 = arith.constant 0 : i32
    %c0_i32_1 = arith.constant 0 : i32
    return %c0_i32, %c0_i32_0 : i32, i32
  }
  func.func @transform_13(%arg0: i32) -> (i32, i32) {
    %c0_i32 = arith.constant 0 : i32
    %c0_i32_0 = arith.constant 0 : i32
    %c0_i32_1 = arith.constant 0 : i32
    return %c0_i32, %c0_i32_0 : i32, i32
  }
  func.func @transform_14(%arg0: i32) -> (i32, i32) {
    %c0_i32 = arith.constant 0 : i32
    %c0_i32_0 = arith.constant 0 : i32
    %c0_i32_1 = arith.constant 0 : i32
    return %c0_i32, %c0_i32_0 : i32, i32
  }
  func.func @transform_15(%arg0: i32) -> (i32, i32) {
    %c0_i32 = arith.constant 0 : i32
    %c0_i32_0 = arith.constant 0 : i32
    %c0_i32_1 = arith.constant 0 : i32
    return %c0_i32, %c0_i32_0 : i32, i32
  }
  func.func @transform_16(%arg0: i32) -> (i32, i32) {
    %c0_i32 = arith.constant 0 : i32
    %c0_i32_0 = arith.constant 0 : i32
    %c0_i32_1 = arith.constant 0 : i32
    return %c0_i32, %c0_i32_0 : i32, i32
  }
  func.func @transform_17(%arg0: i32) -> (i32, i32) {
    %c0_i32 = arith.constant 0 : i32
    %c0_i32_0 = arith.constant 0 : i32
    %c0_i32_1 = arith.constant 0 : i32
    return %c0_i32, %c0_i32_0 : i32, i32
  }
  func.func @transform_18(%arg0: i32) -> (i32, i32) {
    %c0_i32 = arith.constant 0 : i32
    %c0_i32_0 = arith.constant 0 : i32
    %c0_i32_1 = arith.constant 0 : i32
    return %c0_i32, %c0_i32_0 : i32, i32
  }
  func.func @transform_19(%arg0: i32) -> (i32, i32) {
    %c0_i32 = arith.constant 0 : i32
    %c0_i32_0 = arith.constant 0 : i32
    %c0_i32_1 = arith.constant 0 : i32
    return %c0_i32, %c0_i32_0 : i32, i32
  }
  func.func @transform_20(%arg0: i32) -> (i32, i32) {
    %c0_i32 = arith.constant 0 : i32
    %c0_i32_0 = arith.constant 0 : i32
    %c0_i32_1 = arith.constant 0 : i32
    return %c0_i32, %c0_i32_0 : i32, i32
  }
  func.func @transform_21(%arg0: i32) -> (i32, i32) {
    %c0_i32 = arith.constant 0 : i32
    %c0_i32_0 = arith.constant 0 : i32
    %c0_i32_1 = arith.constant 0 : i32
    return %c0_i32, %c0_i32_0 : i32, i32
  }
  func.func @transform_22(%arg0: i32) -> (i32, i32) {
    %c0_i32 = arith.constant 0 : i32
    %c0_i32_0 = arith.constant 0 : i32
    %c0_i32_1 = arith.constant 0 : i32
    return %c0_i32, %c0_i32_0 : i32, i32
  }
  func.func @transform_23(%arg0: i32) -> (i32, i32) {
    %c0_i32 = arith.constant 0 : i32
    %c0_i32_0 = arith.constant 0 : i32
    %c0_i32_1 = arith.constant 0 : i32
    return %c0_i32, %c0_i32_0 : i32, i32
  }
  func.func @transform_24(%arg0: i32) -> (i32, i32, i32) {
    %c0_i32 = arith.constant 0 : i32
    %c0_i32_0 = arith.constant 0 : i32
    %c0_i32_1 = arith.constant 0 : i32
    return %arg0, %c0_i32, %c0_i32_0 : i32, i32, i32
  }
}

</mosaic_0001>

<llo_original>
// kernel: tpu_custom_call.1
$region0: #{tpu_custom_call.1}
  #allocation0 [shape = 'u32[]', space=smem, size = 0x4, offset = 0x4, fixed_abs, tag = 'smem constant byte address 0x4 - core index']
  #allocation1 [shape = 'u32[144,128]{1,0:T(1,128)}', space=vmem, size = 0x12000, scoped, tag = 'internal scratch']
  %s0 = inlined_call_operand.vmem [shape: f32[2,8,32], index: 0, kind: input, shape index: {}]
  %s1 = inlined_call_operand.vmem [shape: f32[2,8,32], index: 1, kind: input, shape index: {}]
  %s2 = inlined_call_operand.hbm [shape: f32[8,8], index: 2, kind: input, shape index: {}]
  %s3 = inlined_call_operand.hbm [shape: f32[2,1,8], index: 3, kind: input, shape index: {}]
  %s4 = inlined_call_operand.vmem [shape: bf16[32,96], index: 4, kind: input, shape index: {}]
  %s5 = inlined_call_operand.vmem [shape: f32[1,96], index: 5, kind: input, shape index: {}]
  %s6 = inlined_call_operand.hbm [shape: bf16[32,32], index: 6, kind: input, shape index: {}]
  %s7 = inlined_call_operand.hbm [shape: f32[1,32], index: 7, kind: input, shape index: {}]
  %s8 = inlined_call_operand.hbm [shape: bf16[32,32], index: 8, kind: input, shape index: {}]
  %s9 = inlined_call_operand.hbm [shape: f32[1,32], index: 9, kind: input, shape index: {}]
  %s10 = inlined_call_operand.vmem [shape: bf16[32,64], index: 10, kind: input, shape index: {}]
  %s11 = inlined_call_operand.hbm [shape: f32[1,64], index: 11, kind: input, shape index: {}]
  %s12 = inlined_call_operand.hbm [shape: bf16[32,32], index: 12, kind: input, shape index: {}]
  %s13 = inlined_call_operand.hbm [shape: f32[1,32], index: 13, kind: input, shape index: {}]
  %s14 = inlined_call_operand.vmem [shape: bf16[32,64], index: 14, kind: input, shape index: {}]
  %s15 = inlined_call_operand.vmem [shape: f32[1,64], index: 15, kind: input, shape index: {}]
  %s16 = inlined_call_operand.vmem [shape: bf16[64,32], index: 16, kind: input, shape index: {}]
  %s17 = inlined_call_operand.vmem [shape: f32[1,32], index: 17, kind: input, shape index: {}]
  %s18 = inlined_call_operand.vmem [shape: f32[1,32], index: 18, kind: input, shape index: {}]
  %s19 = inlined_call_operand.vmem [shape: f32[1,32], index: 19, kind: input, shape index: {}]
  %s20 = inlined_call_operand.vmem [shape: f32[1,32], index: 20, kind: input, shape index: {}]
  %s21 = inlined_call_operand.vmem [shape: f32[1,32], index: 21, kind: input, shape index: {}]
  %s22 = inlined_call_operand.vmem [shape: f32[1,32], index: 22, kind: input, shape index: {}]
  %s23 = inlined_call_operand.vmem [shape: f32[1,32], index: 23, kind: input, shape index: {}]
  %s24 = inlined_call_operand.hbm [shape: f32[2,8,32], index: 24, kind: output, shape index: {}]
  %s25 = sld [smem:[#allocation0]]
  $region165: #{tpu_custom_call.1} parent=0
    _
  %s27 = ssub.s32 1, %s25
  %s28 = scalar_select 0, %s27, %s25
  $region1: #{tpu_custom_call.1} parent=0
    #allocation2 [shape = 'u8[4096]{0}', space=vmem, size = 0x1000, scoped, tag = 'input window, operand 2, single buffered']
    #allocation3 [shape = 's32[2]{0}', space=sflag, size = 0x8, scoped, tag = 'scoped memory for tpu_custom_call.1']
    #allocation4 [shape = 's32[2]{0}', space=sflag, size = 0x8, scoped, tag = 'scoped memory for tpu_custom_call.1']
    #allocation5 [shape = 'u8[1024]{0}', space=vmem, size = 0x400, scoped, tag = 'input window, operand 3']
    #allocation6 [shape = 's32[2]{0}', space=sflag, size = 0x8, scoped, tag = 'scoped memory for tpu_custom_call.1']
    #allocation7 [shape = 'u8[8192]{0}', space=vmem, size = 0x2000, scoped, tag = 'input window, operand 6, single buffered']
    #allocation8 [shape = 'u8[512]{0}', space=vmem, size = 0x400, scoped, tag = 'input window, operand 7, single buffered']
    #allocation9 [shape = 's32[1]{0}', space=sflag, size = 0x4, scoped, tag = 'scoped memory for tpu_custom_call.1']
    #allocation10 [shape = 'u8[8192]{0}', space=vmem, size = 0x2000, scoped, tag = 'input window, operand 8, single buffered']
    #allocation11 [shape = 'u8[512]{0}', space=vmem, size = 0x400, scoped, tag = 'input window, operand 9, single buffered']
    #allocation12 [shape = 's32[1]{0}', space=sflag, size = 0x4, scoped, tag = 'scoped memory for tpu_custom_call.1']
    #allocation13 [shape = 'u8[512]{0}', space=vmem, size = 0x400, scoped, tag = 'input window, operand 11, single buffered']
    #allocation14 [shape = 'u8[8192]{0}', space=vmem, size = 0x2000, scoped, tag = 'input window, operand 12, single buffered']
    #allocation15 [shape = 's32[1]{0}', space=sflag, size = 0x4, scoped, tag = 'scoped memory for tpu_custom_call.1']
    #allocation16 [shape = 'u8[512]{0}', space=vmem, size = 0x400, scoped, tag = 'input window, operand 13, single buffered']
    #allocation17 [shape = 'u8[8192]{0}', space=vmem, size = 0x2000, scoped, tag = 'output window, operand 0']
    %29 = vsyncpa [#allocation3], 0
    %30 = vsyncpa [#allocation6], 0
    %s31 = scalar_lea.sflag [#allocation6], 1
    %32 = vsyncpa %s31, 0
    %33 = vsyncpa [#allocation9], 0
    %34 = vsyncpa [#allocation12], 0
    %35 = vsyncpa [#allocation15], 0
    %36 = vsyncpa [#allocation4], 0
    %s37 = scalar_lea.sflag [#allocation4], 1
    %38 = vsyncpa %s37, 0
    loop: start=0, step=1, limit=4
    $region2: #{tpu_custom_call.1} parent=1 // loop_pre_header
      _
    $region3: #{tpu_custom_call.1} parent=1 // loop_header
      %s40 = sphi 0, %s44
      %p41 = scmp.ge.s32.totalorder %s40, 4
      %s50 = sphi 0, %s52
      %s53 = sphi 0, %s50
      %s54 = sphi 0, %s53
      %s70 = sphi 0, %s54
      %s76 = sphi 0, %s78
      %s79 = sphi 0, %s76
      %s80 = sphi 0, %s79
      %s96 = sphi 0, %s80
      %s100 = sphi 0, %s100
      %s102 = sphi 0, %s100
      %s103 = sphi 0, %s102
      %s117 = sphi 0, %s103
      %s123 = sphi 0, %s125
      %s126 = sphi 0, %s123
      %s127 = sphi 0, %s126
      %s143 = sphi 0, %s127
      %s147 = sphi 0, %s147
      %s149 = sphi 0, %s147
      %s150 = sphi 0, %s149
      %s164 = sphi 0, %s150
      %s168 = sphi 0, %s168
      %s170 = sphi 0, %s168
      %s171 = sphi 0, %s170
      %s185 = sphi 0, %s171
      %s189 = sphi 0, %s189
      %s191 = sphi 0, %s189
      %s192 = sphi 0, %s191
      %s206 = sphi 0, %s192
      %s210 = sphi 0, %s210
      %s212 = sphi 0, %s210
      %s213 = sphi 0, %s212
      %s227 = sphi 0, %s213
      %s231 = sphi 0, %s231
      %s233 = sphi 0, %s231
      %s234 = sphi 0, %s233
      %s248 = sphi 0, %s234
      %s252 = sphi 0, %s252
      %s254 = sphi 0, %s252
      %s255 = sphi 0, %s254
      %s269 = sphi 0, %s255
      %s273 = sphi 0, %s273
      %s275 = sphi 0, %s273
      %s276 = sphi 0, %s275
      %s290 = sphi 0, %s276
      %s294 = sphi 0, %s294
      %s296 = sphi 0, %s294
      %s297 = sphi 0, %s296
      %s311 = sphi 0, %s297
      %s315 = sphi 0, %s315
      %s317 = sphi 0, %s315
      %s318 = sphi 0, %s317
      %s332 = sphi 0, %s318
      %s336 = sphi 0, %s336
      %s338 = sphi 0, %s336
      %s339 = sphi 0, %s338
      %s353 = sphi 0, %s339
      %s357 = sphi 0, %s357
      %s359 = sphi 0, %s357
      %s360 = sphi 0, %s359
      %s374 = sphi 0, %s360
      %s378 = sphi 0, %s378
      %s380 = sphi 0, %s378
      %s381 = sphi 0, %s380
      %s395 = sphi 0, %s381
      %s399 = sphi 0, %s399
      %s401 = sphi 0, %s399
      %s402 = sphi 0, %s401
      %s416 = sphi 0, %s402
      %s420 = sphi 0, %s420
      %s422 = sphi 0, %s420
      %s423 = sphi 0, %s422
      %s437 = sphi 0, %s423
      %s441 = sphi 0, %s441
      %s443 = sphi 0, %s441
      %s444 = sphi 0, %s443
      %s458 = sphi 0, %s444
      %s462 = sphi 0, %s462
      %s464 = sphi 0, %s462
      %s465 = sphi 0, %s464
      %s479 = sphi 0, %s465
      %s483 = sphi 0, %s483
      %s485 = sphi 0, %s483
      %s486 = sphi 0, %s485
      %s500 = sphi 0, %s486
      %s504 = sphi 0, %s504
      %s506 = sphi 0, %s504
      %s507 = sphi 0, %s506
      %s521 = sphi 0, %s507
      %s525 = sphi 0, %s525
      %s527 = sphi 0, %s525
      %s528 = sphi 0, %s527
      %s542 = sphi 0, %s528
      %s546 = sphi 0, %s546
      %s548 = sphi 0, %s546
      %s549 = sphi 0, %s548
      %s563 = sphi 0, %s549
      %s569 = sphi 0, %s571
      %s572 = sphi 0, %s569
      %s573 = sphi 0, %s572
      %s589 = sphi 0, %s573
    $region4: #{tpu_custom_call.1} parent=1 // loop_header_branch
      %43 = sbr.rel (%p41) target = $region8
    $region5: #{tpu_custom_call.1} parent=1 // loop_body
      %s45 = ssub.s32 %s40, 1
      %s46 = ssub.s32 %s40, 2
      %s47 = sadd.s32 %s40, 1
      %s48 = ssub.s32 %s40, %s47
      %p49 = scmp.eq.s32.totalorder %s48, 0
      %s51 = sadd.s32 %s50, 1
      %s52 = scalar_select %p49, %s50, %s51
      %p55 = pneg %p49
      %p56 = scmp.eq.s32.totalorder %s40, 1
      %p57 = por %p55, %p56
      %p58 = scmp.ne.s32.totalorder %s50, %s53
      %p59 = scmp.eq.s32.totalorder %s40, 0
      %p60 = por %p58, %p59
      %p61 = scmp.ne.s32.totalorder %s50, %s53
      %p62 = scmp.eq.s32.totalorder %s45, 1
      %p63 = por %p61, %p62
      %p64 = scmp.ne.s32.totalorder %s53, %s54
      %p65 = scmp.eq.s32.totalorder %s45, 0
      %p66 = por %p64, %p65
      %p67 = scmp.ne.s32.totalorder %s53, %s54
      %p68 = scmp.eq.s32.totalorder %s46, 1
      %p69 = por %p67, %p68
      %p71 = scmp.ne.s32.totalorder %s54, %s70
      %p72 = scmp.eq.s32.totalorder %s46, 0
      %p73 = por %p71, %p72
      %s74 = ssub.s32 %s40, %s47
      %p75 = scmp.eq.s32.totalorder %s74, 0
      %s77 = sadd.s32 %s76, 1
      %s78 = scalar_select %p75, %s76, %s77
      %p81 = pneg %p75
      %p82 = scmp.eq.s32.totalorder %s40, 1
      %p83 = por %p81, %p82
      %p84 = scmp.ne.s32.totalorder %s76, %s79
      %p85 = scmp.eq.s32.totalorder %s40, 0
      %p86 = por %p84, %p85
      %p87 = scmp.ne.s32.totalorder %s76, %s79
      %p88 = scmp.eq.s32.totalorder %s45, 1
      %p89 = por %p87, %p88
      %p90 = scmp.ne.s32.totalorder %s79, %s80
      %p91 = scmp.eq.s32.totalorder %s45, 0
      %p92 = por %p90, %p91
      %p93 = scmp.ne.s32.totalorder %s79, %s80
      %p94 = scmp.eq.s32.totalorder %s46, 1
      %p95 = por %p93, %p94
      %p97 = scmp.ne.s32.totalorder %s80, %s96
      %p98 = scmp.eq.s32.totalorder %s46, 0
      %p99 = por %p97, %p98
      %s101 = sadd.s32 %s100, 1
      %p104 = scmp.eq.s32.totalorder %s40, 1
      %p105 = scmp.ne.s32.totalorder %s100, %s102
      %p106 = scmp.eq.s32.totalorder %s40, 0
      %p107 = por %p105, %p106
      %p108 = scmp.ne.s32.totalorder %s100, %s102
      %p109 = scmp.eq.s32.totalorder %s45, 1
      %p110 = por %p108, %p109
      %p111 = scmp.ne.s32.totalorder %s102, %s103
      %p112 = scmp.eq.s32.totalorder %s45, 0
      %p113 = por %p111, %p112
      %p114 = scmp.ne.s32.totalorder %s102, %s103
      %p115 = scmp.eq.s32.totalorder %s46, 1
      %p116 = por %p114, %p115
      %p118 = scmp.ne.s32.totalorder %s103, %s117
      %p119 = scmp.eq.s32.totalorder %s46, 0
      %p120 = por %p118, %p119
      %s121 = ssub.s32 %s40, %s47
      %p122 = scmp.eq.s32.totalorder %s121, 0
      %s124 = sadd.s32 %s123, 1
      %s125 = scalar_select %p122, %s123, %s124
      %p128 = pneg %p122
      %p129 = scmp.eq.s32.totalorder %s40, 1
      %p130 = por %p128, %p129
      %p131 = scmp.ne.s32.totalorder %s123, %s126
      %p132 = scmp.eq.s32.totalorder %s40, 0
      %p133 = por %p131, %p132
      %p134 = scmp.ne.s32.totalorder %s123, %s126
      %p135 = scmp.eq.s32.totalorder %s45, 1
      %p136 = por %p134, %p135
      %p137 = scmp.ne.s32.totalorder %s126, %s127
      %p138 = scmp.eq.s32.totalorder %s45, 0
      %p139 = por %p137, %p138
      %p140 = scmp.ne.s32.totalorder %s126, %s127
      %p141 = scmp.eq.s32.totalorder %s46, 1
      %p142 = por %p140, %p141
      %p144 = scmp.ne.s32.totalorder %s127, %s143
      %p145 = scmp.eq.s32.totalorder %s46, 0
      %p146 = por %p144, %p145
      %s148 = sadd.s32 %s147, 1
      %p151 = scmp.eq.s32.totalorder %s40, 1
      %p152 = scmp.ne.s32.totalorder %s147, %s149
      %p153 = scmp.eq.s32.totalorder %s40, 0
      %p154 = por %p152, %p153
      %p155 = scmp.ne.s32.totalorder %s147, %s149
      %p156 = scmp.eq.s32.totalorder %s45, 1
      %p157 = por %p155, %p156
      %p158 = scmp.ne.s32.totalorder %s149, %s150
      %p159 = scmp.eq.s32.totalorder %s45, 0
      %p160 = por %p158, %p159
      %p161 = scmp.ne.s32.totalorder %s149, %s150
      %p162 = scmp.eq.s32.totalorder %s46, 1
      %p163 = por %p161, %p162
      %p165 = scmp.ne.s32.totalorder %s150, %s164
      %p166 = scmp.eq.s32.totalorder %s46, 0
      %p167 = por %p165, %p166
      %s169 = sadd.s32 %s168, 1
      %p172 = scmp.eq.s32.totalorder %s40, 1
      %p173 = scmp.ne.s32.totalorder %s168, %s170
      %p174 = scmp.eq.s32.totalorder %s40, 0
      %p175 = por %p173, %p174
      %p176 = scmp.ne.s32.totalorder %s168, %s170
      %p177 = scmp.eq.s32.totalorder %s45, 1
      %p178 = por %p176, %p177
      %p179 = scmp.ne.s32.totalorder %s170, %s171
      %p180 = scmp.eq.s32.totalorder %s45, 0
      %p181 = por %p179, %p180
      %p182 = scmp.ne.s32.totalorder %s170, %s171
      %p183 = scmp.eq.s32.totalorder %s46, 1
      %p184 = por %p182, %p183
      %p186 = scmp.ne.s32.totalorder %s171, %s185
      %p187 = scmp.eq.s32.totalorder %s46, 0
      %p188 = por %p186, %p187
      %s190 = sadd.s32 %s189, 1
      %p193 = scmp.eq.s32.totalorder %s40, 1
      %p194 = scmp.ne.s32.totalorder %s189, %s191
      %p195 = scmp.eq.s32.totalorder %s40, 0
      %p196 = por %p194, %p195
      %p197 = scmp.ne.s32.totalorder %s189, %s191
      %p198 = scmp.eq.s32.totalorder %s45, 1
      %p199 = por %p197, %p198
      %p200 = scmp.ne.s32.totalorder %s191, %s192
      %p201 = scmp.eq.s32.totalorder %s45, 0
      %p202 = por %p200, %p201
      %p203 = scmp.ne.s32.totalorder %s191, %s192
      %p204 = scmp.eq.s32.totalorder %s46, 1
      %p205 = por %p203, %p204
      %p207 = scmp.ne.s32.totalorder %s192, %s206
      %p208 = scmp.eq.s32.totalorder %s46, 0
      %p209 = por %p207, %p208
      %s211 = sadd.s32 %s210, 1
      %p214 = scmp.eq.s32.totalorder %s40, 1
      %p215 = scmp.ne.s32.totalorder %s210, %s212
      %p216 = scmp.eq.s32.totalorder %s40, 0
      %p217 = por %p215, %p216
      %p218 = scmp.ne.s32.totalorder %s210, %s212
      %p219 = scmp.eq.s32.totalorder %s45, 1
      %p220 = por %p218, %p219
      %p221 = scmp.ne.s32.totalorder %s212, %s213
      %p222 = scmp.eq.s32.totalorder %s45, 0
      %p223 = por %p221, %p222
      %p224 = scmp.ne.s32.totalorder %s212, %s213
      %p225 = scmp.eq.s32.totalorder %s46, 1
      %p226 = por %p224, %p225
      %p228 = scmp.ne.s32.totalorder %s213, %s227
      %p229 = scmp.eq.s32.totalorder %s46, 0
      %p230 = por %p228, %p229
      %s232 = sadd.s32 %s231, 1
      %p235 = scmp.eq.s32.totalorder %s40, 1
      %p236 = scmp.ne.s32.totalorder %s231, %s233
      %p237 = scmp.eq.s32.totalorder %s40, 0
      %p238 = por %p236, %p237
      %p239 = scmp.ne.s32.totalorder %s231, %s233
      %p240 = scmp.eq.s32.totalorder %s45, 1
      %p241 = por %p239, %p240
      %p242 = scmp.ne.s32.totalorder %s233, %s234
      %p243 = scmp.eq.s32.totalorder %s45, 0
      %p244 = por %p242, %p243
      %p245 = scmp.ne.s32.totalorder %s233, %s234
      %p246 = scmp.eq.s32.totalorder %s46, 1
      %p247 = por %p245, %p246
      %p249 = scmp.ne.s32.totalorder %s234, %s248
      %p250 = scmp.eq.s32.totalorder %s46, 0
      %p251 = por %p249, %p250
      %s253 = sadd.s32 %s252, 1
      %p256 = scmp.eq.s32.totalorder %s40, 1
      %p257 = scmp.ne.s32.totalorder %s252, %s254
      %p258 = scmp.eq.s32.totalorder %s40, 0
      %p259 = por %p257, %p258
      %p260 = scmp.ne.s32.totalorder %s252, %s254
      %p261 = scmp.eq.s32.totalorder %s45, 1
      %p262 = por %p260, %p261
      %p263 = scmp.ne.s32.totalorder %s254, %s255
      %p264 = scmp.eq.s32.totalorder %s45, 0
      %p265 = por %p263, %p264
      %p266 = scmp.ne.s32.totalorder %s254, %s255
      %p267 = scmp.eq.s32.totalorder %s46, 1
      %p268 = por %p266, %p267
      %p270 = scmp.ne.s32.totalorder %s255, %s269
      %p271 = scmp.eq.s32.totalorder %s46, 0
      %p272 = por %p270, %p271
      %s274 = sadd.s32 %s273, 1
      %p277 = scmp.eq.s32.totalorder %s40, 1
      %p278 = scmp.ne.s32.totalorder %s273, %s275
      %p279 = scmp.eq.s32.totalorder %s40, 0
      %p280 = por %p278, %p279
      %p281 = scmp.ne.s32.totalorder %s273, %s275
      %p282 = scmp.eq.s32.totalorder %s45, 1
      %p283 = por %p281, %p282
      %p284 = scmp.ne.s32.totalorder %s275, %s276
      %p285 = scmp.eq.s32.totalorder %s45, 0
      %p286 = por %p284, %p285
      %p287 = scmp.ne.s32.totalorder %s275, %s276
      %p288 = scmp.eq.s32.totalorder %s46, 1
      %p289 = por %p287, %p288
      %p291 = scmp.ne.s32.totalorder %s276, %s290
      %p292 = scmp.eq.s32.totalorder %s46, 0
      %p293 = por %p291, %p292
      %s295 = sadd.s32 %s294, 1
      %p298 = scmp.eq.s32.totalorder %s40, 1
      %p299 = scmp.ne.s32.totalorder %s294, %s296
      %p300 = scmp.eq.s32.totalorder %s40, 0
      %p301 = por %p299, %p300
      %p302 = scmp.ne.s32.totalorder %s294, %s296
      %p303 = scmp.eq.s32.totalorder %s45, 1
      %p304 = por %p302, %p303
      %p305 = scmp.ne.s32.totalorder %s296, %s297
      %p306 = scmp.eq.s32.totalorder %s45, 0
      %p307 = por %p305, %p306
      %p308 = scmp.ne.s32.totalorder %s296, %s297
      %p309 = scmp.eq.s32.totalorder %s46, 1
      %p310 = por %p308, %p309
      %p312 = scmp.ne.s32.totalorder %s297, %s311
      %p313 = scmp.eq.s32.totalorder %s46, 0
      %p314 = por %p312, %p313
      %s316 = sadd.s32 %s315, 1
      %p319 = scmp.eq.s32.totalorder %s40, 1
      %p320 = scmp.ne.s32.totalorder %s315, %s317
      %p321 = scmp.eq.s32.totalorder %s40, 0
      %p322 = por %p320, %p321
      %p323 = scmp.ne.s32.totalorder %s315, %s317
      %p324 = scmp.eq.s32.totalorder %s45, 1
      %p325 = por %p323, %p324
      %p326 = scmp.ne.s32.totalorder %s317, %s318
      %p327 = scmp.eq.s32.totalorder %s45, 0
      %p328 = por %p326, %p327
      %p329 = scmp.ne.s32.totalorder %s317, %s318
      %p330 = scmp.eq.s32.totalorder %s46, 1
      %p331 = por %p329, %p330
      %p333 = scmp.ne.s32.totalorder %s318, %s332
      %p334 = scmp.eq.s32.totalorder %s46, 0
      %p335 = por %p333, %p334
      %s337 = sadd.s32 %s336, 1
      %p340 = scmp.eq.s32.totalorder %s40, 1
      %p341 = scmp.ne.s32.totalorder %s336, %s338
      %p342 = scmp.eq.s32.totalorder %s40, 0
      %p343 = por %p341, %p342
      %p344 = scmp.ne.s32.totalorder %s336, %s338
      %p345 = scmp.eq.s32.totalorder %s45, 1
      %p346 = por %p344, %p345
      %p347 = scmp.ne.s32.totalorder %s338, %s339
      %p348 = scmp.eq.s32.totalorder %s45, 0
      %p349 = por %p347, %p348
      %p350 = scmp.ne.s32.totalorder %s338, %s339
      %p351 = scmp.eq.s32.totalorder %s46, 1
      %p352 = por %p350, %p351
      %p354 = scmp.ne.s32.totalorder %s339, %s353
      %p355 = scmp.eq.s32.totalorder %s46, 0
      %p356 = por %p354, %p355
      %s358 = sadd.s32 %s357, 1
      %p361 = scmp.eq.s32.totalorder %s40, 1
      %p362 = scmp.ne.s32.totalorder %s357, %s359
      %p363 = scmp.eq.s32.totalorder %s40, 0
      %p364 = por %p362, %p363
      %p365 = scmp.ne.s32.totalorder %s357, %s359
      %p366 = scmp.eq.s32.totalorder %s45, 1
      %p367 = por %p365, %p366
      %p368 = scmp.ne.s32.totalorder %s359, %s360
      %p369 = scmp.eq.s32.totalorder %s45, 0
      %p370 = por %p368, %p369
      %p371 = scmp.ne.s32.totalorder %s359, %s360
      %p372 = scmp.eq.s32.totalorder %s46, 1
      %p373 = por %p371, %p372
      %p375 = scmp.ne.s32.totalorder %s360, %s374
      %p376 = scmp.eq.s32.totalorder %s46, 0
      %p377 = por %p375, %p376
      %s379 = sadd.s32 %s378, 1
      %p382 = scmp.eq.s32.totalorder %s40, 1
      %p383 = scmp.ne.s32.totalorder %s378, %s380
      %p384 = scmp.eq.s32.totalorder %s40, 0
      %p385 = por %p383, %p384
      %p386 = scmp.ne.s32.totalorder %s378, %s380
      %p387 = scmp.eq.s32.totalorder %s45, 1
      %p388 = por %p386, %p387
      %p389 = scmp.ne.s32.totalorder %s380, %s381
      %p390 = scmp.eq.s32.totalorder %s45, 0
      %p391 = por %p389, %p390
      %p392 = scmp.ne.s32.totalorder %s380, %s381
      %p393 = scmp.eq.s32.totalorder %s46, 1
      %p394 = por %p392, %p393
      %p396 = scmp.ne.s32.totalorder %s381, %s395
      %p397 = scmp.eq.s32.totalorder %s46, 0
      %p398 = por %p396, %p397
      %s400 = sadd.s32 %s399, 1
      %p403 = scmp.eq.s32.totalorder %s40, 1
      %p404 = scmp.ne.s32.totalorder %s399, %s401
      %p405 = scmp.eq.s32.totalorder %s40, 0
      %p406 = por %p404, %p405
      %p407 = scmp.ne.s32.totalorder %s399, %s401
      %p408 = scmp.eq.s32.totalorder %s45, 1
      %p409 = por %p407, %p408
      %p410 = scmp.ne.s32.totalorder %s401, %s402
      %p411 = scmp.eq.s32.totalorder %s45, 0
      %p412 = por %p410, %p411
      %p413 = scmp.ne.s32.totalorder %s401, %s402
      %p414 = scmp.eq.s32.totalorder %s46, 1
      %p415 = por %p413, %p414
      %p417 = scmp.ne.s32.totalorder %s402, %s416
      %p418 = scmp.eq.s32.totalorder %s46, 0
      %p419 = por %p417, %p418
      %s421 = sadd.s32 %s420, 1
      %p424 = scmp.eq.s32.totalorder %s40, 1
      %p425 = scmp.ne.s32.totalorder %s420, %s422
      %p426 = scmp.eq.s32.totalorder %s40, 0
      %p427 = por %p425, %p426
      %p428 = scmp.ne.s32.totalorder %s420, %s422
      %p429 = scmp.eq.s32.totalorder %s45, 1
      %p430 = por %p428, %p429
      %p431 = scmp.ne.s32.totalorder %s422, %s423
      %p432 = scmp.eq.s32.totalorder %s45, 0
      %p433 = por %p431, %p432
      %p434 = scmp.ne.s32.totalorder %s422, %s423
      %p435 = scmp.eq.s32.totalorder %s46, 1
      %p436 = por %p434, %p435
      %p438 = scmp.ne.s32.totalorder %s423, %s437
      %p439 = scmp.eq.s32.totalorder %s46, 0
      %p440 = por %p438, %p439
      %s442 = sadd.s32 %s441, 1
      %p445 = scmp.eq.s32.totalorder %s40, 1
      %p446 = scmp.ne.s32.totalorder %s441, %s443
      %p447 = scmp.eq.s32.totalorder %s40, 0
      %p448 = por %p446, %p447
      %p449 = scmp.ne.s32.totalorder %s441, %s443
      %p450 = scmp.eq.s32.totalorder %s45, 1
      %p451 = por %p449, %p450
      %p452 = scmp.ne.s32.totalorder %s443, %s444
      %p453 = scmp.eq.s32.totalorder %s45, 0
      %p454 = por %p452, %p453
      %p455 = scmp.ne.s32.totalorder %s443, %s444
      %p456 = scmp.eq.s32.totalorder %s46, 1
      %p457 = por %p455, %p456
      %p459 = scmp.ne.s32.totalorder %s444, %s458
      %p460 = scmp.eq.s32.totalorder %s46, 0
      %p461 = por %p459, %p460
      %s463 = sadd.s32 %s462, 1
      %p466 = scmp.eq.s32.totalorder %s40, 1
      %p467 = scmp.ne.s32.totalorder %s462, %s464
      %p468 = scmp.eq.s32.totalorder %s40, 0
      %p469 = por %p467, %p468
      %p470 = scmp.ne.s32.totalorder %s462, %s464
      %p471 = scmp.eq.s32.totalorder %s45, 1
      %p472 = por %p470, %p471
      %p473 = scmp.ne.s32.totalorder %s464, %s465
      %p474 = scmp.eq.s32.totalorder %s45, 0
      %p475 = por %p473, %p474
      %p476 = scmp.ne.s32.totalorder %s464, %s465
      %p477 = scmp.eq.s32.totalorder %s46, 1
      %p478 = por %p476, %p477
      %p480 = scmp.ne.s32.totalorder %s465, %s479
      %p481 = scmp.eq.s32.totalorder %s46, 0
      %p482 = por %p480, %p481
      %s484 = sadd.s32 %s483, 1
      %p487 = scmp.eq.s32.totalorder %s40, 1
      %p488 = scmp.ne.s32.totalorder %s483, %s485
      %p489 = scmp.eq.s32.totalorder %s40, 0
      %p490 = por %p488, %p489
      %p491 = scmp.ne.s32.totalorder %s483, %s485
      %p492 = scmp.eq.s32.totalorder %s45, 1
      %p493 = por %p491, %p492
      %p494 = scmp.ne.s32.totalorder %s485, %s486
      %p495 = scmp.eq.s32.totalorder %s45, 0
      %p496 = por %p494, %p495
      %p497 = scmp.ne.s32.totalorder %s485, %s486
      %p498 = scmp.eq.s32.totalorder %s46, 1
      %p499 = por %p497, %p498
      %p501 = scmp.ne.s32.totalorder %s486, %s500
      %p502 = scmp.eq.s32.totalorder %s46, 0
      %p503 = por %p501, %p502
      %s505 = sadd.s32 %s504, 1
      %p508 = scmp.eq.s32.totalorder %s40, 1
      %p509 = scmp.ne.s32.totalorder %s504, %s506
      %p510 = scmp.eq.s32.totalorder %s40, 0
      %p511 = por %p509, %p510
      %p512 = scmp.ne.s32.totalorder %s504, %s506
      %p513 = scmp.eq.s32.totalorder %s45, 1
      %p514 = por %p512, %p513
      %p515 = scmp.ne.s32.totalorder %s506, %s507
      %p516 = scmp.eq.s32.totalorder %s45, 0
      %p517 = por %p515, %p516
      %p518 = scmp.ne.s32.totalorder %s506, %s507
      %p519 = scmp.eq.s32.totalorder %s46, 1
      %p520 = por %p518, %p519
      %p522 = scmp.ne.s32.totalorder %s507, %s521
      %p523 = scmp.eq.s32.totalorder %s46, 0
      %p524 = por %p522, %p523
      %s526 = sadd.s32 %s525, 1
      %p529 = scmp.eq.s32.totalorder %s40, 1
      %p530 = scmp.ne.s32.totalorder %s525, %s527
      %p531 = scmp.eq.s32.totalorder %s40, 0
      %p532 = por %p530, %p531
      %p533 = scmp.ne.s32.totalorder %s525, %s527
      %p534 = scmp.eq.s32.totalorder %s45, 1
      %p535 = por %p533, %p534
      %p536 = scmp.ne.s32.totalorder %s527, %s528
      %p537 = scmp.eq.s32.totalorder %s45, 0
      %p538 = por %p536, %p537
      %p539 = scmp.ne.s32.totalorder %s527, %s528
      %p540 = scmp.eq.s32.totalorder %s46, 1
      %p541 = por %p539, %p540
      %p543 = scmp.ne.s32.totalorder %s528, %s542
      %p544 = scmp.eq.s32.totalorder %s46, 0
      %p545 = por %p543, %p544
      %s547 = sadd.s32 %s546, 1
      %p550 = scmp.eq.s32.totalorder %s40, 1
      %p551 = scmp.ne.s32.totalorder %s546, %s548
      %p552 = scmp.eq.s32.totalorder %s40, 0
      %p553 = por %p551, %p552
      %p554 = scmp.ne.s32.totalorder %s546, %s548
      %p555 = scmp.eq.s32.totalorder %s45, 1
      %p556 = por %p554, %p555
      %p557 = scmp.ne.s32.totalorder %s548, %s549
      %p558 = scmp.eq.s32.totalorder %s45, 0
      %p559 = por %p557, %p558
      %p560 = scmp.ne.s32.totalorder %s548, %s549
      %p561 = scmp.eq.s32.totalorder %s46, 1
      %p562 = por %p560, %p561
      %p564 = scmp.ne.s32.totalorder %s549, %s563
      %p565 = scmp.eq.s32.totalorder %s46, 0
      %p566 = por %p564, %p565
      %s567 = ssub.s32 %s40, %s47
      %p568 = scmp.eq.s32.totalorder %s567, 0
      %s570 = sadd.s32 %s569, 1
      %s571 = scalar_select %p568, %s569, %s570
      %p574 = pneg %p568
      %p575 = scmp.eq.s32.totalorder %s40, 1
      %p576 = por %p574, %p575
      %p577 = scmp.ne.s32.totalorder %s569, %s572
      %p578 = scmp.eq.s32.totalorder %s40, 0
      %p579 = por %p577, %p578
      %p580 = scmp.ne.s32.totalorder %s569, %s572
      %p581 = scmp.eq.s32.totalorder %s45, 1
      %p582 = por %p580, %p581
      %p583 = scmp.ne.s32.totalorder %s572, %s573
      %p584 = scmp.eq.s32.totalorder %s45, 0
      %p585 = por %p583, %p584
      %p586 = scmp.ne.s32.totalorder %s572, %s573
      %p587 = scmp.eq.s32.totalorder %s46, 1
      %p588 = por %p586, %p587
      %p590 = scmp.ne.s32.totalorder %s573, %s589
      %p591 = scmp.eq.s32.totalorder %s46, 0
      %p592 = por %p590, %p591
      %p593 = scmp.le.s32.totalorder 1, %s40
      %p594 = scmp.lt.s32.totalorder %s40, 3
      %p595 = pnand %p593, %p594
      %p596 = pneg %p595
      // Predicated region
      $region9: #{tpu_custom_call.1} parent=5 // pred_check
        _
      $region10: #{tpu_custom_call.1} parent=5 // pred_check_branch
        %598 = sbr.rel (%p595) target = $region12
      $region11: #{tpu_custom_call.1} parent=5 // pred_region
        %s599 = ssub.s32 %s40, 1
        // Predicated region
        $region13: #{tpu_custom_call.1} parent=11 // pred_check
          %p600 = pneg %p113
        $region14: #{tpu_custom_call.1} parent=11 // pred_check_branch
          %602 = sbr.rel (%p600) target = $region16
        $region15: #{tpu_custom_call.1} parent=11 // pred_region
          %s604 = ssub.s32 128, 128
          %605 = vsyncadd [#allocation3], %s604
          %s607 = sshll.u32 [#allocation2], 4
          %s608 = int_to_ptr.vmem [resolvable:$true] %s607
          %610 = dma.hbm_to_vmem [thread:$0]  %s2, 128, %s608, [#allocation3]
        $region16: #{tpu_custom_call.1} parent=11 // pred_fallthru
          _
        // Predicated region
        $region17: #{tpu_custom_call.1} parent=11 // pred_check
          %p611 = pneg %p160
        $region18: #{tpu_custom_call.1} parent=11 // pred_check_branch
          %613 = sbr.rel (%p611) target = $region20
        $region19: #{tpu_custom_call.1} parent=11 // pred_region
          _
        $region20: #{tpu_custom_call.1} parent=11 // pred_fallthru
          _
        // Predicated region
        $region21: #{tpu_custom_call.1} parent=11 // pred_check
          %p614 = pneg %p181
        $region22: #{tpu_custom_call.1} parent=11 // pred_check_branch
          %616 = sbr.rel (%p614) target = $region24
        $region23: #{tpu_custom_call.1} parent=11 // pred_region
          _
        $region24: #{tpu_custom_call.1} parent=11 // pred_fallthru
          _
        // Predicated region
        $region25: #{tpu_custom_call.1} parent=11 // pred_check
          %p617 = pneg %p202
        $region26: #{tpu_custom_call.1} parent=11 // pred_check_branch
          %619 = sbr.rel (%p617) target = $region28
        $region27: #{tpu_custom_call.1} parent=11 // pred_region
          %s621 = ssub.s32 256, 256
          %622 = vsyncadd [#allocation6], %s621
          %s623 = sshll.u32 [#allocation7], 4
          %s624 = int_to_ptr.vmem [resolvable:$true] %s623
          %629 = dma.hbm_to_vmem [thread:$0]  %s6, 256, %s624, [#allocation6], 64, 64, 4
        $region28: #{tpu_custom_call.1} parent=11 // pred_fallthru
          _
        // Predicated region
        $region29: #{tpu_custom_call.1} parent=11 // pred_check
          %p630 = pneg %p223
        $region30: #{tpu_custom_call.1} parent=11 // pred_check_branch
          %632 = sbr.rel (%p630) target = $region32
        $region31: #{tpu_custom_call.1} parent=11 // pred_region
          %s634 = ssub.s32 16, 16
          %635 = vsyncadd [#allocation9], %s634
          %s637 = sshll.u32 [#allocation8], 4
          %s638 = int_to_ptr.vmem [resolvable:$true] %s637
          %640 = dma.hbm_to_vmem [thread:$0]  %s7, 16, %s638, [#allocation9]
        $region32: #{tpu_custom_call.1} parent=11 // pred_fallthru
          _
        // Predicated region
        $region33: #{tpu_custom_call.1} parent=11 // pred_check
          %p641 = pneg %p244
        $region34: #{tpu_custom_call.1} parent=11 // pred_check_branch
          %643 = sbr.rel (%p641) target = $region36
        $region35: #{tpu_custom_call.1} parent=11 // pred_region
          %s645 = ssub.s32 256, 256
          %646 = vsyncadd [#allocation9], %s645
          %s647 = sshll.u32 [#allocation10], 4
          %s648 = int_to_ptr.vmem [resolvable:$true] %s647
          %653 = dma.hbm_to_vmem [thread:$0]  %s8, 256, %s648, [#allocation9], 64, 64, 4
        $region36: #{tpu_custom_call.1} parent=11 // pred_fallthru
          _
        // Predicated region
        $region37: #{tpu_custom_call.1} parent=11 // pred_check
          %p654 = pneg %p265
        $region38: #{tpu_custom_call.1} parent=11 // pred_check_branch
          %656 = sbr.rel (%p654) target = $region40
        $region39: #{tpu_custom_call.1} parent=11 // pred_region
          %s658 = ssub.s32 16, 16
          %659 = vsyncadd [#allocation12], %s658
          %s661 = sshll.u32 [#allocation11], 4
          %s662 = int_to_ptr.vmem [resolvable:$true] %s661
          %664 = dma.hbm_to_vmem [thread:$0]  %s9, 16, %s662, [#allocation12]
        $region40: #{tpu_custom_call.1} parent=11 // pred_fallthru
          _
        // Predicated region
        $region41: #{tpu_custom_call.1} parent=11 // pred_check
          %p665 = pneg %p286
        $region42: #{tpu_custom_call.1} parent=11 // pred_check_branch
          %667 = sbr.rel (%p665) target = $region44
        $region43: #{tpu_custom_call.1} parent=11 // pred_region
          _
        $region44: #{tpu_custom_call.1} parent=11 // pred_fallthru
          _
        // Predicated region
        $region45: #{tpu_custom_call.1} parent=11 // pred_check
          %p668 = pneg %p307
        $region46: #{tpu_custom_call.1} parent=11 // pred_check_branch
          %670 = sbr.rel (%p668) target = $region48
        $region47: #{tpu_custom_call.1} parent=11 // pred_region
          %s672 = ssub.s32 16, 16
          %673 = vsyncadd [#allocation12], %s672
          %s675 = sshll.u32 [#allocation13], 4
          %s676 = int_to_ptr.vmem [resolvable:$true] %s675
          %678 = dma.hbm_to_vmem [thread:$0]  %s11, 16, %s676, [#allocation12]
        $region48: #{tpu_custom_call.1} parent=11 // pred_fallthru
          _
        // Predicated region
        $region49: #{tpu_custom_call.1} parent=11 // pred_check
          %p679 = pneg %p328
        $region50: #{tpu_custom_call.1} parent=11 // pred_check_branch
          %681 = sbr.rel (%p679) target = $region52
        $region51: #{tpu_custom_call.1} parent=11 // pred_region
          %s683 = ssub.s32 256, 256
          %684 = vsyncadd [#allocation15], %s683
          %s685 = sshll.u32 [#allocation14], 4
          %s686 = int_to_ptr.vmem [resolvable:$true] %s685
          %691 = dma.hbm_to_vmem [thread:$0]  %s12, 256, %s686, [#allocation15], 64, 64, 4
        $region52: #{tpu_custom_call.1} parent=11 // pred_fallthru
          _
        // Predicated region
        $region53: #{tpu_custom_call.1} parent=11 // pred_check
          %p692 = pneg %p349
        $region54: #{tpu_custom_call.1} parent=11 // pred_check_branch
          %694 = sbr.rel (%p692) target = $region56
        $region55: #{tpu_custom_call.1} parent=11 // pred_region
          %s696 = ssub.s32 16, 16
          %697 = vsyncadd [#allocation15], %s696
          %s699 = sshll.u32 [#allocation16], 4
          %s700 = int_to_ptr.vmem [resolvable:$true] %s699
          %702 = dma.hbm_to_vmem [thread:$0]  %s13, 16, %s700, [#allocation15]
        $region56: #{tpu_custom_call.1} parent=11 // pred_fallthru
          _
        // Predicated region
        $region57: #{tpu_custom_call.1} parent=11 // pred_check
          %p703 = pneg %p370
        $region58: #{tpu_custom_call.1} parent=11 // pred_check_branch
          %705 = sbr.rel (%p703) target = $region60
        $region59: #{tpu_custom_call.1} parent=11 // pred_region
          _
        $region60: #{tpu_custom_call.1} parent=11 // pred_fallthru
          _
        // Predicated region
        $region61: #{tpu_custom_call.1} parent=11 // pred_check
          %p706 = pneg %p391
        $region62: #{tpu_custom_call.1} parent=11 // pred_check_branch
          %708 = sbr.rel (%p706) target = $region64
        $region63: #{tpu_custom_call.1} parent=11 // pred_region
          _
        $region64: #{tpu_custom_call.1} parent=11 // pred_fallthru
          _
        // Predicated region
        $region65: #{tpu_custom_call.1} parent=11 // pred_check
          %p709 = pneg %p412
        $region66: #{tpu_custom_call.1} parent=11 // pred_check_branch
          %711 = sbr.rel (%p709) target = $region68
        $region67: #{tpu_custom_call.1} parent=11 // pred_region
          _
        $region68: #{tpu_custom_call.1} parent=11 // pred_fallthru
          _
        // Predicated region
        $region69: #{tpu_custom_call.1} parent=11 // pred_check
          %p712 = pneg %p433
        $region70: #{tpu_custom_call.1} parent=11 // pred_check_branch
          %714 = sbr.rel (%p712) target = $region72
        $region71: #{tpu_custom_call.1} parent=11 // pred_region
          _
        $region72: #{tpu_custom_call.1} parent=11 // pred_fallthru
          _
        // Predicated region
        $region73: #{tpu_custom_call.1} parent=11 // pred_check
          %p715 = pneg %p454
        $region74: #{tpu_custom_call.1} parent=11 // pred_check_branch
          %717 = sbr.rel (%p715) target = $region76
        $region75: #{tpu_custom_call.1} parent=11 // pred_region
          _
        $region76: #{tpu_custom_call.1} parent=11 // pred_fallthru
          _
        // Predicated region
        $region77: #{tpu_custom_call.1} parent=11 // pred_check
          %p718 = pneg %p475
        $region78: #{tpu_custom_call.1} parent=11 // pred_check_branch
          %720 = sbr.rel (%p718) target = $region80
        $region79: #{tpu_custom_call.1} parent=11 // pred_region
          _
        $region80: #{tpu_custom_call.1} parent=11 // pred_fallthru
          _
        // Predicated region
        $region81: #{tpu_custom_call.1} parent=11 // pred_check
          %p721 = pneg %p496
        $region82: #{tpu_custom_call.1} parent=11 // pred_check_branch
          %723 = sbr.rel (%p721) target = $region84
        $region83: #{tpu_custom_call.1} parent=11 // pred_region
          _
        $region84: #{tpu_custom_call.1} parent=11 // pred_fallthru
          _
        // Predicated region
        $region85: #{tpu_custom_call.1} parent=11 // pred_check
          %p724 = pneg %p517
        $region86: #{tpu_custom_call.1} parent=11 // pred_check_branch
          %726 = sbr.rel (%p724) target = $region88
        $region87: #{tpu_custom_call.1} parent=11 // pred_region
          _
        $region88: #{tpu_custom_call.1} parent=11 // pred_fallthru
          _
        // Predicated region
        $region89: #{tpu_custom_call.1} parent=11 // pred_check
          %p727 = pneg %p538
        $region90: #{tpu_custom_call.1} parent=11 // pred_check_branch
          %729 = sbr.rel (%p727) target = $region92
        $region91: #{tpu_custom_call.1} parent=11 // pred_region
          _
        $region92: #{tpu_custom_call.1} parent=11 // pred_fallthru
          _
        // Predicated region
        $region93: #{tpu_custom_call.1} parent=11 // pred_check
          %p730 = pneg %p559
        $region94: #{tpu_custom_call.1} parent=11 // pred_check_branch
          %732 = sbr.rel (%p730) target = $region96
        $region95: #{tpu_custom_call.1} parent=11 // pred_region
          _
        $region96: #{tpu_custom_call.1} parent=11 // pred_fallthru
          _
      $region12: #{tpu_custom_call.1} parent=5 // pred_fallthru
        _
      %p733 = scmp.lt.s32.totalorder %s40, 2
      // Predicated region
      $region97: #{tpu_custom_call.1} parent=5 // pred_check
        %p734 = pneg %p733
      $region98: #{tpu_custom_call.1} parent=5 // pred_check_branch
        %736 = sbr.rel (%p734) target = $region100
      $region99: #{tpu_custom_call.1} parent=5 // pred_region
        // Predicated region
        $region101: #{tpu_custom_call.1} parent=99 // pred_check
          %p737 = pneg %p60
        $region102: #{tpu_custom_call.1} parent=99 // pred_check_branch
          %739 = sbr.rel (%p737) target = $region104
        $region103: #{tpu_custom_call.1} parent=99 // pred_region
          %p740 = scmp.lt.s32.totalorder %s40, 1
          %s741 = scalar_select %p740, %s40, 1
          %s742 = smul.addr %s741, 8
          %s743 = scalar_lea.vmem %s0, %s742
        $region104: #{tpu_custom_call.1} parent=99 // pred_fallthru
          _
        // Predicated region
        $region105: #{tpu_custom_call.1} parent=99 // pred_check
          %p744 = pneg %p86
        $region106: #{tpu_custom_call.1} parent=99 // pred_check_branch
          %746 = sbr.rel (%p744) target = $region108
        $region107: #{tpu_custom_call.1} parent=99 // pred_region
          %p747 = scmp.lt.s32.totalorder %s40, 1
          %s748 = scalar_select %p747, %s40, 1
          %s749 = smul.addr %s748, 8
          %s750 = scalar_lea.vmem %s1, %s749
        $region108: #{tpu_custom_call.1} parent=99 // pred_fallthru
          _
        // Predicated region
        $region109: #{tpu_custom_call.1} parent=99 // pred_check
          %p751 = pneg %p133
        $region110: #{tpu_custom_call.1} parent=99 // pred_check_branch
          %753 = sbr.rel (%p751) target = $region112
        $region111: #{tpu_custom_call.1} parent=99 // pred_region
          %s754 = sand.u32 %s40, 1
          %s755 = scalar_lea.sflag [#allocation6], %s754
          %s756 = sand.u32 %s123, 1
          %s757 = scalar_lea.vmem [#allocation5], %s756
          %s759 = ssub.s32 16, 16
          %760 = vsyncadd %s755, %s759
          %s761 = smul.addr %s40, 16
          %s762 = scalar_lea.hbm %s3, %s761
          %s764 = sshll.u32 %s757, 4
          %s765 = int_to_ptr.vmem [resolvable:$true] %s764
          %767 = dma.hbm_to_vmem [thread:$0]  %s762, 16, %s765, %s755
        $region112: #{tpu_custom_call.1} parent=99 // pred_fallthru
          _
      $region100: #{tpu_custom_call.1} parent=5 // pred_fallthru
        _
      %p768 = scmp.le.s32.totalorder 1, %s40
      %p769 = scmp.lt.s32.totalorder %s40, 3
      %p770 = pnand %p768, %p769
      %p771 = pneg %p770
      // Predicated region
      $region113: #{tpu_custom_call.1} parent=5 // pred_check
        _
      $region114: #{tpu_custom_call.1} parent=5 // pred_check_branch
        %773 = sbr.rel (%p770) target = $region116
      $region115: #{tpu_custom_call.1} parent=5 // pred_region
        %s774 = ssub.s32 %s40, 1
        // Predicated region
        $region117: #{tpu_custom_call.1} parent=115 // pred_check
          %p775 = pneg %p113
        $region118: #{tpu_custom_call.1} parent=115 // pred_check_branch
          %777 = sbr.rel (%p775) target = $region120
        $region119: #{tpu_custom_call.1} parent=115 // pred_region
          %778 = dma.done [#allocation3], 128
        $region120: #{tpu_custom_call.1} parent=115 // pred_fallthru
          _
        %s779 = sand.u32 %s45, 1
        %s780 = scalar_lea.sflag [#allocation6], %s779
        %s781 = sand.u32 %s126, 1
        %s782 = scalar_lea.vmem [#allocation5], %s781
        // Predicated region
        $region121: #{tpu_custom_call.1} parent=115 // pred_check
          %p783 = pneg %p139
        $region122: #{tpu_custom_call.1} parent=115 // pred_check_branch
          %785 = sbr.rel (%p783) target = $region124
        $region123: #{tpu_custom_call.1} parent=115 // pred_region
          %786 = dma.done %s780, 16
        $region124: #{tpu_custom_call.1} parent=115 // pred_fallthru
          _
        // Predicated region
        $region125: #{tpu_custom_call.1} parent=115 // pred_check
          %p787 = pneg %p202
        $region126: #{tpu_custom_call.1} parent=115 // pred_check_branch
          %789 = sbr.rel (%p787) target = $region128
        $region127: #{tpu_custom_call.1} parent=115 // pred_region
          %790 = dma.done [#allocation6], 256
        $region128: #{tpu_custom_call.1} parent=115 // pred_fallthru
          _
        // Predicated region
        $region129: #{tpu_custom_call.1} parent=115 // pred_check
          %p791 = pneg %p223
        $region130: #{tpu_custom_call.1} parent=115 // pred_check_branch
          %793 = sbr.rel (%p791) target = $region132
        $region131: #{tpu_custom_call.1} parent=115 // pred_region
          %794 = dma.done [#allocation9], 16
        $region132: #{tpu_custom_call.1} parent=115 // pred_fallthru
          _
        // Predicated region
        $region133: #{tpu_custom_call.1} parent=115 // pred_check
          %p795 = pneg %p244
        $region134: #{tpu_custom_call.1} parent=115 // pred_check_branch
          %797 = sbr.rel (%p795) target = $region136
        $region135: #{tpu_custom_call.1} parent=115 // pred_region
          %798 = dma.done [#allocation9], 256
        $region136: #{tpu_custom_call.1} parent=115 // pred_fallthru
          _
        // Predicated region
        $region137: #{tpu_custom_call.1} parent=115 // pred_check
          %p799 = pneg %p265
        $region138: #{tpu_custom_call.1} parent=115 // pred_check_branch
          %801 = sbr.rel (%p799) target = $region140
        $region139: #{tpu_custom_call.1} parent=115 // pred_region
          %802 = dma.done [#allocation12], 16
        $region140: #{tpu_custom_call.1} parent=115 // pred_fallthru
          _
        // Predicated region
        $region141: #{tpu_custom_call.1} parent=115 // pred_check
          %p803 = pneg %p307
        $region142: #{tpu_custom_call.1} parent=115 // pred_check_branch
          %805 = sbr.rel (%p803) target = $region144
        $region143: #{tpu_custom_call.1} parent=115 // pred_region
          %806 = dma.done [#allocation12], 16
        $region144: #{tpu_custom_call.1} parent=115 // pred_fallthru
          _
        // Predicated region
        $region145: #{tpu_custom_call.1} parent=115 // pred_check
          %p807 = pneg %p328
        $region146: #{tpu_custom_call.1} parent=115 // pred_check_branch
          %809 = sbr.rel (%p807) target = $region148
        $region147: #{tpu_custom_call.1} parent=115 // pred_region
          %810 = dma.done [#allocation15], 256
        $region148: #{tpu_custom_call.1} parent=115 // pred_fallthru
          _
        // Predicated region
        $region149: #{tpu_custom_call.1} parent=115 // pred_check
          %p811 = pneg %p349
        $region150: #{tpu_custom_call.1} parent=115 // pred_check_branch
          %813 = sbr.rel (%p811) target = $region152
        $region151: #{tpu_custom_call.1} parent=115 // pred_region
          %814 = dma.done [#allocation15], 16
        $region152: #{tpu_custom_call.1} parent=115 // pred_fallthru
          _
        %p815 = scmp.lt.s32.totalorder %s45, 1
        %s816 = scalar_select %p815, %s45, 1
        %s817 = smul.addr %s816, 8
        %s818 = scalar_lea.vmem %s0, %s817
        %p819 = pneg %p66
        %p820 = pneg %p63
        %p821 = scmp.lt.s32.totalorder %s45, 1
        %s822 = scalar_select %p821, %s45, 1
        %s823 = smul.addr %s822, 8
        %s824 = scalar_lea.vmem %s1, %s823
        %p825 = pneg %p92
        %p826 = pneg %p89
        %p827 = pneg %p113
        %p828 = pneg %p110
        %s829 = sand.u32 %s45, 1
        %s830 = scalar_lea.sflag [#allocation6], %s829
        %s831 = sand.u32 %s126, 1
        %s832 = scalar_lea.vmem [#allocation5], %s831
        %p833 = pneg %p139
        %p834 = pneg %p136
        %p835 = pneg %p160
        %p836 = pneg %p157
        %p837 = pneg %p181
        %p838 = pneg %p178
        %p839 = pneg %p202
        %p840 = pneg %p199
        %p841 = pneg %p223
        %p842 = pneg %p220
        %p843 = pneg %p244
        %p844 = pneg %p241
        %p845 = pneg %p265
        %p846 = pneg %p262
        %p847 = pneg %p286
        %p848 = pneg %p283
        %p849 = pneg %p307
        %p850 = pneg %p304
        %p851 = pneg %p328
        %p852 = pneg %p325
        %p853 = pneg %p349
        %p854 = pneg %p346
        %p855 = pneg %p370
        %p856 = pneg %p367
        %p857 = pneg %p391
        %p858 = pneg %p388
        %p859 = pneg %p412
        %p860 = pneg %p409
        %p861 = pneg %p433
        %p862 = pneg %p430
        %p863 = pneg %p454
        %p864 = pneg %p451
        %p865 = pneg %p475
        %p866 = pneg %p472
        %p867 = pneg %p496
        %p868 = pneg %p493
        %p869 = pneg %p517
        %p870 = pneg %p514
        %p871 = pneg %p538
        %p872 = pneg %p535
        %p873 = pneg %p559
        %p874 = pneg %p556
        %p875 = pneg %p585
        %p876 = pneg %p582
        %s877 = sand.u32 %s572, 1
        %s878 = scalar_lea.sflag [#allocation4], %s877
        %s879 = sand.u32 %s572, 1
        %s880 = smul.addr %s879, 8
        %s881 = scalar_lea.vmem [#allocation17], %s880
        %p882 = scmp.lt.s32.totalorder %s45, 1
        %s883 = scalar_select %p882, %s45, 1
        %s884 = smul.addr %s883, 8
        %s885 = scalar_lea.vmem %s0, %s884
        %p886 = scmp.lt.s32.totalorder %s45, 1
        %s887 = scalar_select %p886, %s45, 1
        %s888 = smul.addr %s887, 8
        %s889 = scalar_lea.vmem %s1, %s888
        %v891 = vld [vmem:[%s885] sm:$0xff]
        %v892 = vld [vmem:[%s889] sm:$0xff]
        %v893 = vpack.c.bf16 %v891, %v891
        %v894 = vld [vmem:[%s4] sm:$0xf]
        %v895 = vld [vmem:[%s4 + $0x4] sm:$0xf]
        %v896 = vld [vmem:[%s4 + $0x8] sm:$0xf]
        %v897 = vld [vmem:[%s4 + $0xc] sm:$0xf]
        %v898 = vld [vmem:[%s5] sm:$0x1]
        %v900 = vlaneseq
        %v901 = vshrl.u32 %v900, 7
        %v902 = vsub.s32 0, %v901
        %v903 = vrot.slane %v898, %v902
        %v909 = vunpack.c.l.b16 %v894
        %v910 = vunpack.c.l.b16 %v895
        %v911 = vunpack.c.l.b16 %v896
        %v912 = vunpack.c.l.b16 %v897
        %v913 = vpack.c.b16 %v910, %v909
        %v914 = vpack.c.b16 %v912, %v911
        %vm917 = vcmask 261120
        %v919 = vsel %vm917, %v893, 0
        %921 = vmatprep.subr.bf16.mxu0 0
        %922 = vmatpush1.bf16.msra.mxu0 %v913
        %923 = vmatprep.subr.bf16.mxu0 0
        %924 = vmatpush1.bf16.msra.mxu0 %v914
        %925 = vmatprep.subr.bf16.mxu0 0
        %926 = vmatpush1.bf16.msra.mxu0 0
        %927 = vmatprep.subr.bf16.mxu0 0
        %928 = vmatpush1.bf16.msra.mxu0 0
        %929 = vmatprep.subr.bf16.mxu0 0
        %930 = vmatpush1.bf16.msra.mxu0 0
        %931 = vmatprep.subr.bf16.mxu0 0
        %932 = vmatpush1.bf16.msra.mxu0 0
        %933 = vmatprep.subr.bf16.mxu0 0
        %934 = vmatpush1.bf16.msra.mxu0 0
        %935 = vmatprep.subr.bf16.mxu0 0
        %936 = vmatpush1.bf16.msra.mxu0 0
        %937 = vmatprep.subr.bf16.mxu0 0
        %938 = vmatpush1.bf16.msra.mxu0 0
        %939 = vmatprep.subr.bf16.mxu0 0
        %940 = vmatpush1.bf16.msra.mxu0 0
        %941 = vmatprep.subr.bf16.mxu0 0
        %942 = vmatpush1.bf16.msra.mxu0 0
        %943 = vmatprep.subr.bf16.mxu0 0
        %944 = vmatpush1.bf16.msra.mxu0 0
        %945 = vmatprep.subr.bf16.mxu0 0
        %946 = vmatpush1.bf16.msra.mxu0 0
        %947 = vmatprep.subr.bf16.mxu0 0
        %948 = vmatpush1.bf16.msra.mxu0 0
        %949 = vmatprep.subr.bf16.mxu0 0
        %950 = vmatpush1.bf16.msra.mxu0 0
        %951 = vmatprep.subr.bf16.mxu0 0
        %952 = vmatpush1.bf16.msra.mxu0 0
        %953 = vmatprep.mubr.bf16.mxu0 0
        %954 = vmatmul.mubr.bf16.gmra.mrb[0].mxu0 %v919
        %v955 = vpop.f32.mrb[0].mxu0
        %v956 = vadd.f32 %v903, %v955
        %v957 = vpop.f32.mrb[0].mxu0
        %v958 = vpop.f32.mrb[0].mxu0
        %v959 = vpop.f32.mrb[0].mxu0
        %960 = vdwg.mxu0
        %v961 = vld [vmem:[#allocation2] sm:$0xff]
        %v962 = vpack.c.bf16 %v956, %v956
        %964 = vrot.lane.b32.xlu0 %v962, 96
        %v965 = vpop.permute.xlu0 %964
        %vm966 = vcmask 64512
        %v968 = vsel %vm966, %v962, 0
        %v971 = vsel %vm966, %v965, 0
        %973 = vmatprep.subr.bf16.mxu0 0
        %974 = vmatpush1.bf16.xpose.msra.mxu0 %v971
        %975 = vmatprep.subr.bf16.mxu0 0
        %976 = vmatpush1.bf16.xpose.msra.mxu0 0
        %977 = vmatprep.subr.bf16.mxu0 0
        %978 = vmatpush1.bf16.xpose.msra.mxu0 0
        %979 = vmatprep.subr.bf16.mxu0 0
        %980 = vmatpush1.bf16.xpose.msra.mxu0 0
        %981 = vmatprep.subr.bf16.mxu0 0
        %982 = vmatpush1.bf16.xpose.msra.mxu0 0
        %983 = vmatprep.subr.bf16.mxu0 0
        %984 = vmatpush1.bf16.xpose.msra.mxu0 0
        %985 = vmatprep.subr.bf16.mxu0 0
        %986 = vmatpush1.bf16.xpose.msra.mxu0 0
        %987 = vmatprep.subr.bf16.mxu0 0
        %988 = vmatpush1.bf16.xpose.msra.mxu0 0
        %989 = vmatprep.subr.bf16.mxu0 0
        %990 = vmatpush1.bf16.xpose.msra.mxu0 0
        %991 = vmatprep.subr.bf16.mxu0 0
        %992 = vmatpush1.bf16.xpose.msra.mxu0 0
        %993 = vmatprep.subr.bf16.mxu0 0
        %994 = vmatpush1.bf16.xpose.msra.mxu0 0
        %995 = vmatprep.subr.bf16.mxu0 0
        %996 = vmatpush1.bf16.xpose.msra.mxu0 0
        %997 = vmatprep.subr.bf16.mxu0 0
        %998 = vmatpush1.bf16.xpose.msra.mxu0 0
        %999 = vmatprep.subr.bf16.mxu0 0
        %1000 = vmatpush1.bf16.xpose.msra.mxu0 0
        %1001 = vmatprep.subr.bf16.mxu0 0
        %1002 = vmatpush1.bf16.xpose.msra.mxu0 0
        %1003 = vmatprep.subr.bf16.mxu0 0
        %1004 = vmatpush1.bf16.xpose.msra.mxu0 0
        %1005 = vmatprep.mubr.bf16.mxu0 0
        %1006 = vmatmul.mubr.bf16.gmra.mrb[0].mxu0 %v968
        %v1007 = vpop.f32.mrb[0].mxu0
        %v1008 = vadd.f32 0.0, %v1007
        %v1009 = vpop.f32.mrb[0].mxu0
        %v1010 = vpop.f32.mrb[0].mxu0
        %v1011 = vpop.f32.mrb[0].mxu0
        %1012 = vdwg.mxu0
        %v1013 = vmul.f32 %v1008, 0.35355338
        %v1014 = vadd.f32 %v1013, %v961
        %v1015 = vsel %vm966, %v1014, -inf
        %1016 = vmax.xlane.f32.xlu0 %v1015
        %v1017 = vpop.xlane.xlu0 %1016
        %v1018 = vsub.f32 %v1014, %v1017
        %v1019 = vmul.f32 %v1018, 1.442695
        %v1020 = vpow.pop %v1019
        %v1021 = vsel %vm966, %v1020, 0.0
        %1022 = vadd.xlane.f32.xlu0 %v1021
        %v1023 = vpop.xlane.xlu0 %1022
        %v1024 = vrcp.pop %v1023
        %v1025 = vpack.c.bf16 %v1020, %v1020
        %1026 = vrot.lane.b32.xlu0 %v962, 64
        %v1027 = vpop.permute.xlu0 %1026
        %v1029 = vsel %vm966, %v1025, 0
        %vm1031 = vcmask 1043456
        %v1033 = vsel %vm1031, %v1027, 0
        %1035 = vmatprep.subr.bf16.mxu0 0
        %1036 = vmatpush1.bf16.msra.mxu0 %v1033
        %1037 = vmatprep.subr.bf16.mxu0 0
        %1038 = vmatpush1.bf16.msra.mxu0 0
        %1039 = vmatprep.subr.bf16.mxu0 0
        %1040 = vmatpush1.bf16.msra.mxu0 0
        %1041 = vmatprep.subr.bf16.mxu0 0
        %1042 = vmatpush1.bf16.msra.mxu0 0
        %1043 = vmatprep.subr.bf16.mxu0 0
        %1044 = vmatpush1.bf16.msra.mxu0 0
        %1045 = vmatprep.subr.bf16.mxu0 0
        %1046 = vmatpush1.bf16.msra.mxu0 0
        %1047 = vmatprep.subr.bf16.mxu0 0
        %1048 = vmatpush1.bf16.msra.mxu0 0
        %1049 = vmatprep.subr.bf16.mxu0 0
        %1050 = vmatpush1.bf16.msra.mxu0 0
        %1051 = vmatprep.subr.bf16.mxu0 0
        %1052 = vmatpush1.bf16.msra.mxu0 0
        %1053 = vmatprep.subr.bf16.mxu0 0
        %1054 = vmatpush1.bf16.msra.mxu0 0
        %1055 = vmatprep.subr.bf16.mxu0 0
        %1056 = vmatpush1.bf16.msra.mxu0 0
        %1057 = vmatprep.subr.bf16.mxu0 0
        %1058 = vmatpush1.bf16.msra.mxu0 0
        %1059 = vmatprep.subr.bf16.mxu0 0
        %1060 = vmatpush1.bf16.msra.mxu0 0
        %1061 = vmatprep.subr.bf16.mxu0 0
        %1062 = vmatpush1.bf16.msra.mxu0 0
        %1063 = vmatprep.subr.bf16.mxu0 0
        %1064 = vmatpush1.bf16.msra.mxu0 0
        %1065 = vmatprep.subr.bf16.mxu0 0
        %1066 = vmatpush1.bf16.msra.mxu0 0
        %1067 = vmatprep.mubr.bf16.mxu0 0
        %1068 = vmatmul.mubr.bf16.gmra.mrb[0].mxu0 %v1029
        %v1069 = vpop.f32.mrb[0].mxu0
        %v1070 = vadd.f32 0.0, %v1069
        %v1071 = vpop.f32.mrb[0].mxu0
        %v1072 = vpop.f32.mrb[0].mxu0
        %v1073 = vpop.f32.mrb[0].mxu0
        %1074 = vdwg.mxu0
        %v1075 = vmul.f32 %v1070, %v1024
        %1076 = vrot.lane.b32.xlu0 %v962, 120
        %v1077 = vpop.permute.xlu0 %1076
        %1078 = vrot.lane.b32.xlu0 %v962, 88
        %v1079 = vpop.permute.xlu0 %1078
        %v1081 = vsel %vm966, %v1077, 0
        %v1084 = vsel %vm966, %v1079, 0
        %1086 = vmatprep.subr.bf16.mxu0 0
        %1087 = vmatpush1.bf16.xpose.msra.mxu0 %v1084
        %1088 = vmatprep.subr.bf16.mxu0 0
        %1089 = vmatpush1.bf16.xpose.msra.mxu0 0
        %1090 = vmatprep.subr.bf16.mxu0 0
        %1091 = vmatpush1.bf16.xpose.msra.mxu0 0
        %1092 = vmatprep.subr.bf16.mxu0 0
        %1093 = vmatpush1.bf16.xpose.msra.mxu0 0
        %1094 = vmatprep.subr.bf16.mxu0 0
        %1095 = vmatpush1.bf16.xpose.msra.mxu0 0
        %1096 = vmatprep.subr.bf16.mxu0 0
        %1097 = vmatpush1.bf16.xpose.msra.mxu0 0
        %1098 = vmatprep.subr.bf16.mxu0 0
        %1099 = vmatpush1.bf16.xpose.msra.mxu0 0
        %1100 = vmatprep.subr.bf16.mxu0 0
        %1101 = vmatpush1.bf16.xpose.msra.mxu0 0
        %1102 = vmatprep.subr.bf16.mxu0 0
        %1103 = vmatpush1.bf16.xpose.msra.mxu0 0
        %1104 = vmatprep.subr.bf16.mxu0 0
        %1105 = vmatpush1.bf16.xpose.msra.mxu0 0
        %1106 = vmatprep.subr.bf16.mxu0 0
        %1107 = vmatpush1.bf16.xpose.msra.mxu0 0
        %1108 = vmatprep.subr.bf16.mxu0 0
        %1109 = vmatpush1.bf16.xpose.msra.mxu0 0
        %1110 = vmatprep.subr.bf16.mxu0 0
        %1111 = vmatpush1.bf16.xpose.msra.mxu0 0
        %1112 = vmatprep.subr.bf16.mxu0 0
        %1113 = vmatpush1.bf16.xpose.msra.mxu0 0
        %1114 = vmatprep.subr.bf16.mxu0 0
        %1115 = vmatpush1.bf16.xpose.msra.mxu0 0
        %1116 = vmatprep.subr.bf16.mxu0 0
        %1117 = vmatpush1.bf16.xpose.msra.mxu0 0
        %1118 = vmatprep.mubr.bf16.mxu0 0
        %1119 = vmatmul.mubr.bf16.gmra.mrb[0].mxu0 %v1081
        %v1120 = vpop.f32.mrb[0].mxu0
        %v1121 = vadd.f32 0.0, %v1120
        %v1122 = vpop.f32.mrb[0].mxu0
        %v1123 = vpop.f32.mrb[0].mxu0
        %v1124 = vpop.f32.mrb[0].mxu0
        %1125 = vdwg.mxu0
        %v1126 = vmul.f32 %v1121, 0.35355338
        %v1127 = vadd.f32 %v1126, %v961
        %v1128 = vsel %vm966, %v1127, -inf
        %1129 = vmax.xlane.f32.xlu0 %v1128
        %v1130 = vpop.xlane.xlu0 %1129
        %v1131 = vsub.f32 %v1127, %v1130
        %v1132 = vmul.f32 %v1131, 1.442695
        %v1133 = vpow.pop %v1132
        %v1134 = vsel %vm966, %v1133, 0.0
        %1135 = vadd.xlane.f32.xlu0 %v1134
        %v1136 = vpop.xlane.xlu0 %1135
        %v1137 = vrcp.pop %v1136
        %v1138 = vpack.c.bf16 %v1133, %v1133
        %1139 = vrot.lane.b32.xlu0 %v962, 56
        %v1140 = vpop.permute.xlu0 %1139
        %v1142 = vsel %vm966, %v1138, 0
        %v1145 = vsel %vm1031, %v1140, 0
        %1147 = vmatprep.subr.bf16.mxu0 0
        %1148 = vmatpush1.bf16.msra.mxu0 %v1145
        %1149 = vmatprep.subr.bf16.mxu0 0
        %1150 = vmatpush1.bf16.msra.mxu0 0
        %1151 = vmatprep.subr.bf16.mxu0 0
        %1152 = vmatpush1.bf16.msra.mxu0 0
        %1153 = vmatprep.subr.bf16.mxu0 0
        %1154 = vmatpush1.bf16.msra.mxu0 0
        %1155 = vmatprep.subr.bf16.mxu0 0
        %1156 = vmatpush1.bf16.msra.mxu0 0
        %1157 = vmatprep.subr.bf16.mxu0 0
        %1158 = vmatpush1.bf16.msra.mxu0 0
        %1159 = vmatprep.subr.bf16.mxu0 0
        %1160 = vmatpush1.bf16.msra.mxu0 0
        %1161 = vmatprep.subr.bf16.mxu0 0
        %1162 = vmatpush1.bf16.msra.mxu0 0
        %1163 = vmatprep.subr.bf16.mxu0 0
        %1164 = vmatpush1.bf16.msra.mxu0 0
        %1165 = vmatprep.subr.bf16.mxu0 0
        %1166 = vmatpush1.bf16.msra.mxu0 0
        %1167 = vmatprep.subr.bf16.mxu0 0
        %1168 = vmatpush1.bf16.msra.mxu0 0
        %1169 = vmatprep.subr.bf16.mxu0 0
        %1170 = vmatpush1.bf16.msra.mxu0 0
        %1171 = vmatprep.subr.bf16.mxu0 0
        %1172 = vmatpush1.bf16.msra.mxu0 0
        %1173 = vmatprep.subr.bf16.mxu0 0
        %1174 = vmatpush1.bf16.msra.mxu0 0
        %1175 = vmatprep.subr.bf16.mxu0 0
        %1176 = vmatpush1.bf16.msra.mxu0 0
        %1177 = vmatprep.subr.bf16.mxu0 0
        %1178 = vmatpush1.bf16.msra.mxu0 0
        %1179 = vmatprep.mubr.bf16.mxu0 0
        %1180 = vmatmul.mubr.bf16.gmra.mrb[0].mxu0 %v1142
        %v1181 = vpop.f32.mrb[0].mxu0
        %v1182 = vadd.f32 0.0, %v1181
        %v1183 = vpop.f32.mrb[0].mxu0
        %v1184 = vpop.f32.mrb[0].mxu0
        %v1185 = vpop.f32.mrb[0].mxu0
        %1186 = vdwg.mxu0
        %v1187 = vmul.f32 %v1182, %v1137
        %1188 = vrot.lane.b32.xlu0 %v962, 112
        %v1189 = vpop.permute.xlu0 %1188
        %1190 = vrot.lane.b32.xlu0 %v962, 80
        %v1191 = vpop.permute.xlu0 %1190
        %v1193 = vsel %vm966, %v1189, 0
        %v1196 = vsel %vm966, %v1191, 0
        %1198 = vmatprep.subr.bf16.mxu0 0
        %1199 = vmatpush1.bf16.xpose.msra.mxu0 %v1196
        %1200 = vmatprep.subr.bf16.mxu0 0
        %1201 = vmatpush1.bf16.xpose.msra.mxu0 0
        %1202 = vmatprep.subr.bf16.mxu0 0
        %1203 = vmatpush1.bf16.xpose.msra.mxu0 0
        %1204 = vmatprep.subr.bf16.mxu0 0
        %1205 = vmatpush1.bf16.xpose.msra.mxu0 0
        %1206 = vmatprep.subr.bf16.mxu0 0
        %1207 = vmatpush1.bf16.xpose.msra.mxu0 0
        %1208 = vmatprep.subr.bf16.mxu0 0
        %1209 = vmatpush1.bf16.xpose.msra.mxu0 0
        %1210 = vmatprep.subr.bf16.mxu0 0
        %1211 = vmatpush1.bf16.xpose.msra.mxu0 0
        %1212 = vmatprep.subr.bf16.mxu0 0
        %1213 = vmatpush1.bf16.xpose.msra.mxu0 0
        %1214 = vmatprep.subr.bf16.mxu0 0
        %1215 = vmatpush1.bf16.xpose.msra.mxu0 0
        %1216 = vmatprep.subr.bf16.mxu0 0
        %1217 = vmatpush1.bf16.xpose.msra.mxu0 0
        %1218 = vmatprep.subr.bf16.mxu0 0
        %1219 = vmatpush1.bf16.xpose.msra.mxu0 0
        %1220 = vmatprep.subr.bf16.mxu0 0
        %1221 = vmatpush1.bf16.xpose.msra.mxu0 0
        %1222 = vmatprep.subr.bf16.mxu0 0
        %1223 = vmatpush1.bf16.xpose.msra.mxu0 0
        %1224 = vmatprep.subr.bf16.mxu0 0
        %1225 = vmatpush1.bf16.xpose.msra.mxu0 0
        %1226 = vmatprep.subr.bf16.mxu0 0
        %1227 = vmatpush1.bf16.xpose.msra.mxu0 0
        %1228 = vmatprep.subr.bf16.mxu0 0
        %1229 = vmatpush1.bf16.xpose.msra.mxu0 0
        %1230 = vmatprep.mubr.bf16.mxu0 0
        %1231 = vmatmul.mubr.bf16.gmra.mrb[0].mxu0 %v1193
        %v1232 = vpop.f32.mrb[0].mxu0
        %v1233 = vadd.f32 0.0, %v1232
        %v1234 = vpop.f32.mrb[0].mxu0
        %v1235 = vpop.f32.mrb[0].mxu0
        %v1236 = vpop.f32.mrb[0].mxu0
        %1237 = vdwg.mxu0
        %v1238 = vmul.f32 %v1233, 0.35355338
        %v1239 = vadd.f32 %v1238, %v961
        %v1240 = vsel %vm966, %v1239, -inf
        %1241 = vmax.xlane.f32.xlu0 %v1240
        %v1242 = vpop.xlane.xlu0 %1241
        %v1243 = vsub.f32 %v1239, %v1242
        %v1244 = vmul.f32 %v1243, 1.442695
        %v1245 = vpow.pop %v1244
        %v1246 = vsel %vm966, %v1245, 0.0
        %1247 = vadd.xlane.f32.xlu0 %v1246
        %v1248 = vpop.xlane.xlu0 %1247
        %v1249 = vrcp.pop %v1248
        %v1250 = vpack.c.bf16 %v1245, %v1245
        %1251 = vrot.lane.b32.xlu0 %v962, 48
        %v1252 = vpop.permute.xlu0 %1251
        %v1254 = vsel %vm966, %v1250, 0
        %v1257 = vsel %vm1031, %v1252, 0
        %1259 = vmatprep.subr.bf16.mxu0 0
        %1260 = vmatpush1.bf16.msra.mxu0 %v1257
        %1261 = vmatprep.subr.bf16.mxu0 0
        %1262 = vmatpush1.bf16.msra.mxu0 0
        %1263 = vmatprep.subr.bf16.mxu0 0
        %1264 = vmatpush1.bf16.msra.mxu0 0
        %1265 = vmatprep.subr.bf16.mxu0 0
        %1266 = vmatpush1.bf16.msra.mxu0 0
        %1267 = vmatprep.subr.bf16.mxu0 0
        %1268 = vmatpush1.bf16.msra.mxu0 0
        %1269 = vmatprep.subr.bf16.mxu0 0
        %1270 = vmatpush1.bf16.msra.mxu0 0
        %1271 = vmatprep.subr.bf16.mxu0 0
        %1272 = vmatpush1.bf16.msra.mxu0 0
        %1273 = vmatprep.subr.bf16.mxu0 0
        %1274 = vmatpush1.bf16.msra.mxu0 0
        %1275 = vmatprep.subr.bf16.mxu0 0
        %1276 = vmatpush1.bf16.msra.mxu0 0
        %1277 = vmatprep.subr.bf16.mxu0 0
        %1278 = vmatpush1.bf16.msra.mxu0 0
        %1279 = vmatprep.subr.bf16.mxu0 0
        %1280 = vmatpush1.bf16.msra.mxu0 0
        %1281 = vmatprep.subr.bf16.mxu0 0
        %1282 = vmatpush1.bf16.msra.mxu0 0
        %1283 = vmatprep.subr.bf16.mxu0 0
        %1284 = vmatpush1.bf16.msra.mxu0 0
        %1285 = vmatprep.subr.bf16.mxu0 0
        %1286 = vmatpush1.bf16.msra.mxu0 0
        %1287 = vmatprep.subr.bf16.mxu0 0
        %1288 = vmatpush1.bf16.msra.mxu0 0
        %1289 = vmatprep.subr.bf16.mxu0 0
        %1290 = vmatpush1.bf16.msra.mxu0 0
        %1291 = vmatprep.mubr.bf16.mxu0 0
        %1292 = vmatmul.mubr.bf16.gmra.mrb[0].mxu0 %v1254
        %v1293 = vpop.f32.mrb[0].mxu0
        %v1294 = vadd.f32 0.0, %v1293
        %v1295 = vpop.f32.mrb[0].mxu0
        %v1296 = vpop.f32.mrb[0].mxu0
        %v1297 = vpop.f32.mrb[0].mxu0
        %1298 = vdwg.mxu0
        %v1299 = vmul.f32 %v1294, %v1249
        %1300 = vrot.lane.b32.xlu0 %v962, 104
        %v1301 = vpop.permute.xlu0 %1300
        %1302 = vrot.lane.b32.xlu0 %v962, 72
        %v1303 = vpop.permute.xlu0 %1302
        %v1305 = vsel %vm966, %v1301, 0
        %v1308 = vsel %vm966, %v1303, 0
        %1310 = vmatprep.subr.bf16.mxu0 0
        %1311 = vmatpush1.bf16.xpose.msra.mxu0 %v1308
        %1312 = vmatprep.subr.bf16.mxu0 0
        %1313 = vmatpush1.bf16.xpose.msra.mxu0 0
        %1314 = vmatprep.subr.bf16.mxu0 0
        %1315 = vmatpush1.bf16.xpose.msra.mxu0 0
        %1316 = vmatprep.subr.bf16.mxu0 0
        %1317 = vmatpush1.bf16.xpose.msra.mxu0 0
        %1318 = vmatprep.subr.bf16.mxu0 0
        %1319 = vmatpush1.bf16.xpose.msra.mxu0 0
        %1320 = vmatprep.subr.bf16.mxu0 0
        %1321 = vmatpush1.bf16.xpose.msra.mxu0 0
        %1322 = vmatprep.subr.bf16.mxu0 0
        %1323 = vmatpush1.bf16.xpose.msra.mxu0 0
        %1324 = vmatprep.subr.bf16.mxu0 0
        %1325 = vmatpush1.bf16.xpose.msra.mxu0 0
        %1326 = vmatprep.subr.bf16.mxu0 0
        %1327 = vmatpush1.bf16.xpose.msra.mxu0 0
        %1328 = vmatprep.subr.bf16.mxu0 0
        %1329 = vmatpush1.bf16.xpose.msra.mxu0 0
        %1330 = vmatprep.subr.bf16.mxu0 0
        %1331 = vmatpush1.bf16.xpose.msra.mxu0 0
        %1332 = vmatprep.subr.bf16.mxu0 0
        %1333 = vmatpush1.bf16.xpose.msra.mxu0 0
        %1334 = vmatprep.subr.bf16.mxu0 0
        %1335 = vmatpush1.bf16.xpose.msra.mxu0 0
        %1336 = vmatprep.subr.bf16.mxu0 0
        %1337 = vmatpush1.bf16.xpose.msra.mxu0 0
        %1338 = vmatprep.subr.bf16.mxu0 0
        %1339 = vmatpush1.bf16.xpose.msra.mxu0 0
        %1340 = vmatprep.subr.bf16.mxu0 0
        %1341 = vmatpush1.bf16.xpose.msra.mxu0 0
        %1342 = vmatprep.mubr.bf16.mxu0 0
        %1343 = vmatmul.mubr.bf16.gmra.mrb[0].mxu0 %v1305
        %v1344 = vpop.f32.mrb[0].mxu0
        %v1345 = vadd.f32 0.0, %v1344
        %v1346 = vpop.f32.mrb[0].mxu0
        %v1347 = vpop.f32.mrb[0].mxu0
        %v1348 = vpop.f32.mrb[0].mxu0
        %1349 = vdwg.mxu0
        %v1350 = vmul.f32 %v1345, 0.35355338
        %v1351 = vadd.f32 %v1350, %v961
        %v1352 = vsel %vm966, %v1351, -inf
        %1353 = vmax.xlane.f32.xlu0 %v1352
        %v1354 = vpop.xlane.xlu0 %1353
        %v1355 = vsub.f32 %v1351, %v1354
        %v1356 = vmul.f32 %v1355, 1.442695
        %v1357 = vpow.pop %v1356
        %v1358 = vsel %vm966, %v1357, 0.0
        %1359 = vadd.xlane.f32.xlu0 %v1358
        %v1360 = vpop.xlane.xlu0 %1359
        %v1361 = vrcp.pop %v1360
        %v1362 = vpack.c.bf16 %v1357, %v1357
        %1363 = vrot.lane.b32.xlu0 %v962, 40
        %v1364 = vpop.permute.xlu0 %1363
        %v1366 = vsel %vm966, %v1362, 0
        %v1369 = vsel %vm1031, %v1364, 0
        %1371 = vmatprep.subr.bf16.mxu0 0
        %1372 = vmatpush1.bf16.msra.mxu0 %v1369
        %1373 = vmatprep.subr.bf16.mxu0 0
        %1374 = vmatpush1.bf16.msra.mxu0 0
        %1375 = vmatprep.subr.bf16.mxu0 0
        %1376 = vmatpush1.bf16.msra.mxu0 0
        %1377 = vmatprep.subr.bf16.mxu0 0
        %1378 = vmatpush1.bf16.msra.mxu0 0
        %1379 = vmatprep.subr.bf16.mxu0 0
        %1380 = vmatpush1.bf16.msra.mxu0 0
        %1381 = vmatprep.subr.bf16.mxu0 0
        %1382 = vmatpush1.bf16.msra.mxu0 0
        %1383 = vmatprep.subr.bf16.mxu0 0
        %1384 = vmatpush1.bf16.msra.mxu0 0
        %1385 = vmatprep.subr.bf16.mxu0 0
        %1386 = vmatpush1.bf16.msra.mxu0 0
        %1387 = vmatprep.subr.bf16.mxu0 0
        %1388 = vmatpush1.bf16.msra.mxu0 0
        %1389 = vmatprep.subr.bf16.mxu0 0
        %1390 = vmatpush1.bf16.msra.mxu0 0
        %1391 = vmatprep.subr.bf16.mxu0 0
        %1392 = vmatpush1.bf16.msra.mxu0 0
        %1393 = vmatprep.subr.bf16.mxu0 0
        %1394 = vmatpush1.bf16.msra.mxu0 0
        %1395 = vmatprep.subr.bf16.mxu0 0
        %1396 = vmatpush1.bf16.msra.mxu0 0
        %1397 = vmatprep.subr.bf16.mxu0 0
        %1398 = vmatpush1.bf16.msra.mxu0 0
        %1399 = vmatprep.subr.bf16.mxu0 0
        %1400 = vmatpush1.bf16.msra.mxu0 0
        %1401 = vmatprep.subr.bf16.mxu0 0
        %1402 = vmatpush1.bf16.msra.mxu0 0
        %1403 = vmatprep.mubr.bf16.mxu0 0
        %1404 = vmatmul.mubr.bf16.gmra.mrb[0].mxu0 %v1366
        %v1405 = vpop.f32.mrb[0].mxu0
        %v1406 = vadd.f32 0.0, %v1405
        %v1407 = vpop.f32.mrb[0].mxu0
        %v1408 = vpop.f32.mrb[0].mxu0
        %v1409 = vpop.f32.mrb[0].mxu0
        %1410 = vdwg.mxu0
        %v1411 = vmul.f32 %v1406, %v1361
        %1413 = vrot.lane.b32.xlu0 %v1187, 8
        %v1414 = vpop.permute.xlu0 %1413
        %1417 = vrot.lane.b32.xlu0 %v1299, 16
        %v1418 = vpop.permute.xlu0 %1417
        %1421 = vrot.lane.b32.xlu0 %v1411, 24
        %v1422 = vpop.permute.xlu0 %1421
        %v1424 = vsel %vm966, %v1075, %v1414
        %vm1425 = vcmask 130048
        %v1426 = vsel %vm1425, %v1424, %v1418
        %vm1427 = vcmask 195584
        %v1428 = vsel %vm1427, %v1426, %v1422
        %v1429 = vpack.c.bf16 %v1428, %v1428
        %v1430 = vld [vmem:[#allocation7] sm:$0xf]
        %v1431 = vld [vmem:[#allocation7 + $0x4] sm:$0xf]
        %v1432 = vld [vmem:[#allocation7 + $0x8] sm:$0xf]
        %v1433 = vld [vmem:[#allocation7 + $0xc] sm:$0xf]
        %v1434 = vld [vmem:[#allocation8] sm:$0x1]
        %v1436 = vlaneseq
        %v1437 = vshrl.u32 %v1436, 7
        %v1438 = vsub.s32 0, %v1437
        %v1439 = vrot.slane %v1434, %v1438
        %v1445 = vunpack.c.l.b16 %v1430
        %v1446 = vunpack.c.l.b16 %v1431
        %v1447 = vunpack.c.l.b16 %v1432
        %v1448 = vunpack.c.l.b16 %v1433
        %v1449 = vpack.c.b16 %v1446, %v1445
        %v1450 = vpack.c.b16 %v1448, %v1447
        %v1454 = vsel %vm917, %v1429, 0
        %1456 = vmatprep.subr.bf16.mxu0 0
        %1457 = vmatpush1.bf16.msra.mxu0 %v1449
        %1458 = vmatprep.subr.bf16.mxu0 0
        %1459 = vmatpush1.bf16.msra.mxu0 %v1450
        %1460 = vmatprep.subr.bf16.mxu0 0
        %1461 = vmatpush1.bf16.msra.mxu0 0
        %1462 = vmatprep.subr.bf16.mxu0 0
        %1463 = vmatpush1.bf16.msra.mxu0 0
        %1464 = vmatprep.subr.bf16.mxu0 0
        %1465 = vmatpush1.bf16.msra.mxu0 0
        %1466 = vmatprep.subr.bf16.mxu0 0
        %1467 = vmatpush1.bf16.msra.mxu0 0
        %1468 = vmatprep.subr.bf16.mxu0 0
        %1469 = vmatpush1.bf16.msra.mxu0 0
        %1470 = vmatprep.subr.bf16.mxu0 0
        %1471 = vmatpush1.bf16.msra.mxu0 0
        %1472 = vmatprep.subr.bf16.mxu0 0
        %1473 = vmatpush1.bf16.msra.mxu0 0
        %1474 = vmatprep.subr.bf16.mxu0 0
        %1475 = vmatpush1.bf16.msra.mxu0 0
        %1476 = vmatprep.subr.bf16.mxu0 0
        %1477 = vmatpush1.bf16.msra.mxu0 0
        %1478 = vmatprep.subr.bf16.mxu0 0
        %1479 = vmatpush1.bf16.msra.mxu0 0
        %1480 = vmatprep.subr.bf16.mxu0 0
        %1481 = vmatpush1.bf16.msra.mxu0 0
        %1482 = vmatprep.subr.bf16.mxu0 0
        %1483 = vmatpush1.bf16.msra.mxu0 0
        %1484 = vmatprep.subr.bf16.mxu0 0
        %1485 = vmatpush1.bf16.msra.mxu0 0
        %1486 = vmatprep.subr.bf16.mxu0 0
        %1487 = vmatpush1.bf16.msra.mxu0 0
        %1488 = vmatprep.mubr.bf16.mxu0 0
        %1489 = vmatmul.mubr.bf16.gmra.mrb[0].mxu0 %v1454
        %v1490 = vpop.f32.mrb[0].mxu0
        %v1491 = vadd.f32 %v1439, %v1490
        %v1492 = vpop.f32.mrb[0].mxu0
        %v1493 = vpop.f32.mrb[0].mxu0
        %v1494 = vpop.f32.mrb[0].mxu0
        %1495 = vdwg.mxu0
        %v1496 = vadd.f32 %v891, %v1491
        %v1497 = vld [vmem:[%s18] sm:$0x1]
        %v1498 = vld [vmem:[%s19] sm:$0x1]
        %v1499 = vsel %vm917, %v1496, 0.0
        %1500 = vadd.xlane.f32.xlu0 %v1499
        %v1501 = vpop.xlane.xlu0 %1500
        %v1502 = vrcp.pop 32.0
        %v1503 = vmul.f32 %v1501, %v1502
        %v1504 = vsub.f32 %v1496, %v1503
        %v1505 = vmul.f32 %v1504, %v1504
        %v1506 = vsel %vm917, %v1505, 0.0
        %1507 = vadd.xlane.f32.xlu0 %v1506
        %v1508 = vpop.xlane.xlu0 %1507
        %v1509 = vmul.f32 %v1508, %v1502
        %v1510 = vadd.f32 %v1509, 1e-06
        %v1511 = vrsqrt.pop %v1510
        %v1512 = vmul.f32 %v1504, %v1511
        %v1514 = vlaneseq
        %v1515 = vshrl.u32 %v1514, 7
        %v1516 = vsub.s32 0, %v1515
        %v1517 = vrot.slane %v1497, %v1516
        %v1519 = vmul.f32 %v1512, %v1517
        %v1521 = vlaneseq
        %v1522 = vshrl.u32 %v1521, 7
        %v1523 = vsub.s32 0, %v1522
        %v1524 = vrot.slane %v1498, %v1523
        %v1526 = vadd.f32 %v1519, %v1524
        %v1527 = vpack.c.bf16 %v1526, %v1526
        %v1528 = vld [vmem:[#allocation10] sm:$0xf]
        %v1529 = vld [vmem:[#allocation10 + $0x4] sm:$0xf]
        %v1530 = vld [vmem:[#allocation10 + $0x8] sm:$0xf]
        %v1531 = vld [vmem:[#allocation10 + $0xc] sm:$0xf]
        %v1532 = vld [vmem:[#allocation11] sm:$0x1]
        %v1534 = vlaneseq
        %v1535 = vshrl.u32 %v1534, 7
        %v1536 = vsub.s32 0, %v1535
        %v1537 = vrot.slane %v1532, %v1536
        %v1543 = vunpack.c.l.b16 %v1528
        %v1544 = vunpack.c.l.b16 %v1529
        %v1545 = vunpack.c.l.b16 %v1530
        %v1546 = vunpack.c.l.b16 %v1531
        %v1547 = vpack.c.b16 %v1544, %v1543
        %v1548 = vpack.c.b16 %v1546, %v1545
        %v1552 = vsel %vm917, %v1527, 0
        %1554 = vmatprep.subr.bf16.mxu0 0
        %1555 = vmatpush1.bf16.msra.mxu0 %v1547
        %1556 = vmatprep.subr.bf16.mxu0 0
        %1557 = vmatpush1.bf16.msra.mxu0 %v1548
        %1558 = vmatprep.subr.bf16.mxu0 0
        %1559 = vmatpush1.bf16.msra.mxu0 0
        %1560 = vmatprep.subr.bf16.mxu0 0
        %1561 = vmatpush1.bf16.msra.mxu0 0
        %1562 = vmatprep.subr.bf16.mxu0 0
        %1563 = vmatpush1.bf16.msra.mxu0 0
        %1564 = vmatprep.subr.bf16.mxu0 0
        %1565 = vmatpush1.bf16.msra.mxu0 0
        %1566 = vmatprep.subr.bf16.mxu0 0
        %1567 = vmatpush1.bf16.msra.mxu0 0
        %1568 = vmatprep.subr.bf16.mxu0 0
        %1569 = vmatpush1.bf16.msra.mxu0 0
        %1570 = vmatprep.subr.bf16.mxu0 0
        %1571 = vmatpush1.bf16.msra.mxu0 0
        %1572 = vmatprep.subr.bf16.mxu0 0
        %1573 = vmatpush1.bf16.msra.mxu0 0
        %1574 = vmatprep.subr.bf16.mxu0 0
        %1575 = vmatpush1.bf16.msra.mxu0 0
        %1576 = vmatprep.subr.bf16.mxu0 0
        %1577 = vmatpush1.bf16.msra.mxu0 0
        %1578 = vmatprep.subr.bf16.mxu0 0
        %1579 = vmatpush1.bf16.msra.mxu0 0
        %1580 = vmatprep.subr.bf16.mxu0 0
        %1581 = vmatpush1.bf16.msra.mxu0 0
        %1582 = vmatprep.subr.bf16.mxu0 0
        %1583 = vmatpush1.bf16.msra.mxu0 0
        %1584 = vmatprep.subr.bf16.mxu0 0
        %1585 = vmatpush1.bf16.msra.mxu0 0
        %1586 = vmatprep.mubr.bf16.mxu0 0
        %1587 = vmatmul.mubr.bf16.gmra.mrb[0].mxu0 %v1552
        %v1588 = vpop.f32.mrb[0].mxu0
        %v1589 = vadd.f32 %v1537, %v1588
        %v1590 = vpop.f32.mrb[0].mxu0
        %v1591 = vpop.f32.mrb[0].mxu0
        %v1592 = vpop.f32.mrb[0].mxu0
        %1593 = vdwg.mxu0
        %v1594 = vpack.c.bf16 %v892, %v892
        %v1595 = vld [vmem:[%s10] sm:$0xf]
        %v1596 = vld [vmem:[%s10 + $0x4] sm:$0xf]
        %v1597 = vld [vmem:[%s10 + $0x8] sm:$0xf]
        %v1598 = vld [vmem:[%s10 + $0xc] sm:$0xf]
        %v1599 = vld [vmem:[#allocation13] sm:$0x1]
        %v1601 = vlaneseq
        %v1602 = vshrl.u32 %v1601, 7
        %v1603 = vsub.s32 0, %v1602
        %v1604 = vrot.slane %v1599, %v1603
        %v1610 = vunpack.c.l.b16 %v1595
        %v1611 = vunpack.c.l.b16 %v1596
        %v1612 = vunpack.c.l.b16 %v1597
        %v1613 = vunpack.c.l.b16 %v1598
        %v1614 = vpack.c.b16 %v1611, %v1610
        %v1615 = vpack.c.b16 %v1613, %v1612
        %v1619 = vsel %vm917, %v1594, 0
        %1621 = vmatprep.subr.bf16.mxu0 0
        %1622 = vmatpush1.bf16.msra.mxu0 %v1614
        %1623 = vmatprep.subr.bf16.mxu0 0
        %1624 = vmatpush1.bf16.msra.mxu0 %v1615
        %1625 = vmatprep.subr.bf16.mxu0 0
        %1626 = vmatpush1.bf16.msra.mxu0 0
        %1627 = vmatprep.subr.bf16.mxu0 0
        %1628 = vmatpush1.bf16.msra.mxu0 0
        %1629 = vmatprep.subr.bf16.mxu0 0
        %1630 = vmatpush1.bf16.msra.mxu0 0
        %1631 = vmatprep.subr.bf16.mxu0 0
        %1632 = vmatpush1.bf16.msra.mxu0 0
        %1633 = vmatprep.subr.bf16.mxu0 0
        %1634 = vmatpush1.bf16.msra.mxu0 0
        %1635 = vmatprep.subr.bf16.mxu0 0
        %1636 = vmatpush1.bf16.msra.mxu0 0
        %1637 = vmatprep.subr.bf16.mxu0 0
        %1638 = vmatpush1.bf16.msra.mxu0 0
        %1639 = vmatprep.subr.bf16.mxu0 0
        %1640 = vmatpush1.bf16.msra.mxu0 0
        %1641 = vmatprep.subr.bf16.mxu0 0
        %1642 = vmatpush1.bf16.msra.mxu0 0
        %1643 = vmatprep.subr.bf16.mxu0 0
        %1644 = vmatpush1.bf16.msra.mxu0 0
        %1645 = vmatprep.subr.bf16.mxu0 0
        %1646 = vmatpush1.bf16.msra.mxu0 0
        %1647 = vmatprep.subr.bf16.mxu0 0
        %1648 = vmatpush1.bf16.msra.mxu0 0
        %1649 = vmatprep.subr.bf16.mxu0 0
        %1650 = vmatpush1.bf16.msra.mxu0 0
        %1651 = vmatprep.subr.bf16.mxu0 0
        %1652 = vmatpush1.bf16.msra.mxu0 0
        %1653 = vmatprep.mubr.bf16.mxu0 0
        %1654 = vmatmul.mubr.bf16.gmra.mrb[0].mxu0 %v1619
        %v1655 = vpop.f32.mrb[0].mxu0
        %v1656 = vadd.f32 %v1604, %v1655
        %v1657 = vpop.f32.mrb[0].mxu0
        %v1658 = vpop.f32.mrb[0].mxu0
        %v1659 = vpop.f32.mrb[0].mxu0
        %1660 = vdwg.mxu0
        %v1661 = vld [vmem:[%s782] sm:$0x1]
        %v1662 = vpack.c.bf16 %v1589, %v1589
        %v1663 = vpack.c.bf16 %v1656, %v1656
        %v1665 = vsel %vm966, %v1662, 0
        %v1668 = vsel %vm966, %v1663, 0
        %1670 = vmatprep.subr.bf16.mxu0 0
        %1671 = vmatpush1.bf16.xpose.msra.mxu0 %v1668
        %1672 = vmatprep.subr.bf16.mxu0 0
        %1673 = vmatpush1.bf16.xpose.msra.mxu0 0
        %1674 = vmatprep.subr.bf16.mxu0 0
        %1675 = vmatpush1.bf16.xpose.msra.mxu0 0
        %1676 = vmatprep.subr.bf16.mxu0 0
        %1677 = vmatpush1.bf16.xpose.msra.mxu0 0
        %1678 = vmatprep.subr.bf16.mxu0 0
        %1679 = vmatpush1.bf16.xpose.msra.mxu0 0
        %1680 = vmatprep.subr.bf16.mxu0 0
        %1681 = vmatpush1.bf16.xpose.msra.mxu0 0
        %1682 = vmatprep.subr.bf16.mxu0 0
        %1683 = vmatpush1.bf16.xpose.msra.mxu0 0
        %1684 = vmatprep.subr.bf16.mxu0 0
        %1685 = vmatpush1.bf16.xpose.msra.mxu0 0
        %1686 = vmatprep.subr.bf16.mxu0 0
        %1687 = vmatpush1.bf16.xpose.msra.mxu0 0
        %1688 = vmatprep.subr.bf16.mxu0 0
        %1689 = vmatpush1.bf16.xpose.msra.mxu0 0
        %1690 = vmatprep.subr.bf16.mxu0 0
        %1691 = vmatpush1.bf16.xpose.msra.mxu0 0
        %1692 = vmatprep.subr.bf16.mxu0 0
        %1693 = vmatpush1.bf16.xpose.msra.mxu0 0
        %1694 = vmatprep.subr.bf16.mxu0 0
        %1695 = vmatpush1.bf16.xpose.msra.mxu0 0
        %1696 = vmatprep.subr.bf16.mxu0 0
        %1697 = vmatpush1.bf16.xpose.msra.mxu0 0
        %1698 = vmatprep.subr.bf16.mxu0 0
        %1699 = vmatpush1.bf16.xpose.msra.mxu0 0
        %1700 = vmatprep.subr.bf16.mxu0 0
        %1701 = vmatpush1.bf16.xpose.msra.mxu0 0
        %1702 = vmatprep.mubr.bf16.mxu0 0
        %1703 = vmatmul.mubr.bf16.gmra.mrb[0].mxu0 %v1665
        %v1704 = vpop.f32.mrb[0].mxu0
        %v1705 = vadd.f32 0.0, %v1704
        %v1706 = vpop.f32.mrb[0].mxu0
        %v1707 = vpop.f32.mrb[0].mxu0
        %v1708 = vpop.f32.mrb[0].mxu0
        %1709 = vdwg.mxu0
        %v1710 = vmul.f32 %v1705, 0.35355338
        %v1712 = vlaneseq
        %v1713 = vshrl.u32 %v1712, 7
        %v1714 = vsub.s32 0, %v1713
        %v1715 = vrot.slane %v1661, %v1714
        %v1717 = vadd.f32 %v1710, %v1715
        %v1718 = vsel %vm966, %v1717, -inf
        %1719 = vmax.xlane.f32.xlu0 %v1718
        %v1720 = vpop.xlane.xlu0 %1719
        %v1721 = vsub.f32 %v1717, %v1720
        %v1722 = vmul.f32 %v1721, 1.442695
        %v1723 = vpow.pop %v1722
        %v1724 = vsel %vm966, %v1723, 0.0
        %1725 = vadd.xlane.f32.xlu0 %v1724
        %v1726 = vpop.xlane.xlu0 %1725
        %v1727 = vrcp.pop %v1726
        %v1728 = vpack.c.bf16 %v1723, %v1723
        %1730 = vrot.lane.b32.xlu0 %v1663, 96
        %v1731 = vpop.permute.xlu0 %1730
        %v1733 = vsel %vm966, %v1728, 0
        %v1736 = vsel %vm1031, %v1731, 0
        %1738 = vmatprep.subr.bf16.mxu0 0
        %1739 = vmatpush1.bf16.msra.mxu0 %v1736
        %1740 = vmatprep.subr.bf16.mxu0 0
        %1741 = vmatpush1.bf16.msra.mxu0 0
        %1742 = vmatprep.subr.bf16.mxu0 0
        %1743 = vmatpush1.bf16.msra.mxu0 0
        %1744 = vmatprep.subr.bf16.mxu0 0
        %1745 = vmatpush1.bf16.msra.mxu0 0
        %1746 = vmatprep.subr.bf16.mxu0 0
        %1747 = vmatpush1.bf16.msra.mxu0 0
        %1748 = vmatprep.subr.bf16.mxu0 0
        %1749 = vmatpush1.bf16.msra.mxu0 0
        %1750 = vmatprep.subr.bf16.mxu0 0
        %1751 = vmatpush1.bf16.msra.mxu0 0
        %1752 = vmatprep.subr.bf16.mxu0 0
        %1753 = vmatpush1.bf16.msra.mxu0 0
        %1754 = vmatprep.subr.bf16.mxu0 0
        %1755 = vmatpush1.bf16.msra.mxu0 0
        %1756 = vmatprep.subr.bf16.mxu0 0
        %1757 = vmatpush1.bf16.msra.mxu0 0
        %1758 = vmatprep.subr.bf16.mxu0 0
        %1759 = vmatpush1.bf16.msra.mxu0 0
        %1760 = vmatprep.subr.bf16.mxu0 0
        %1761 = vmatpush1.bf16.msra.mxu0 0
        %1762 = vmatprep.subr.bf16.mxu0 0
        %1763 = vmatpush1.bf16.msra.mxu0 0
        %1764 = vmatprep.subr.bf16.mxu0 0
        %1765 = vmatpush1.bf16.msra.mxu0 0
        %1766 = vmatprep.subr.bf16.mxu0 0
        %1767 = vmatpush1.bf16.msra.mxu0 0
        %1768 = vmatprep.subr.bf16.mxu0 0
        %1769 = vmatpush1.bf16.msra.mxu0 0
        %1770 = vmatprep.mubr.bf16.mxu0 0
        %1771 = vmatmul.mubr.bf16.gmra.mrb[0].mxu0 %v1733
        %v1772 = vpop.f32.mrb[0].mxu0
        %v1773 = vadd.f32 0.0, %v1772
        %v1774 = vpop.f32.mrb[0].mxu0
        %v1775 = vpop.f32.mrb[0].mxu0
        %v1776 = vpop.f32.mrb[0].mxu0
        %1777 = vdwg.mxu0
        %v1778 = vmul.f32 %v1773, %v1727
        %1780 = vrot.lane.b32.xlu0 %v1662, 120
        %v1781 = vpop.permute.xlu0 %1780
        %1782 = vrot.lane.b32.xlu0 %v1663, 120
        %v1783 = vpop.permute.xlu0 %1782
        %v1785 = vsel %vm966, %v1781, 0
        %v1788 = vsel %vm966, %v1783, 0
        %1790 = vmatprep.subr.bf16.mxu0 0
        %1791 = vmatpush1.bf16.xpose.msra.mxu0 %v1788
        %1792 = vmatprep.subr.bf16.mxu0 0
        %1793 = vmatpush1.bf16.xpose.msra.mxu0 0
        %1794 = vmatprep.subr.bf16.mxu0 0
        %1795 = vmatpush1.bf16.xpose.msra.mxu0 0
        %1796 = vmatprep.subr.bf16.mxu0 0
        %1797 = vmatpush1.bf16.xpose.msra.mxu0 0
        %1798 = vmatprep.subr.bf16.mxu0 0
        %1799 = vmatpush1.bf16.xpose.msra.mxu0 0
        %1800 = vmatprep.subr.bf16.mxu0 0
        %1801 = vmatpush1.bf16.xpose.msra.mxu0 0
        %1802 = vmatprep.subr.bf16.mxu0 0
        %1803 = vmatpush1.bf16.xpose.msra.mxu0 0
        %1804 = vmatprep.subr.bf16.mxu0 0
        %1805 = vmatpush1.bf16.xpose.msra.mxu0 0
        %1806 = vmatprep.subr.bf16.mxu0 0
        %1807 = vmatpush1.bf16.xpose.msra.mxu0 0
        %1808 = vmatprep.subr.bf16.mxu0 0
        %1809 = vmatpush1.bf16.xpose.msra.mxu0 0
        %1810 = vmatprep.subr.bf16.mxu0 0
        %1811 = vmatpush1.bf16.xpose.msra.mxu0 0
        %1812 = vmatprep.subr.bf16.mxu0 0
        %1813 = vmatpush1.bf16.xpose.msra.mxu0 0
        %1814 = vmatprep.subr.bf16.mxu0 0
        %1815 = vmatpush1.bf16.xpose.msra.mxu0 0
        %1816 = vmatprep.subr.bf16.mxu0 0
        %1817 = vmatpush1.bf16.xpose.msra.mxu0 0
        %1818 = vmatprep.subr.bf16.mxu0 0
        %1819 = vmatpush1.bf16.xpose.msra.mxu0 0
        %1820 = vmatprep.subr.bf16.mxu0 0
        %1821 = vmatpush1.bf16.xpose.msra.mxu0 0
        %1822 = vmatprep.mubr.bf16.mxu0 0
        %1823 = vmatmul.mubr.bf16.gmra.mrb[0].mxu0 %v1785
        %v1824 = vpop.f32.mrb[0].mxu0
        %v1825 = vadd.f32 0.0, %v1824
        %v1826 = vpop.f32.mrb[0].mxu0
        %v1827 = vpop.f32.mrb[0].mxu0
        %v1828 = vpop.f32.mrb[0].mxu0
        %1829 = vdwg.mxu0
        %v1830 = vmul.f32 %v1825, 0.35355338
        %v1831 = vadd.f32 %v1830, %v1715
        %v1832 = vsel %vm966, %v1831, -inf
        %1833 = vmax.xlane.f32.xlu0 %v1832
        %v1834 = vpop.xlane.xlu0 %1833
        %v1835 = vsub.f32 %v1831, %v1834
        %v1836 = vmul.f32 %v1835, 1.442695
        %v1837 = vpow.pop %v1836
        %v1838 = vsel %vm966, %v1837, 0.0
        %1839 = vadd.xlane.f32.xlu0 %v1838
        %v1840 = vpop.xlane.xlu0 %1839
        %v1841 = vrcp.pop %v1840
        %v1842 = vpack.c.bf16 %v1837, %v1837
        %1843 = vrot.lane.b32.xlu0 %v1663, 88
        %v1844 = vpop.permute.xlu0 %1843
        %v1846 = vsel %vm966, %v1842, 0
        %v1849 = vsel %vm1031, %v1844, 0
        %1851 = vmatprep.subr.bf16.mxu0 0
        %1852 = vmatpush1.bf16.msra.mxu0 %v1849
        %1853 = vmatprep.subr.bf16.mxu0 0
        %1854 = vmatpush1.bf16.msra.mxu0 0
        %1855 = vmatprep.subr.bf16.mxu0 0
        %1856 = vmatpush1.bf16.msra.mxu0 0
        %1857 = vmatprep.subr.bf16.mxu0 0
        %1858 = vmatpush1.bf16.msra.mxu0 0
        %1859 = vmatprep.subr.bf16.mxu0 0
        %1860 = vmatpush1.bf16.msra.mxu0 0
        %1861 = vmatprep.subr.bf16.mxu0 0
        %1862 = vmatpush1.bf16.msra.mxu0 0
        %1863 = vmatprep.subr.bf16.mxu0 0
        %1864 = vmatpush1.bf16.msra.mxu0 0
        %1865 = vmatprep.subr.bf16.mxu0 0
        %1866 = vmatpush1.bf16.msra.mxu0 0
        %1867 = vmatprep.subr.bf16.mxu0 0
        %1868 = vmatpush1.bf16.msra.mxu0 0
        %1869 = vmatprep.subr.bf16.mxu0 0
        %1870 = vmatpush1.bf16.msra.mxu0 0
        %1871 = vmatprep.subr.bf16.mxu0 0
        %1872 = vmatpush1.bf16.msra.mxu0 0
        %1873 = vmatprep.subr.bf16.mxu0 0
        %1874 = vmatpush1.bf16.msra.mxu0 0
        %1875 = vmatprep.subr.bf16.mxu0 0
        %1876 = vmatpush1.bf16.msra.mxu0 0
        %1877 = vmatprep.subr.bf16.mxu0 0
        %1878 = vmatpush1.bf16.msra.mxu0 0
        %1879 = vmatprep.subr.bf16.mxu0 0
        %1880 = vmatpush1.bf16.msra.mxu0 0
        %1881 = vmatprep.subr.bf16.mxu0 0
        %1882 = vmatpush1.bf16.msra.mxu0 0
        %1883 = vmatprep.mubr.bf16.mxu0 0
        %1884 = vmatmul.mubr.bf16.gmra.mrb[0].mxu0 %v1846
        %v1885 = vpop.f32.mrb[0].mxu0
        %v1886 = vadd.f32 0.0, %v1885
        %v1887 = vpop.f32.mrb[0].mxu0
        %v1888 = vpop.f32.mrb[0].mxu0
        %v1889 = vpop.f32.mrb[0].mxu0
        %1890 = vdwg.mxu0
        %v1891 = vmul.f32 %v1886, %v1841
        %1892 = vrot.lane.b32.xlu0 %v1662, 112
        %v1893 = vpop.permute.xlu0 %1892
        %1894 = vrot.lane.b32.xlu0 %v1663, 112
        %v1895 = vpop.permute.xlu0 %1894
        %v1897 = vsel %vm966, %v1893, 0
        %v1900 = vsel %vm966, %v1895, 0
        %1902 = vmatprep.subr.bf16.mxu0 0
        %1903 = vmatpush1.bf16.xpose.msra.mxu0 %v1900
        %1904 = vmatprep.subr.bf16.mxu0 0
        %1905 = vmatpush1.bf16.xpose.msra.mxu0 0
        %1906 = vmatprep.subr.bf16.mxu0 0
        %1907 = vmatpush1.bf16.xpose.msra.mxu0 0
        %1908 = vmatprep.subr.bf16.mxu0 0
        %1909 = vmatpush1.bf16.xpose.msra.mxu0 0
        %1910 = vmatprep.subr.bf16.mxu0 0
        %1911 = vmatpush1.bf16.xpose.msra.mxu0 0
        %1912 = vmatprep.subr.bf16.mxu0 0
        %1913 = vmatpush1.bf16.xpose.msra.mxu0 0
        %1914 = vmatprep.subr.bf16.mxu0 0
        %1915 = vmatpush1.bf16.xpose.msra.mxu0 0
        %1916 = vmatprep.subr.bf16.mxu0 0
        %1917 = vmatpush1.bf16.xpose.msra.mxu0 0
        %1918 = vmatprep.subr.bf16.mxu0 0
        %1919 = vmatpush1.bf16.xpose.msra.mxu0 0
        %1920 = vmatprep.subr.bf16.mxu0 0
        %1921 = vmatpush1.bf16.xpose.msra.mxu0 0
        %1922 = vmatprep.subr.bf16.mxu0 0
        %1923 = vmatpush1.bf16.xpose.msra.mxu0 0
        %1924 = vmatprep.subr.bf16.mxu0 0
        %1925 = vmatpush1.bf16.xpose.msra.mxu0 0
        %1926 = vmatprep.subr.bf16.mxu0 0
        %1927 = vmatpush1.bf16.xpose.msra.mxu0 0
        %1928 = vmatprep.subr.bf16.mxu0 0
        %1929 = vmatpush1.bf16.xpose.msra.mxu0 0
        %1930 = vmatprep.subr.bf16.mxu0 0
        %1931 = vmatpush1.bf16.xpose.msra.mxu0 0
        %1932 = vmatprep.subr.bf16.mxu0 0
        %1933 = vmatpush1.bf16.xpose.msra.mxu0 0
        %1934 = vmatprep.mubr.bf16.mxu0 0
        %1935 = vmatmul.mubr.bf16.gmra.mrb[0].mxu0 %v1897
        %v1936 = vpop.f32.mrb[0].mxu0
        %v1937 = vadd.f32 0.0, %v1936
        %v1938 = vpop.f32.mrb[0].mxu0
        %v1939 = vpop.f32.mrb[0].mxu0
        %v1940 = vpop.f32.mrb[0].mxu0
        %1941 = vdwg.mxu0
        %v1942 = vmul.f32 %v1937, 0.35355338
        %v1943 = vadd.f32 %v1942, %v1715
        %v1944 = vsel %vm966, %v1943, -inf
        %1945 = vmax.xlane.f32.xlu0 %v1944
        %v1946 = vpop.xlane.xlu0 %1945
        %v1947 = vsub.f32 %v1943, %v1946
        %v1948 = vmul.f32 %v1947, 1.442695
        %v1949 = vpow.pop %v1948
        %v1950 = vsel %vm966, %v1949, 0.0
        %1951 = vadd.xlane.f32.xlu0 %v1950
        %v1952 = vpop.xlane.xlu0 %1951
        %v1953 = vrcp.pop %v1952
        %v1954 = vpack.c.bf16 %v1949, %v1949
        %1955 = vrot.lane.b32.xlu0 %v1663, 80
        %v1956 = vpop.permute.xlu0 %1955
        %v1958 = vsel %vm966, %v1954, 0
        %v1961 = vsel %vm1031, %v1956, 0
        %1963 = vmatprep.subr.bf16.mxu0 0
        %1964 = vmatpush1.bf16.msra.mxu0 %v1961
        %1965 = vmatprep.subr.bf16.mxu0 0
        %1966 = vmatpush1.bf16.msra.mxu0 0
        %1967 = vmatprep.subr.bf16.mxu0 0
        %1968 = vmatpush1.bf16.msra.mxu0 0
        %1969 = vmatprep.subr.bf16.mxu0 0
        %1970 = vmatpush1.bf16.msra.mxu0 0
        %1971 = vmatprep.subr.bf16.mxu0 0
        %1972 = vmatpush1.bf16.msra.mxu0 0
        %1973 = vmatprep.subr.bf16.mxu0 0
        %1974 = vmatpush1.bf16.msra.mxu0 0
        %1975 = vmatprep.subr.bf16.mxu0 0
        %1976 = vmatpush1.bf16.msra.mxu0 0
        %1977 = vmatprep.subr.bf16.mxu0 0
        %1978 = vmatpush1.bf16.msra.mxu0 0
        %1979 = vmatprep.subr.bf16.mxu0 0
        %1980 = vmatpush1.bf16.msra.mxu0 0
        %1981 = vmatprep.subr.bf16.mxu0 0
        %1982 = vmatpush1.bf16.msra.mxu0 0
        %1983 = vmatprep.subr.bf16.mxu0 0
        %1984 = vmatpush1.bf16.msra.mxu0 0
        %1985 = vmatprep.subr.bf16.mxu0 0
        %1986 = vmatpush1.bf16.msra.mxu0 0
        %1987 = vmatprep.subr.bf16.mxu0 0
        %1988 = vmatpush1.bf16.msra.mxu0 0
        %1989 = vmatprep.subr.bf16.mxu0 0
        %1990 = vmatpush1.bf16.msra.mxu0 0
        %1991 = vmatprep.subr.bf16.mxu0 0
        %1992 = vmatpush1.bf16.msra.mxu0 0
        %1993 = vmatprep.subr.bf16.mxu0 0
        %1994 = vmatpush1.bf16.msra.mxu0 0
        %1995 = vmatprep.mubr.bf16.mxu0 0
        %1996 = vmatmul.mubr.bf16.gmra.mrb[0].mxu0 %v1958
        %v1997 = vpop.f32.mrb[0].mxu0
        %v1998 = vadd.f32 0.0, %v1997
        %v1999 = vpop.f32.mrb[0].mxu0
        %v2000 = vpop.f32.mrb[0].mxu0
        %v2001 = vpop.f32.mrb[0].mxu0
        %2002 = vdwg.mxu0
        %v2003 = vmul.f32 %v1998, %v1953
        %2004 = vrot.lane.b32.xlu0 %v1662, 104
        %v2005 = vpop.permute.xlu0 %2004
        %2006 = vrot.lane.b32.xlu0 %v1663, 104
        %v2007 = vpop.permute.xlu0 %2006
        %v2009 = vsel %vm966, %v2005, 0
        %v2012 = vsel %vm966, %v2007, 0
        %2014 = vmatprep.subr.bf16.mxu0 0
        %2015 = vmatpush1.bf16.xpose.msra.mxu0 %v2012
        %2016 = vmatprep.subr.bf16.mxu0 0
        %2017 = vmatpush1.bf16.xpose.msra.mxu0 0
        %2018 = vmatprep.subr.bf16.mxu0 0
        %2019 = vmatpush1.bf16.xpose.msra.mxu0 0
        %2020 = vmatprep.subr.bf16.mxu0 0
        %2021 = vmatpush1.bf16.xpose.msra.mxu0 0
        %2022 = vmatprep.subr.bf16.mxu0 0
        %2023 = vmatpush1.bf16.xpose.msra.mxu0 0
        %2024 = vmatprep.subr.bf16.mxu0 0
        %2025 = vmatpush1.bf16.xpose.msra.mxu0 0
        %2026 = vmatprep.subr.bf16.mxu0 0
        %2027 = vmatpush1.bf16.xpose.msra.mxu0 0
        %2028 = vmatprep.subr.bf16.mxu0 0
        %2029 = vmatpush1.bf16.xpose.msra.mxu0 0
        %2030 = vmatprep.subr.bf16.mxu0 0
        %2031 = vmatpush1.bf16.xpose.msra.mxu0 0
        %2032 = vmatprep.subr.bf16.mxu0 0
        %2033 = vmatpush1.bf16.xpose.msra.mxu0 0
        %2034 = vmatprep.subr.bf16.mxu0 0
        %2035 = vmatpush1.bf16.xpose.msra.mxu0 0
        %2036 = vmatprep.subr.bf16.mxu0 0
        %2037 = vmatpush1.bf16.xpose.msra.mxu0 0
        %2038 = vmatprep.subr.bf16.mxu0 0
        %2039 = vmatpush1.bf16.xpose.msra.mxu0 0
        %2040 = vmatprep.subr.bf16.mxu0 0
        %2041 = vmatpush1.bf16.xpose.msra.mxu0 0
        %2042 = vmatprep.subr.bf16.mxu0 0
        %2043 = vmatpush1.bf16.xpose.msra.mxu0 0
        %2044 = vmatprep.subr.bf16.mxu0 0
        %2045 = vmatpush1.bf16.xpose.msra.mxu0 0
        %2046 = vmatprep.mubr.bf16.mxu0 0
        %2047 = vmatmul.mubr.bf16.gmra.mrb[0].mxu0 %v2009
        %v2048 = vpop.f32.mrb[0].mxu0
        %v2049 = vadd.f32 0.0, %v2048
        %v2050 = vpop.f32.mrb[0].mxu0
        %v2051 = vpop.f32.mrb[0].mxu0
        %v2052 = vpop.f32.mrb[0].mxu0
        %2053 = vdwg.mxu0
        %v2054 = vmul.f32 %v2049, 0.35355338
        %v2055 = vadd.f32 %v2054, %v1715
        %v2056 = vsel %vm966, %v2055, -inf
        %2057 = vmax.xlane.f32.xlu0 %v2056
        %v2058 = vpop.xlane.xlu0 %2057
        %v2059 = vsub.f32 %v2055, %v2058
        %v2060 = vmul.f32 %v2059, 1.442695
        %v2061 = vpow.pop %v2060
        %v2062 = vsel %vm966, %v2061, 0.0
        %2063 = vadd.xlane.f32.xlu0 %v2062
        %v2064 = vpop.xlane.xlu0 %2063
        %v2065 = vrcp.pop %v2064
        %v2066 = vpack.c.bf16 %v2061, %v2061
        %2067 = vrot.lane.b32.xlu0 %v1663, 72
        %v2068 = vpop.permute.xlu0 %2067
        %v2070 = vsel %vm966, %v2066, 0
        %v2073 = vsel %vm1031, %v2068, 0
        %2075 = vmatprep.subr.bf16.mxu0 0
        %2076 = vmatpush1.bf16.msra.mxu0 %v2073
        %2077 = vmatprep.subr.bf16.mxu0 0
        %2078 = vmatpush1.bf16.msra.mxu0 0
        %2079 = vmatprep.subr.bf16.mxu0 0
        %2080 = vmatpush1.bf16.msra.mxu0 0
        %2081 = vmatprep.subr.bf16.mxu0 0
        %2082 = vmatpush1.bf16.msra.mxu0 0
        %2083 = vmatprep.subr.bf16.mxu0 0
        %2084 = vmatpush1.bf16.msra.mxu0 0
        %2085 = vmatprep.subr.bf16.mxu0 0
        %2086 = vmatpush1.bf16.msra.mxu0 0
        %2087 = vmatprep.subr.bf16.mxu0 0
        %2088 = vmatpush1.bf16.msra.mxu0 0
        %2089 = vmatprep.subr.bf16.mxu0 0
        %2090 = vmatpush1.bf16.msra.mxu0 0
        %2091 = vmatprep.subr.bf16.mxu0 0
        %2092 = vmatpush1.bf16.msra.mxu0 0
        %2093 = vmatprep.subr.bf16.mxu0 0
        %2094 = vmatpush1.bf16.msra.mxu0 0
        %2095 = vmatprep.subr.bf16.mxu0 0
        %2096 = vmatpush1.bf16.msra.mxu0 0
        %2097 = vmatprep.subr.bf16.mxu0 0
        %2098 = vmatpush1.bf16.msra.mxu0 0
        %2099 = vmatprep.subr.bf16.mxu0 0
        %2100 = vmatpush1.bf16.msra.mxu0 0
        %2101 = vmatprep.subr.bf16.mxu0 0
        %2102 = vmatpush1.bf16.msra.mxu0 0
        %2103 = vmatprep.subr.bf16.mxu0 0
        %2104 = vmatpush1.bf16.msra.mxu0 0
        %2105 = vmatprep.subr.bf16.mxu0 0
        %2106 = vmatpush1.bf16.msra.mxu0 0
        %2107 = vmatprep.mubr.bf16.mxu0 0
        %2108 = vmatmul.mubr.bf16.gmra.mrb[0].mxu0 %v2070
        %v2109 = vpop.f32.mrb[0].mxu0
        %v2110 = vadd.f32 0.0, %v2109
        %v2111 = vpop.f32.mrb[0].mxu0
        %v2112 = vpop.f32.mrb[0].mxu0
        %v2113 = vpop.f32.mrb[0].mxu0
        %2114 = vdwg.mxu0
        %v2115 = vmul.f32 %v2110, %v2065
        %2117 = vrot.lane.b32.xlu0 %v1891, 8
        %v2118 = vpop.permute.xlu0 %2117
        %2121 = vrot.lane.b32.xlu0 %v2003, 16
        %v2122 = vpop.permute.xlu0 %2121
        %2125 = vrot.lane.b32.xlu0 %v2115, 24
        %v2126 = vpop.permute.xlu0 %2125
        %v2128 = vsel %vm966, %v1778, %v2118
        %v2129 = vsel %vm1425, %v2128, %v2122
        %v2130 = vsel %vm1427, %v2129, %v2126
        %v2131 = vpack.c.bf16 %v2130, %v2130
        %v2132 = vld [vmem:[#allocation14] sm:$0xf]
        %v2133 = vld [vmem:[#allocation14 + $0x4] sm:$0xf]
        %v2134 = vld [vmem:[#allocation14 + $0x8] sm:$0xf]
        %v2135 = vld [vmem:[#allocation14 + $0xc] sm:$0xf]
        %v2136 = vld [vmem:[#allocation16] sm:$0x1]
        %v2138 = vlaneseq
        %v2139 = vshrl.u32 %v2138, 7
        %v2140 = vsub.s32 0, %v2139
        %v2141 = vrot.slane %v2136, %v2140
        %v2147 = vunpack.c.l.b16 %v2132
        %v2148 = vunpack.c.l.b16 %v2133
        %v2149 = vunpack.c.l.b16 %v2134
        %v2150 = vunpack.c.l.b16 %v2135
        %v2151 = vpack.c.b16 %v2148, %v2147
        %v2152 = vpack.c.b16 %v2150, %v2149
        %v2156 = vsel %vm917, %v2131, 0
        %2158 = vmatprep.subr.bf16.mxu0 0
        %2159 = vmatpush1.bf16.msra.mxu0 %v2151
        %2160 = vmatprep.subr.bf16.mxu0 0
        %2161 = vmatpush1.bf16.msra.mxu0 %v2152
        %2162 = vmatprep.subr.bf16.mxu0 0
        %2163 = vmatpush1.bf16.msra.mxu0 0
        %2164 = vmatprep.subr.bf16.mxu0 0
        %2165 = vmatpush1.bf16.msra.mxu0 0
        %2166 = vmatprep.subr.bf16.mxu0 0
        %2167 = vmatpush1.bf16.msra.mxu0 0
        %2168 = vmatprep.subr.bf16.mxu0 0
        %2169 = vmatpush1.bf16.msra.mxu0 0
        %2170 = vmatprep.subr.bf16.mxu0 0
        %2171 = vmatpush1.bf16.msra.mxu0 0
        %2172 = vmatprep.subr.bf16.mxu0 0
        %2173 = vmatpush1.bf16.msra.mxu0 0
        %2174 = vmatprep.subr.bf16.mxu0 0
        %2175 = vmatpush1.bf16.msra.mxu0 0
        %2176 = vmatprep.subr.bf16.mxu0 0
        %2177 = vmatpush1.bf16.msra.mxu0 0
        %2178 = vmatprep.subr.bf16.mxu0 0
        %2179 = vmatpush1.bf16.msra.mxu0 0
        %2180 = vmatprep.subr.bf16.mxu0 0
        %2181 = vmatpush1.bf16.msra.mxu0 0
        %2182 = vmatprep.subr.bf16.mxu0 0
        %2183 = vmatpush1.bf16.msra.mxu0 0
        %2184 = vmatprep.subr.bf16.mxu0 0
        %2185 = vmatpush1.bf16.msra.mxu0 0
        %2186 = vmatprep.subr.bf16.mxu0 0
        %2187 = vmatpush1.bf16.msra.mxu0 0
        %2188 = vmatprep.subr.bf16.mxu0 0
        %2189 = vmatpush1.bf16.msra.mxu0 0
        %2190 = vmatprep.mubr.bf16.mxu0 0
        %2191 = vmatmul.mubr.bf16.gmra.mrb[0].mxu0 %v2156
        %v2192 = vpop.f32.mrb[0].mxu0
        %v2193 = vadd.f32 %v2141, %v2192
        %v2194 = vpop.f32.mrb[0].mxu0
        %v2195 = vpop.f32.mrb[0].mxu0
        %v2196 = vpop.f32.mrb[0].mxu0
        %2197 = vdwg.mxu0
        %v2198 = vadd.f32 %v1526, %v2193
        %v2199 = vld [vmem:[%s20] sm:$0x1]
        %v2200 = vld [vmem:[%s21] sm:$0x1]
        %v2201 = vsel %vm917, %v2198, 0.0
        %2202 = vadd.xlane.f32.xlu0 %v2201
        %v2203 = vpop.xlane.xlu0 %2202
        %v2204 = vmul.f32 %v2203, %v1502
        %v2205 = vsub.f32 %v2198, %v2204
        %v2206 = vmul.f32 %v2205, %v2205
        %v2207 = vsel %vm917, %v2206, 0.0
        %2208 = vadd.xlane.f32.xlu0 %v2207
        %v2209 = vpop.xlane.xlu0 %2208
        %v2210 = vmul.f32 %v2209, %v1502
        %v2211 = vadd.f32 %v2210, 1e-06
        %v2212 = vrsqrt.pop %v2211
        %v2213 = vmul.f32 %v2205, %v2212
        %v2215 = vlaneseq
        %v2216 = vshrl.u32 %v2215, 7
        %v2217 = vsub.s32 0, %v2216
        %v2218 = vrot.slane %v2199, %v2217
        %v2220 = vmul.f32 %v2213, %v2218
        %v2222 = vlaneseq
        %v2223 = vshrl.u32 %v2222, 7
        %v2224 = vsub.s32 0, %v2223
        %v2225 = vrot.slane %v2200, %v2224
        %v2227 = vadd.f32 %v2220, %v2225
        %v2228 = vpack.c.bf16 %v2227, %v2227
        %v2229 = vld [vmem:[%s14] sm:$0xf]
        %v2230 = vld [vmem:[%s14 + $0x4] sm:$0xf]
        %v2231 = vld [vmem:[%s14 + $0x8] sm:$0xf]
        %v2232 = vld [vmem:[%s14 + $0xc] sm:$0xf]
        %v2233 = vld [vmem:[%s15] sm:$0x1]
        %v2235 = vlaneseq
        %v2236 = vshrl.u32 %v2235, 7
        %v2237 = vsub.s32 0, %v2236
        %v2238 = vrot.slane %v2233, %v2237
        %v2244 = vunpack.c.l.b16 %v2229
        %v2245 = vunpack.c.l.b16 %v2230
        %v2246 = vunpack.c.l.b16 %v2231
        %v2247 = vunpack.c.l.b16 %v2232
        %v2248 = vpack.c.b16 %v2245, %v2244
        %v2249 = vpack.c.b16 %v2247, %v2246
        %v2253 = vsel %vm917, %v2228, 0
        %2255 = vmatprep.subr.bf16.mxu0 0
        %2256 = vmatpush1.bf16.msra.mxu0 %v2248
        %2257 = vmatprep.subr.bf16.mxu0 0
        %2258 = vmatpush1.bf16.msra.mxu0 %v2249
        %2259 = vmatprep.subr.bf16.mxu0 0
        %2260 = vmatpush1.bf16.msra.mxu0 0
        %2261 = vmatprep.subr.bf16.mxu0 0
        %2262 = vmatpush1.bf16.msra.mxu0 0
        %2263 = vmatprep.subr.bf16.mxu0 0
        %2264 = vmatpush1.bf16.msra.mxu0 0
        %2265 = vmatprep.subr.bf16.mxu0 0
        %2266 = vmatpush1.bf16.msra.mxu0 0
        %2267 = vmatprep.subr.bf16.mxu0 0
        %2268 = vmatpush1.bf16.msra.mxu0 0
        %2269 = vmatprep.subr.bf16.mxu0 0
        %2270 = vmatpush1.bf16.msra.mxu0 0
        %2271 = vmatprep.subr.bf16.mxu0 0
        %2272 = vmatpush1.bf16.msra.mxu0 0
        %2273 = vmatprep.subr.bf16.mxu0 0
        %2274 = vmatpush1.bf16.msra.mxu0 0
        %2275 = vmatprep.subr.bf16.mxu0 0
        %2276 = vmatpush1.bf16.msra.mxu0 0
        %2277 = vmatprep.subr.bf16.mxu0 0
        %2278 = vmatpush1.bf16.msra.mxu0 0
        %2279 = vmatprep.subr.bf16.mxu0 0
        %2280 = vmatpush1.bf16.msra.mxu0 0
        %2281 = vmatprep.subr.bf16.mxu0 0
        %2282 = vmatpush1.bf16.msra.mxu0 0
        %2283 = vmatprep.subr.bf16.mxu0 0
        %2284 = vmatpush1.bf16.msra.mxu0 0
        %2285 = vmatprep.subr.bf16.mxu0 0
        %2286 = vmatpush1.bf16.msra.mxu0 0
        %2287 = vmatprep.mubr.bf16.mxu0 0
        %2288 = vmatmul.mubr.bf16.gmra.mrb[0].mxu0 %v2253
        %v2289 = vpop.f32.mrb[0].mxu0
        %v2290 = vadd.f32 %v2238, %v2289
        %v2291 = vpop.f32.mrb[0].mxu0
        %v2292 = vpop.f32.mrb[0].mxu0
        %v2293 = vpop.f32.mrb[0].mxu0
        %2294 = vdwg.mxu0
        %v2295 = vmax.f32 %v2290, 0.0
        %v2296 = vpack.c.bf16 %v2295, %v2295
        %v2297 = vld [vmem:[%s16] sm:$0xf]
        %v2298 = vld [vmem:[%s16 + $0x4] sm:$0xf]
        %v2299 = vld [vmem:[%s16 + $0x8] sm:$0xf]
        %v2300 = vld [vmem:[%s16 + $0xc] sm:$0xf]
        %v2301 = vld [vmem:[%s16 + $0x10] sm:$0xf]
        %v2302 = vld [vmem:[%s16 + $0x14] sm:$0xf]
        %v2303 = vld [vmem:[%s16 + $0x18] sm:$0xf]
        %v2304 = vld [vmem:[%s16 + $0x1c] sm:$0xf]
        %v2305 = vld [vmem:[%s17] sm:$0x1]
        %v2307 = vlaneseq
        %v2308 = vshrl.u32 %v2307, 7
        %v2309 = vsub.s32 0, %v2308
        %v2310 = vrot.slane %v2305, %v2309
        %v2320 = vunpack.c.l.b16 %v2297
        %v2321 = vunpack.c.l.b16 %v2298
        %v2322 = vunpack.c.l.b16 %v2299
        %v2323 = vunpack.c.l.b16 %v2300
        %v2324 = vunpack.c.l.b16 %v2301
        %v2325 = vunpack.c.l.b16 %v2302
        %v2326 = vunpack.c.l.b16 %v2303
        %v2327 = vunpack.c.l.b16 %v2304
        %v2328 = vpack.c.b16 %v2321, %v2320
        %v2329 = vpack.c.b16 %v2323, %v2322
        %v2330 = vpack.c.b16 %v2325, %v2324
        %v2331 = vpack.c.b16 %v2327, %v2326
        %vm2336 = vcmask 523264
        %v2338 = vsel %vm2336, %v2296, 0
        %2340 = vmatprep.subr.bf16.mxu0 0
        %2341 = vmatpush1.bf16.msra.mxu0 %v2328
        %2342 = vmatprep.subr.bf16.mxu0 0
        %2343 = vmatpush1.bf16.msra.mxu0 %v2329
        %2344 = vmatprep.subr.bf16.mxu0 0
        %2345 = vmatpush1.bf16.msra.mxu0 %v2330
        %2346 = vmatprep.subr.bf16.mxu0 0
        %2347 = vmatpush1.bf16.msra.mxu0 %v2331
        %2348 = vmatprep.subr.bf16.mxu0 0
        %2349 = vmatpush1.bf16.msra.mxu0 0
        %2350 = vmatprep.subr.bf16.mxu0 0
        %2351 = vmatpush1.bf16.msra.mxu0 0
        %2352 = vmatprep.subr.bf16.mxu0 0
        %2353 = vmatpush1.bf16.msra.mxu0 0
        %2354 = vmatprep.subr.bf16.mxu0 0
        %2355 = vmatpush1.bf16.msra.mxu0 0
        %2356 = vmatprep.subr.bf16.mxu0 0
        %2357 = vmatpush1.bf16.msra.mxu0 0
        %2358 = vmatprep.subr.bf16.mxu0 0
        %2359 = vmatpush1.bf16.msra.mxu0 0
        %2360 = vmatprep.subr.bf16.mxu0 0
        %2361 = vmatpush1.bf16.msra.mxu0 0
        %2362 = vmatprep.subr.bf16.mxu0 0
        %2363 = vmatpush1.bf16.msra.mxu0 0
        %2364 = vmatprep.subr.bf16.mxu0 0
        %2365 = vmatpush1.bf16.msra.mxu0 0
        %2366 = vmatprep.subr.bf16.mxu0 0
        %2367 = vmatpush1.bf16.msra.mxu0 0
        %2368 = vmatprep.subr.bf16.mxu0 0
        %2369 = vmatpush1.bf16.msra.mxu0 0
        %2370 = vmatprep.subr.bf16.mxu0 0
        %2371 = vmatpush1.bf16.msra.mxu0 0
        %2372 = vmatprep.mubr.bf16.mxu0 0
        %2373 = vmatmul.mubr.bf16.gmra.mrb[0].mxu0 %v2338
        %v2374 = vpop.f32.mrb[0].mxu0
        %v2375 = vadd.f32 %v2310, %v2374
        %v2376 = vpop.f32.mrb[0].mxu0
        %v2377 = vpop.f32.mrb[0].mxu0
        %v2378 = vpop.f32.mrb[0].mxu0
        %2379 = vdwg.mxu0
        %v2380 = vadd.f32 %v2227, %v2375
        %v2381 = vld [vmem:[%s22] sm:$0x1]
        %v2382 = vld [vmem:[%s23] sm:$0x1]
        %v2383 = vsel %vm917, %v2380, 0.0
        %2384 = vadd.xlane.f32.xlu0 %v2383
        %v2385 = vpop.xlane.xlu0 %2384
        %v2386 = vmul.f32 %v2385, %v1502
        %v2387 = vsub.f32 %v2380, %v2386
        %v2388 = vmul.f32 %v2387, %v2387
        %v2389 = vsel %vm917, %v2388, 0.0
        %2390 = vadd.xlane.f32.xlu0 %v2389
        %v2391 = vpop.xlane.xlu0 %2390
        %v2392 = vmul.f32 %v2391, %v1502
        %v2393 = vadd.f32 %v2392, 1e-06
        %v2394 = vrsqrt.pop %v2393
        %v2395 = vmul.f32 %v2387, %v2394
        %v2397 = vlaneseq
        %v2398 = vshrl.u32 %v2397, 7
        %v2399 = vsub.s32 0, %v2398
        %v2400 = vrot.slane %v2381, %v2399
        %v2402 = vmul.f32 %v2395, %v2400
        %v2404 = vlaneseq
        %v2405 = vshrl.u32 %v2404, 7
        %v2406 = vsub.s32 0, %v2405
        %v2407 = vrot.slane %v2382, %v2406
        %v2409 = vadd.f32 %v2402, %v2407
        %2410 = vst.msk [vmem:[%s881] sm:$0xff] %vm917, %v2409
        %s2411 = sand.u32 %s572, 1
        %s2412 = scalar_lea.sflag [#allocation4], %s2411
        %s2413 = sand.u32 %s572, 1
        %s2414 = smul.addr %s2413, 8
        %s2415 = scalar_lea.vmem [#allocation17], %s2414
        // Predicated region
        $region153: #{tpu_custom_call.1} parent=115 // pred_check
          %p2416 = pneg %p582
        $region154: #{tpu_custom_call.1} parent=115 // pred_check_branch
          %2418 = sbr.rel (%p2416) target = $region156
        $region155: #{tpu_custom_call.1} parent=115 // pred_region
          %s2420 = ssub.s32 128, 128
          %2421 = vsyncadd %s2412, %s2420
          %s2422 = smul.addr %s45, 128
          %s2423 = scalar_lea.hbm %s24, %s2422
          %s2425 = sshll.u32 %s2415, 4
          %s2426 = int_to_ptr.vmem [resolvable:$true] %s2425
          %2428 = dma.vmem_to_hbm [thread:$0]  %s2426, 128, %s2423, %s2412
        $region156: #{tpu_custom_call.1} parent=115 // pred_fallthru
          _
      $region116: #{tpu_custom_call.1} parent=5 // pred_fallthru
        _
      %p2429 = scmp.le.s32.totalorder 2, %s40
      // Predicated region
      $region157: #{tpu_custom_call.1} parent=5 // pred_check
        %p2430 = pneg %p2429
      $region158: #{tpu_custom_call.1} parent=5 // pred_check_branch
        %2432 = sbr.rel (%p2430) target = $region160
      $region159: #{tpu_custom_call.1} parent=5 // pred_region
        %s2433 = ssub.s32 %s40, 2
        // Predicated region
        $region161: #{tpu_custom_call.1} parent=159 // pred_check
          %p2434 = pneg %p588
        $region162: #{tpu_custom_call.1} parent=159 // pred_check_branch
          %2436 = sbr.rel (%p2434) target = $region164
        $region163: #{tpu_custom_call.1} parent=159 // pred_region
          %s2437 = sand.u32 %s573, 1
          %s2438 = scalar_lea.sflag [#allocation4], %s2437
          %s2439 = sand.u32 %s573, 1
          %s2440 = smul.addr %s2439, 8
          %s2441 = scalar_lea.vmem [#allocation17], %s2440
          %2442 = dma.done %s2438, 128
        $region164: #{tpu_custom_call.1} parent=159 // pred_fallthru
          _
      $region160: #{tpu_custom_call.1} parent=5 // pred_fallthru
        _
    $region6: #{tpu_custom_call.1} parent=1 // loop_footer
      %s44 = sadd.s32 1, %s40
    $region7: #{tpu_custom_call.1} parent=1 // loop_footer_branch
      %39 = sbr.rel target = $region3
    $region8: #{tpu_custom_call.1} parent=1 // loop_exit
      _
    %2443 = vsyncpa [#allocation3], 1
    %s2444 = scalar_lea.sflag [#allocation3], 1
    %2445 = vsyncpa %s2444, 1
    %2446 = vsyncpa [#allocation6], 1
    %s2447 = scalar_lea.sflag [#allocation6], 1
    %2448 = vsyncpa %s2447, 1
    %2449 = vsyncpa [#allocation9], 1
    %2450 = vsyncpa [#allocation12], 1
    %2451 = vsyncpa [#allocation15], 1
    %2452 = vsyncpa [#allocation4], 1
    %s2453 = scalar_lea.sflag [#allocation4], 1
    %2454 = vsyncpa %s2453, 1

</llo_original>
